<compile_context>
chip_gen: v5e
topology: v5e:2x2
jax: 0.10.0
libtpu: 0.0.40
codegen_flags: <defaults>
</compile_context>

<pallas_src>
import functools

import jax
import jax.numpy as jnp
from jax import lax
from jax.experimental import pallas as pl
from jax.experimental.pallas import tpu as pltpu

# ----------------------------- configuration ------------------------------
DIM = 32
DEPTH = 2
HEADS = 2
DIM_HEAD = 16
SEQ = 8
BATCH = 2

DIM_COND = DIM * 4                       # time-conditioning width (128)
DIM_INNER_ATTN = HEADS * DIM_HEAD        # attention inner dim (32)
FF_INNER = int(DIM * 4 * 2 / 3)          # GEGLU inner dim (=85 for dim=32)
FF_PAD = 128                             # lane-aligned padded GEGLU inner dim
ROWS = BATCH * SEQ                       # batch folded into sublanes (16)
N_FILM = DEPTH * 2 * 3 * DIM             # fused FiLM/ada-zero projection width (384)
SOFTCAP = 50.0
LN_EPS = 1e-5                            # torch nn.LayerNorm default eps
L2_EPS = 1e-12                           # torch F.normalize default eps
NEG_MAX = -3.4028235e38                  # -finfo(float32).max
ATTN_SCALE = DIM_HEAD ** -0.5


# ------------------------- in-kernel math helpers --------------------------
def _layernorm(x):
    mean = jnp.mean(x, axis=-1, keepdims=True)
    var = jnp.mean((x - mean) ** 2, axis=-1, keepdims=True)
    return (x - mean) * lax.rsqrt(var + LN_EPS)


def _adaptive_pre(x, gamma, beta, lng, is_mod):
    """AdaptiveWrapper pre-half: non-affine LayerNorm + FiLM gating."""
    xn = _layernorm(x)
    text_tokens = xn * (lng + 1.0)
    modality_tokens = xn * (gamma + 1.0) + beta
    return jnp.where(is_mod, modality_tokens, text_tokens)


def _adaptive_post(out, adaz, lsc, is_mod):
    """AdaptiveWrapper post-half: layerscale (text) vs ada-ln-zero gate (modality)."""
    return jnp.where(is_mod, out * jax.nn.sigmoid(adaz), out * (lsc + 1.0))


def _rmsnorm(x, gamma):
    """RMSNorm: l2norm(x) * sqrt(dim) * (gamma + 1), divide-free (rsqrt on EUP)."""
    ss = jnp.sum(x * x, axis=-1, keepdims=True)
    inv = lax.rsqrt(jnp.maximum(ss, L2_EPS * L2_EPS))   # == 1 / max(||x||, eps)
    return x * inv * (DIM ** 0.5) * (gamma + 1.0)


# ------------------------------ fused kernel --------------------------------
def fused_transformer_kernel(
        # SMEM modality table, per-row time, activations
        mp_ref, t_ref, x_ref,
        # time conditioning (fourier weights duplicated sin|cos, wt row-blocks)
        fw2_ref, wt_t_ref, wt_sc_ref, bt_ref,
        # fused FiLM / ada-ln-zero projection (all layers & branches)
        wfilm_ref, bfilm_ref,
        # attention weights stacked over depth
        wqkv_ref, wout_ref,
        # feed-forward weights stacked over depth (w1 = [x-half | gate-half], padded)
        w1_ref, b1_ref, w2_ref,
        # packed small vectors (lng/lsc/rmsg per branch per layer, b2, final gamma)
        vecs_ref,
        # output
        o_ref,
        *, num_modalities: int, batch: int):
    # ---- masks: block-diagonal over folded batch, built from SMEM triples ------
    qi = lax.broadcasted_iota(jnp.int32, (ROWS, ROWS), 0)
    kj = lax.broadcasted_iota(jnp.int32, (ROWS, ROWS), 1)
    nrow = lax.broadcasted_iota(jnp.int32, (ROWS, 1), 0)
    allowed = None
    is_mod = None
    for b in range(batch):
        lo, hi = b * SEQ, (b + 1) * SEQ
        blk = (qi >= lo) & (qi < hi) & (kj >= lo) & (kj < hi)
        a_b = blk & (qi >= kj)                                   # causal, same batch
        in_r = (nrow >= lo) & (nrow < hi)
        for m in range(num_modalities):
            base = (b * num_modalities + m) * 3
            mtype = mp_ref[base + 0]
            off = mp_ref[base + 1]
            length = mp_ref[base + 2]
            a_b = a_b | (blk & (qi >= lo + off) & (kj < lo + off + length))
            cur = in_r & (nrow >= lo + off) & (nrow < lo + off + length) & (mtype == 0)
            is_mod = cur if is_mod is None else (is_mod | cur)   # (ROWS, 1) bool
        allowed = a_b if allowed is None else (allowed | a_b)
    if is_mod is None:
        is_mod = jnp.zeros((ROWS, 1), jnp.bool_)
    neg_bias = jnp.where(allowed, jnp.float32(0.0), jnp.float32(NEG_MAX))

    # ---- time conditioning: SiLU(Linear([t, sin, cos])) -----------------------
    t = t_ref[...]                                               # (ROWS, 1)
    freqs2 = t * fw2_ref[...] * (2.0 * jnp.pi)                   # (ROWS, DIM) dup'd
    lane = lax.broadcasted_iota(jnp.int32, (1, DIM), 1)
    sincos = jnp.where(lane < (DIM // 2), jnp.sin(freqs2), jnp.cos(freqs2))
    cond = (t * wt_t_ref[...]
            + jnp.dot(sincos, wt_sc_ref[...], preferred_element_type=jnp.float32)
            + bt_ref[...])
    cond = cond * jax.nn.sigmoid(cond)                           # (ROWS, DIM_COND)

    # ---- FiLM / ada-ln-zero projections fused & hoisted out of the layer loop --
    film = (jnp.dot(cond, wfilm_ref[...], preferred_element_type=jnp.float32)
            + bfilm_ref[...])                                    # (ROWS, N_FILM)

    def vec(i):                                                  # packed (1, DIM) row
        return vecs_ref[i:i + 1, :]

    # ---- layer stack (unrolled; x never leaves VMEM/vregs) ----------------------
    x = x_ref[...]                                               # (ROWS, DIM)
    for d in range(DEPTH):
        # ------ AdaptiveWrapper(Attention) + residual ------
        fo = (2 * d + 0) * 3 * DIM
        gamma = film[:, fo:fo + DIM]
        beta = film[:, fo + DIM:fo + 2 * DIM]
        adaz = film[:, fo + 2 * DIM:fo + 3 * DIM]
        h = _adaptive_pre(x, gamma, beta, vec(6 * d + 0), is_mod)
        hn = _rmsnorm(h, vec(6 * d + 2))
        qkv = jnp.dot(hn, wqkv_ref[d], preferred_element_type=jnp.float32)  # (ROWS,96)
        heads_out = []
        for hh in range(HEADS):                                  # static head loop
            q = qkv[:, hh * DIM_HEAD:(hh + 1) * DIM_HEAD] * ATTN_SCALE
            k = qkv[:, DIM_INNER_ATTN + hh * DIM_HEAD:
                    DIM_INNER_ATTN + (hh + 1) * DIM_HEAD]
            v = qkv[:, 2 * DIM_INNER_ATTN + hh * DIM_HEAD:
                    2 * DIM_INNER_ATTN + (hh + 1) * DIM_HEAD]
            sim = lax.dot_general(q, k, (((1,), (1,)), ((), ())),
                                  preferred_element_type=jnp.float32)
            sim = jnp.tanh(sim / SOFTCAP) * SOFTCAP + neg_bias   # softclamp + mask
            e = jnp.exp(sim - jnp.max(sim, axis=-1, keepdims=True))
            p = e * pl.reciprocal(jnp.sum(e, axis=-1, keepdims=True), approx=True)
            heads_out.append(jnp.dot(p, v, preferred_element_type=jnp.float32))
        out_cat = jnp.concatenate(heads_out, axis=-1)            # (ROWS, 32) = (h d)
        attn_out = jnp.dot(out_cat, wout_ref[d], preferred_element_type=jnp.float32)
        x = x + _adaptive_post(attn_out, adaz, vec(6 * d + 1), is_mod)

        # ------ AdaptiveWrapper(FeedForward) + residual ------
        fo = (2 * d + 1) * 3 * DIM
        gamma = film[:, fo:fo + DIM]
        beta = film[:, fo + DIM:fo + 2 * DIM]
        adaz = film[:, fo + 2 * DIM:fo + 3 * DIM]
        h = _adaptive_pre(x, gamma, beta, vec(6 * d + 3), is_mod)
        hn = _rmsnorm(h, vec(6 * d + 5))
        ff1 = jnp.dot(hn, w1_ref[d], preferred_element_type=jnp.float32) + b1_ref[d]
        xp = ff1[:, :FF_PAD]                                     # 128-aligned slices
        gp = ff1[:, FF_PAD:]
        # TODO(synk): torch F.gelu default is exact erf-GELU; tanh approximation used.
        geglu = jax.nn.gelu(gp, approximate=True) * xp
        out = (jnp.dot(geglu, w2_ref[d], preferred_element_type=jnp.float32)
               + vec(6 * DEPTH + d))                             # + b2
        x = x + _adaptive_post(out, adaz, vec(6 * d + 4), is_mod)

    # final RMSNorm, single store
    o_ref[...] = _rmsnorm(x, vec(6 * DEPTH + DEPTH)).astype(o_ref.dtype)


# ------------------------------ pallas wrapper -------------------------------
def prepare_params(params):
    """Wrapper-side (free) re-layout: fuse/pack weights, stack over depth."""
    fw, wt, bt = params["time"]
    fw2 = jnp.concatenate([fw, fw], axis=1)          # duplicated for sin|cos lanes
    wt_t = wt[0:1, :]                                # row multiplying t
    wt_sc = wt[1:, :]                                # rows multiplying [sin | cos]

    attn = [l["attn"] for l in params["layers"]]
    ff = [l["ff"] for l in params["layers"]]

    # Fused FiLM / ada-ln-zero projection: per (layer, branch) -> [gamma|beta|adaz]
    wfilm_cols, bfilm_cols = [], []
    for d in range(DEPTH):
        for br in (attn[d], ff[d]):
            wfilm_cols += [br["wfilm"][:, :DIM], br["wfilm"][:, DIM:], br["wadaz"]]
            bfilm_cols += [br["bfilm"][:, :DIM], br["bfilm"][:, DIM:], br["badaz"]]
    wfilm_all = jnp.concatenate(wfilm_cols, axis=1)  # (DIM_COND, N_FILM)
    bfilm_all = jnp.concatenate(bfilm_cols, axis=1)  # (1, N_FILM)

    wqkv = jnp.stack([a["wqkv"] for a in attn], axis=0)   # (DEPTH, DIM, 3*H*Dh)
    wout = jnp.stack([a["wout"] for a in attn], axis=0)   # (DEPTH, H*Dh, DIM)

    def pad_cols(a, n):
        return jnp.pad(a, ((0, 0), (0, n - a.shape[1])))

    w1_l, b1_l, w2_l = [], [], []
    for f in ff:
        wx, wg = f["w1"][:, :FF_INNER], f["w1"][:, FF_INNER:]
        bx, bg = f["b1"][:, :FF_INNER], f["b1"][:, FF_INNER:]
        w1_l.append(jnp.concatenate([pad_cols(wx, FF_PAD), pad_cols(wg, FF_PAD)], 1))
        b1_l.append(jnp.concatenate([pad_cols(bx, FF_PAD), pad_cols(bg, FF_PAD)], 1))
        w2_l.append(jnp.pad(f["w2"], ((0, FF_PAD - FF_INNER), (0, 0))))
    w1 = jnp.stack(w1_l, axis=0)                     # (DEPTH, DIM, 2*FF_PAD)
    b1 = jnp.stack(b1_l, axis=0)                     # (DEPTH, 1, 2*FF_PAD)
    w2 = jnp.stack(w2_l, axis=0)                     # (DEPTH, FF_PAD, DIM)

    # Packed small vectors: per layer [attn lng, attn lsc, attn rmsg,
    # ff lng, ff lsc, ff rmsg], then per-layer ff b2, then final gamma.
    rows = []
    for d in range(DEPTH):
        rows += [attn[d]["lng"], attn[d]["lsc"], attn[d]["rmsg"],
                 ff[d]["lng"], ff[d]["lsc"], ff[d]["rmsg"]]
    rows += [ff[d]["b2"] for d in range(DEPTH)]
    rows.append(params["final_gamma"])
    vecs = jnp.concatenate(rows, axis=0)
    vecs = jnp.pad(vecs, ((0, (-vecs.shape[0]) % 8), (0, 0)))    # sublane-pad

    return [fw2, wt_t, wt_sc, bt, wfilm_all, bfilm_all,
            wqkv, wout, w1, b1, w2, vecs]


def transformer_forward(x, times, modality_positions, params):
    b, n, d = x.shape
    assert (b, n, d) == (BATCH, SEQ, DIM)
    num_modalities = modality_positions.shape[1]

    flat = prepare_params(params)
    x2 = x.reshape(b * n, d).astype(jnp.float32)
    t_rows = jnp.repeat(times.astype(jnp.float32).reshape(-1), n).reshape(b * n, 1)
    mp_flat = modality_positions.astype(jnp.int32).reshape(-1)   # (B*M*3,) -> SMEM

    smem = pl.BlockSpec(memory_space=pltpu.MemorySpace.SMEM)
    vmem = pl.BlockSpec(memory_space=pltpu.MemorySpace.VMEM)

    kernel = functools.partial(fused_transformer_kernel,
                               num_modalities=num_modalities, batch=b)
    out = pl.pallas_call(
        kernel,
        out_shape=jax.ShapeDtypeStruct((b * n, d), jnp.float32),
        in_specs=[smem] + [vmem] * (2 + len(flat)),
        out_specs=vmem,
        compiler_params=pltpu.CompilerParams(
            vmem_limit_bytes=32 * 1024 * 1024,       # <= v7x scoped default
        ),
    )(mp_flat, t_rows, x2, *flat)
    return out.reshape(b, n, d)


# ------------------------------- parameters ---------------------------------
def init_params(key):
    keys = jax.random.split(key, 128)
    it = iter(keys)

    def nrm(shape, scale=0.05):
        return jax.random.normal(next(it), shape, jnp.float32) * scale

    params = {
        "time": (nrm((1, DIM // 2), 1.0),            # RandomFourierEmbed weights
                 nrm((DIM + 1, DIM_COND)),           # Linear(dim+1 -> 4*dim) W
                 nrm((1, DIM_COND))),                # ... bias
        "layers": [],
        "final_gamma": nrm((1, DIM)),
    }
    for _ in range(DEPTH):
        def adaptive_params():
            return dict(
                lng=nrm((1, DIM)), lsc=nrm((1, DIM)),
                wfilm=nrm((DIM_COND, 2 * DIM)), bfilm=nrm((1, 2 * DIM)),
                wadaz=nrm((DIM_COND, DIM)), badaz=nrm((1, DIM)) - 2.0,
            )
        attn = adaptive_params()
        attn.update(
            rmsg=nrm((1, DIM)),
            wqkv=nrm((DIM, 3 * DIM_INNER_ATTN)),     # columns ordered (qkv, h, d)
            wout=nrm((DIM_INNER_ATTN, DIM)),
        )
        ff = adaptive_params()
        ff.update(
            rmsg=nrm((1, DIM)),
            w1=nrm((DIM, 2 * FF_INNER)), b1=nrm((1, 2 * FF_INNER)),
            w2=nrm((FF_INNER, DIM)), b2=nrm((1, DIM)),
        )
        params["layers"].append(dict(attn=attn, ff=ff))
    return params


# ---------------------------------- main -------------------------------------
if __name__ == "__main__":
    key = jax.random.PRNGKey(0)
    k_params, k_x, k_t = jax.random.split(key, 3)

    params = init_params(k_params)
    x = jax.random.normal(k_x, (BATCH, SEQ, DIM), jnp.float32)
    times = jax.random.uniform(k_t, (BATCH,), jnp.float32)
    # (b, m, 3): [modality_type, offset, length]
    modality_positions = jnp.array([[[0, 2, 4]],
                                    [[0, 1, 3]]], dtype=jnp.int32)

    out = transformer_forward(x, times, modality_positions, params)
    out = jax.block_until_ready(out)
    assert out.shape == (BATCH, SEQ, DIM)
    assert bool(jnp.all(jnp.isfinite(out)))
    print("KERNEL_OK")
</pallas_src>

<mosaic_0001>
module attributes {stable_mosaic.version = 11 : i64} {
  func.func @fused_transformer_kernel(%arg0: memref<6xi32, #tpu.memory_space<smem>>, %arg1: memref<16x1xf32, #tpu.memory_space<vmem>>, %arg2: memref<16x32xf32, #tpu.memory_space<vmem>>, %arg3: memref<1x32xf32, #tpu.memory_space<vmem>>, %arg4: memref<1x128xf32, #tpu.memory_space<vmem>>, %arg5: memref<32x128xf32, #tpu.memory_space<vmem>>, %arg6: memref<1x128xf32, #tpu.memory_space<vmem>>, %arg7: memref<128x384xf32, #tpu.memory_space<vmem>>, %arg8: memref<1x384xf32, #tpu.memory_space<vmem>>, %arg9: memref<2x32x96xf32, #tpu.memory_space<vmem>>, %arg10: memref<2x32x32xf32, #tpu.memory_space<vmem>>, %arg11: memref<2x32x256xf32, #tpu.memory_space<vmem>>, %arg12: memref<2x1x256xf32, #tpu.memory_space<vmem>>, %arg13: memref<2x128x32xf32, #tpu.memory_space<vmem>>, %arg14: memref<16x32xf32, #tpu.memory_space<vmem>>, %arg15: memref<16x32xf32, #tpu.memory_space<vmem>>) attributes {dimension_semantics = [], scalar_prefetch = 0 : i64, scratch_operands = 0 : i64, tpu.core_type = #tpu.core_type<tc>} {
    %0 = tpu.iota {dimensions = array<i32: 0>} : vector<16x16xi32>
    %1 = tpu.iota {dimensions = array<i32: 1>} : vector<16x16xi32>
    %2 = tpu.iota {dimensions = array<i32: 0>} : vector<16x1xi32>
    %c0_i32 = arith.constant 0 : i32
    %3 = vector.broadcast %c0_i32 : i32 to vector<16x16xi32>
    %4 = arith.cmpi sge, %0, %3 : vector<16x16xi32>
    %c8_i32 = arith.constant 8 : i32
    %5 = vector.broadcast %c8_i32 : i32 to vector<16x16xi32>
    %6 = arith.cmpi slt, %0, %5 : vector<16x16xi32>
    %7 = arith.andi %4, %6 : vector<16x16xi1>
    %c0_i32_0 = arith.constant 0 : i32
    %8 = vector.broadcast %c0_i32_0 : i32 to vector<16x16xi32>
    %9 = arith.cmpi sge, %1, %8 : vector<16x16xi32>
    %10 = arith.andi %7, %9 : vector<16x16xi1>
    %c8_i32_1 = arith.constant 8 : i32
    %11 = vector.broadcast %c8_i32_1 : i32 to vector<16x16xi32>
    %12 = arith.cmpi slt, %1, %11 : vector<16x16xi32>
    %13 = arith.andi %10, %12 : vector<16x16xi1>
    %14 = arith.cmpi sge, %0, %1 : vector<16x16xi32>
    %15 = arith.andi %13, %14 : vector<16x16xi1>
    %c0_i32_2 = arith.constant 0 : i32
    %16 = vector.broadcast %c0_i32_2 : i32 to vector<16x1xi32>
    %17 = arith.cmpi sge, %2, %16 : vector<16x1xi32>
    %c8_i32_3 = arith.constant 8 : i32
    %18 = vector.broadcast %c8_i32_3 : i32 to vector<16x1xi32>
    %19 = arith.cmpi slt, %2, %18 : vector<16x1xi32>
    %20 = arith.andi %17, %19 : vector<16x1xi1>
    %c0 = arith.constant 0 : index
    %21 = memref.load %arg0[%c0] : memref<6xi32, #tpu.memory_space<smem>>
    %c1 = arith.constant 1 : index
    %22 = memref.load %arg0[%c1] : memref<6xi32, #tpu.memory_space<smem>>
    %c2 = arith.constant 2 : index
    %23 = memref.load %arg0[%c2] : memref<6xi32, #tpu.memory_space<smem>>
    %c0_i32_4 = arith.constant 0 : i32
    %24 = arith.addi %c0_i32_4, %22 : i32
    %25 = vector.broadcast %24 : i32 to vector<16x16xi32>
    %26 = arith.cmpi sge, %0, %25 : vector<16x16xi32>
    %27 = arith.andi %13, %26 : vector<16x16xi1>
    %c0_i32_5 = arith.constant 0 : i32
    %28 = arith.addi %c0_i32_5, %22 : i32
    %29 = arith.addi %28, %23 : i32
    %30 = vector.broadcast %29 : i32 to vector<16x16xi32>
    %31 = arith.cmpi slt, %1, %30 : vector<16x16xi32>
    %32 = arith.andi %27, %31 : vector<16x16xi1>
    %33 = arith.ori %15, %32 : vector<16x16xi1>
    %c0_i32_6 = arith.constant 0 : i32
    %34 = arith.addi %c0_i32_6, %22 : i32
    %35 = vector.broadcast %34 : i32 to vector<16x1xi32>
    %36 = arith.cmpi sge, %2, %35 : vector<16x1xi32>
    %37 = arith.andi %20, %36 : vector<16x1xi1>
    %c0_i32_7 = arith.constant 0 : i32
    %38 = arith.addi %c0_i32_7, %22 : i32
    %39 = arith.addi %38, %23 : i32
    %40 = vector.broadcast %39 : i32 to vector<16x1xi32>
    %41 = arith.cmpi slt, %2, %40 : vector<16x1xi32>
    %42 = arith.andi %37, %41 : vector<16x1xi1>
    %c0_i32_8 = arith.constant 0 : i32
    %43 = arith.cmpi eq, %21, %c0_i32_8 : i32
    %44 = vector.broadcast %43 : i1 to vector<16x1xi1>
    %45 = arith.andi %42, %44 : vector<16x1xi1>
    %c8_i32_9 = arith.constant 8 : i32
    %46 = vector.broadcast %c8_i32_9 : i32 to vector<16x16xi32>
    %47 = arith.cmpi sge, %0, %46 : vector<16x16xi32>
    %c16_i32 = arith.constant 16 : i32
    %48 = vector.broadcast %c16_i32 : i32 to vector<16x16xi32>
    %49 = arith.cmpi slt, %0, %48 : vector<16x16xi32>
    %50 = arith.andi %47, %49 : vector<16x16xi1>
    %c8_i32_10 = arith.constant 8 : i32
    %51 = vector.broadcast %c8_i32_10 : i32 to vector<16x16xi32>
    %52 = arith.cmpi sge, %1, %51 : vector<16x16xi32>
    %53 = arith.andi %50, %52 : vector<16x16xi1>
    %c16_i32_11 = arith.constant 16 : i32
    %54 = vector.broadcast %c16_i32_11 : i32 to vector<16x16xi32>
    %55 = arith.cmpi slt, %1, %54 : vector<16x16xi32>
    %56 = arith.andi %53, %55 : vector<16x16xi1>
    %57 = arith.cmpi sge, %0, %1 : vector<16x16xi32>
    %58 = arith.andi %56, %57 : vector<16x16xi1>
    %c8_i32_12 = arith.constant 8 : i32
    %59 = vector.broadcast %c8_i32_12 : i32 to vector<16x1xi32>
    %60 = arith.cmpi sge, %2, %59 : vector<16x1xi32>
    %c16_i32_13 = arith.constant 16 : i32
    %61 = vector.broadcast %c16_i32_13 : i32 to vector<16x1xi32>
    %62 = arith.cmpi slt, %2, %61 : vector<16x1xi32>
    %63 = arith.andi %60, %62 : vector<16x1xi1>
    %c3 = arith.constant 3 : index
    %64 = memref.load %arg0[%c3] : memref<6xi32, #tpu.memory_space<smem>>
    %c4 = arith.constant 4 : index
    %65 = memref.load %arg0[%c4] : memref<6xi32, #tpu.memory_space<smem>>
    %c5 = arith.constant 5 : index
    %66 = memref.load %arg0[%c5] : memref<6xi32, #tpu.memory_space<smem>>
    %c8_i32_14 = arith.constant 8 : i32
    %67 = arith.addi %c8_i32_14, %65 : i32
    %68 = vector.broadcast %67 : i32 to vector<16x16xi32>
    %69 = arith.cmpi sge, %0, %68 : vector<16x16xi32>
    %70 = arith.andi %56, %69 : vector<16x16xi1>
    %c8_i32_15 = arith.constant 8 : i32
    %71 = arith.addi %c8_i32_15, %65 : i32
    %72 = arith.addi %71, %66 : i32
    %73 = vector.broadcast %72 : i32 to vector<16x16xi32>
    %74 = arith.cmpi slt, %1, %73 : vector<16x16xi32>
    %75 = arith.andi %70, %74 : vector<16x16xi1>
    %76 = arith.ori %58, %75 : vector<16x16xi1>
    %c8_i32_16 = arith.constant 8 : i32
    %77 = arith.addi %c8_i32_16, %65 : i32
    %78 = vector.broadcast %77 : i32 to vector<16x1xi32>
    %79 = arith.cmpi sge, %2, %78 : vector<16x1xi32>
    %80 = arith.andi %63, %79 : vector<16x1xi1>
    %c8_i32_17 = arith.constant 8 : i32
    %81 = arith.addi %c8_i32_17, %65 : i32
    %82 = arith.addi %81, %66 : i32
    %83 = vector.broadcast %82 : i32 to vector<16x1xi32>
    %84 = arith.cmpi slt, %2, %83 : vector<16x1xi32>
    %85 = arith.andi %80, %84 : vector<16x1xi1>
    %c0_i32_18 = arith.constant 0 : i32
    %86 = arith.cmpi eq, %64, %c0_i32_18 : i32
    %87 = vector.broadcast %86 : i1 to vector<16x1xi1>
    %88 = arith.andi %85, %87 : vector<16x1xi1>
    %89 = arith.ori %45, %88 : vector<16x1xi1>
    %90 = arith.ori %33, %76 : vector<16x16xi1>
    %cst = arith.constant 0.000000e+00 : f32
    %cst_19 = arith.constant -3.40282347E+38 : f32
    %91 = vector.broadcast %cst : f32 to vector<16x16xf32>
    %92 = vector.broadcast %cst_19 : f32 to vector<16x16xf32>
    %93 = arith.select %90, %91, %92 : vector<16x16xi1>, vector<16x16xf32>
    %c0_20 = arith.constant 0 : index
    %c0_21 = arith.constant 0 : index
    %94 = vector.load %arg1[%c0_20, %c0_21] : memref<16x1xf32, #tpu.memory_space<vmem>>, vector<16x1xf32>
    %c0_22 = arith.constant 0 : index
    %c0_23 = arith.constant 0 : index
    %95 = vector.load %arg3[%c0_22, %c0_23] : memref<1x32xf32, #tpu.memory_space<vmem>>, vector<1x32xf32>
    %96 = vector.broadcast %94 : vector<16x1xf32> to vector<16x32xf32>
    %97 = vector.broadcast %95 : vector<1x32xf32> to vector<16x32xf32>
    %98 = arith.mulf %96, %97 : vector<16x32xf32>
    %cst_24 = arith.constant 6.28318548 : f32
    %99 = vector.broadcast %cst_24 : f32 to vector<16x32xf32>
    %100 = arith.mulf %98, %99 : vector<16x32xf32>
    %101 = tpu.iota {dimensions = array<i32: 1>} : vector<1x32xi32>
    %c16_i32_25 = arith.constant 16 : i32
    %102 = vector.broadcast %c16_i32_25 : i32 to vector<1x32xi32>
    %103 = arith.cmpi slt, %101, %102 : vector<1x32xi32>
    %104 = math.sin %100 : vector<16x32xf32>
    %105 = math.cos %100 : vector<16x32xf32>
    %106 = vector.shape_cast %103 : vector<1x32xi1> to vector<1x32xi1>
    %107 = vector.broadcast %106 : vector<1x32xi1> to vector<16x32xi1>
    %108 = arith.select %107, %104, %105 : vector<16x32xi1>, vector<16x32xf32>
    %c0_26 = arith.constant 0 : index
    %c0_27 = arith.constant 0 : index
    %109 = vector.load %arg4[%c0_26, %c0_27] : memref<1x128xf32, #tpu.memory_space<vmem>>, vector<1x128xf32>
    %110 = vector.broadcast %94 : vector<16x1xf32> to vector<16x128xf32>
    %111 = vector.broadcast %109 : vector<1x128xf32> to vector<16x128xf32>
    %112 = arith.mulf %110, %111 : vector<16x128xf32>
    %c0_28 = arith.constant 0 : index
    %c0_29 = arith.constant 0 : index
    %113 = vector.load %arg5[%c0_28, %c0_29] : memref<32x128xf32, #tpu.memory_space<vmem>>, vector<32x128xf32>
    %cst_30 = arith.constant dense<0.000000e+00> : vector<16x128xf32>
    %114 = tpu.matmul %108, %113, %cst_30 {dimension_numbers = #tpu.dot_dimension_numbers<[1], [0], [0], [1], [0, 0, 1, 1], [], []>} : vector<16x32xf32>, vector<32x128xf32>, vector<16x128xf32> -> vector<16x128xf32>
    %115 = arith.addf %112, %114 : vector<16x128xf32>
    %c0_31 = arith.constant 0 : index
    %c0_32 = arith.constant 0 : index
    %116 = vector.load %arg6[%c0_31, %c0_32] : memref<1x128xf32, #tpu.memory_space<vmem>>, vector<1x128xf32>
    %117 = vector.broadcast %116 : vector<1x128xf32> to vector<16x128xf32>
    %118 = arith.addf %115, %117 : vector<16x128xf32>
    %119 = arith.negf %118 : vector<16x128xf32>
    %120 = math.exp %119 : vector<16x128xf32>
    %cst_33 = arith.constant 1.000000e+00 : f32
    %121 = vector.broadcast %cst_33 : f32 to vector<16x128xf32>
    %122 = arith.addf %121, %120 : vector<16x128xf32>
    %123 = arith.divf %121, %122 : vector<16x128xf32>
    %124 = arith.mulf %118, %123 : vector<16x128xf32>
    %c0_34 = arith.constant 0 : index
    %c0_35 = arith.constant 0 : index
    %125 = vector.load %arg7[%c0_34, %c0_35] : memref<128x384xf32, #tpu.memory_space<vmem>>, vector<128x384xf32>
    %cst_36 = arith.constant dense<0.000000e+00> : vector<16x384xf32>
    %126 = tpu.matmul %124, %125, %cst_36 {dimension_numbers = #tpu.dot_dimension_numbers<[1], [0], [0], [1], [0, 0, 1, 1], [], []>} : vector<16x128xf32>, vector<128x384xf32>, vector<16x384xf32> -> vector<16x384xf32>
    %c0_37 = arith.constant 0 : index
    %c0_38 = arith.constant 0 : index
    %127 = vector.load %arg8[%c0_37, %c0_38] : memref<1x384xf32, #tpu.memory_space<vmem>>, vector<1x384xf32>
    %128 = vector.broadcast %127 : vector<1x384xf32> to vector<16x384xf32>
    %129 = arith.addf %126, %128 : vector<16x384xf32>
    %c0_39 = arith.constant 0 : index
    %c0_40 = arith.constant 0 : index
    %130 = vector.load %arg2[%c0_39, %c0_40] : memref<16x32xf32, #tpu.memory_space<vmem>>, vector<16x32xf32>
    %131 = vector.extract_strided_slice %129 {offsets = [0, 0], sizes = [16, 32], strides = [1, 1]} : vector<16x384xf32> to vector<16x32xf32>
    %132 = vector.extract_strided_slice %129 {offsets = [0, 32], sizes = [16, 32], strides = [1, 1]} : vector<16x384xf32> to vector<16x32xf32>
    %133 = vector.extract_strided_slice %129 {offsets = [0, 64], sizes = [16, 32], strides = [1, 1]} : vector<16x384xf32> to vector<16x32xf32>
    %c0_41 = arith.constant 0 : index
    %c0_42 = arith.constant 0 : index
    %134 = vector.load %arg14[%c0_41, %c0_42] : memref<16x32xf32, #tpu.memory_space<vmem>>, vector<1x32xf32>
    %cst_43 = arith.constant dense<0.000000e+00> : vector<16xf32>
    %135 = vector.multi_reduction <add>, %130, %cst_43 [1] : vector<16x32xf32> to vector<16xf32>
    %136 = vector.shape_cast %135 : vector<16xf32> to vector<16x1xf32>
    %cst_44 = arith.constant 3.200000e+01 : f32
    %137 = vector.broadcast %cst_44 : f32 to vector<16x1xf32>
    %138 = arith.divf %136, %137 : vector<16x1xf32>
    %139 = vector.broadcast %138 : vector<16x1xf32> to vector<16x32xf32>
    %140 = arith.subf %130, %139 : vector<16x32xf32>
    %141 = arith.mulf %140, %140 : vector<16x32xf32>
    %cst_45 = arith.constant dense<0.000000e+00> : vector<16xf32>
    %142 = vector.multi_reduction <add>, %141, %cst_45 [1] : vector<16x32xf32> to vector<16xf32>
    %143 = vector.shape_cast %142 : vector<16xf32> to vector<16x1xf32>
    %cst_46 = arith.constant 3.200000e+01 : f32
    %144 = vector.broadcast %cst_46 : f32 to vector<16x1xf32>
    %145 = arith.divf %143, %144 : vector<16x1xf32>
    %146 = vector.broadcast %138 : vector<16x1xf32> to vector<16x32xf32>
    %147 = arith.subf %130, %146 : vector<16x32xf32>
    %cst_47 = arith.constant 9.99999974E-6 : f32
    %148 = vector.broadcast %cst_47 : f32 to vector<16x1xf32>
    %149 = arith.addf %145, %148 : vector<16x1xf32>
    %150 = math.rsqrt %149 : vector<16x1xf32>
    %151 = vector.broadcast %150 : vector<16x1xf32> to vector<16x32xf32>
    %152 = arith.mulf %147, %151 : vector<16x32xf32>
    %cst_48 = arith.constant 1.000000e+00 : f32
    %153 = vector.broadcast %cst_48 : f32 to vector<1x32xf32>
    %154 = arith.addf %134, %153 : vector<1x32xf32>
    %155 = vector.broadcast %154 : vector<1x32xf32> to vector<16x32xf32>
    %156 = arith.mulf %152, %155 : vector<16x32xf32>
    %cst_49 = arith.constant 1.000000e+00 : f32
    %157 = vector.broadcast %cst_49 : f32 to vector<16x32xf32>
    %158 = arith.addf %131, %157 : vector<16x32xf32>
    %159 = arith.mulf %152, %158 : vector<16x32xf32>
    %160 = arith.addf %159, %132 : vector<16x32xf32>
    %161 = vector.shape_cast %89 : vector<16x1xi1> to vector<16x1xi1>
    %162 = vector.broadcast %161 : vector<16x1xi1> to vector<16x32xi1>
    %163 = arith.select %162, %160, %156 : vector<16x32xi1>, vector<16x32xf32>
    %c2_50 = arith.constant 2 : index
    %c0_51 = arith.constant 0 : index
    %164 = vector.load %arg14[%c2_50, %c0_51] : memref<16x32xf32, #tpu.memory_space<vmem>>, vector<1x32xf32>
    %165 = arith.mulf %163, %163 : vector<16x32xf32>
    %cst_52 = arith.constant dense<0.000000e+00> : vector<16xf32>
    %166 = vector.multi_reduction <add>, %165, %cst_52 [1] : vector<16x32xf32> to vector<16xf32>
    %167 = vector.shape_cast %166 : vector<16xf32> to vector<16x1xf32>
    %cst_53 = arith.constant 1.000000e-24 : f32
    %168 = vector.broadcast %cst_53 : f32 to vector<16x1xf32>
    %169 = arith.maximumf %167, %168 : vector<16x1xf32>
    %170 = math.rsqrt %169 : vector<16x1xf32>
    %171 = vector.broadcast %170 : vector<16x1xf32> to vector<16x32xf32>
    %172 = arith.mulf %163, %171 : vector<16x32xf32>
    %cst_54 = arith.constant 5.65685415 : f32
    %173 = vector.broadcast %cst_54 : f32 to vector<16x32xf32>
    %174 = arith.mulf %172, %173 : vector<16x32xf32>
    %cst_55 = arith.constant 1.000000e+00 : f32
    %175 = vector.broadcast %cst_55 : f32 to vector<1x32xf32>
    %176 = arith.addf %164, %175 : vector<1x32xf32>
    %177 = vector.broadcast %176 : vector<1x32xf32> to vector<16x32xf32>
    %178 = arith.mulf %174, %177 : vector<16x32xf32>
    %c0_56 = arith.constant 0 : index
    %c0_57 = arith.constant 0 : index
    %c0_58 = arith.constant 0 : index
    %179 = vector.load %arg9[%c0_56, %c0_57, %c0_58] : memref<2x32x96xf32, #tpu.memory_space<vmem>>, vector<1x32x96xf32>
    %180 = vector.shape_cast %179 : vector<1x32x96xf32> to vector<32x96xf32>
    %cst_59 = arith.constant dense<0.000000e+00> : vector<16x96xf32>
    %181 = tpu.matmul %178, %180, %cst_59 {dimension_numbers = #tpu.dot_dimension_numbers<[1], [0], [0], [1], [0, 0, 1, 1], [], []>} : vector<16x32xf32>, vector<32x96xf32>, vector<16x96xf32> -> vector<16x96xf32>
    %182 = vector.extract_strided_slice %181 {offsets = [0, 0], sizes = [16, 16], strides = [1, 1]} : vector<16x96xf32> to vector<16x16xf32>
    %cst_60 = arith.constant 2.500000e-01 : f32
    %183 = vector.broadcast %cst_60 : f32 to vector<16x16xf32>
    %184 = arith.mulf %182, %183 : vector<16x16xf32>
    %185 = vector.extract_strided_slice %181 {offsets = [0, 32], sizes = [16, 16], strides = [1, 1]} : vector<16x96xf32> to vector<16x16xf32>
    %186 = vector.extract_strided_slice %181 {offsets = [0, 64], sizes = [16, 16], strides = [1, 1]} : vector<16x96xf32> to vector<16x16xf32>
    %cst_61 = arith.constant dense<0.000000e+00> : vector<16x16xf32>
    %187 = tpu.matmul %184, %185, %cst_61 {dimension_numbers = #tpu.dot_dimension_numbers<[1], [1], [0], [0], [0, 0, 1, 0], [], []>} : vector<16x16xf32>, vector<16x16xf32>, vector<16x16xf32> -> vector<16x16xf32>
    %cst_62 = arith.constant 5.000000e+01 : f32
    %188 = vector.broadcast %cst_62 : f32 to vector<16x16xf32>
    %189 = arith.divf %187, %188 : vector<16x16xf32>
    %190 = math.tanh %189 : vector<16x16xf32>
    %cst_63 = arith.constant 5.000000e+01 : f32
    %191 = vector.broadcast %cst_63 : f32 to vector<16x16xf32>
    %192 = arith.mulf %190, %191 : vector<16x16xf32>
    %193 = arith.addf %192, %93 : vector<16x16xf32>
    %cst_64 = arith.constant dense<0xFF800000> : vector<16xf32>
    %194 = vector.multi_reduction <maximumf>, %193, %cst_64 [1] : vector<16x16xf32> to vector<16xf32>
    %195 = vector.shape_cast %194 : vector<16xf32> to vector<16x1xf32>
    %196 = vector.broadcast %195 : vector<16x1xf32> to vector<16x16xf32>
    %197 = arith.subf %193, %196 : vector<16x16xf32>
    %198 = math.exp %197 : vector<16x16xf32>
    %cst_65 = arith.constant dense<0.000000e+00> : vector<16xf32>
    %199 = vector.multi_reduction <add>, %198, %cst_65 [1] : vector<16x16xf32> to vector<16xf32>
    %200 = vector.shape_cast %199 : vector<16xf32> to vector<16x1xf32>
    %201 = tpu.reciprocal %200 {approx = true} : vector<16x1xf32> -> vector<16x1xf32>
    %202 = vector.broadcast %201 : vector<16x1xf32> to vector<16x16xf32>
    %203 = arith.mulf %198, %202 : vector<16x16xf32>
    %cst_66 = arith.constant dense<0.000000e+00> : vector<16x16xf32>
    %204 = tpu.matmul %203, %186, %cst_66 {dimension_numbers = #tpu.dot_dimension_numbers<[1], [0], [0], [1], [0, 0, 1, 1], [], []>} : vector<16x16xf32>, vector<16x16xf32>, vector<16x16xf32> -> vector<16x16xf32>
    %205 = vector.extract_strided_slice %181 {offsets = [0, 16], sizes = [16, 16], strides = [1, 1]} : vector<16x96xf32> to vector<16x16xf32>
    %cst_67 = arith.constant 2.500000e-01 : f32
    %206 = vector.broadcast %cst_67 : f32 to vector<16x16xf32>
    %207 = arith.mulf %205, %206 : vector<16x16xf32>
    %208 = vector.extract_strided_slice %181 {offsets = [0, 48], sizes = [16, 16], strides = [1, 1]} : vector<16x96xf32> to vector<16x16xf32>
    %209 = vector.extract_strided_slice %181 {offsets = [0, 80], sizes = [16, 16], strides = [1, 1]} : vector<16x96xf32> to vector<16x16xf32>
    %cst_68 = arith.constant dense<0.000000e+00> : vector<16x16xf32>
    %210 = tpu.matmul %207, %208, %cst_68 {dimension_numbers = #tpu.dot_dimension_numbers<[1], [1], [0], [0], [0, 0, 1, 0], [], []>} : vector<16x16xf32>, vector<16x16xf32>, vector<16x16xf32> -> vector<16x16xf32>
    %cst_69 = arith.constant 5.000000e+01 : f32
    %211 = vector.broadcast %cst_69 : f32 to vector<16x16xf32>
    %212 = arith.divf %210, %211 : vector<16x16xf32>
    %213 = math.tanh %212 : vector<16x16xf32>
    %cst_70 = arith.constant 5.000000e+01 : f32
    %214 = vector.broadcast %cst_70 : f32 to vector<16x16xf32>
    %215 = arith.mulf %213, %214 : vector<16x16xf32>
    %216 = arith.addf %215, %93 : vector<16x16xf32>
    %cst_71 = arith.constant dense<0xFF800000> : vector<16xf32>
    %217 = vector.multi_reduction <maximumf>, %216, %cst_71 [1] : vector<16x16xf32> to vector<16xf32>
    %218 = vector.shape_cast %217 : vector<16xf32> to vector<16x1xf32>
    %219 = vector.broadcast %218 : vector<16x1xf32> to vector<16x16xf32>
    %220 = arith.subf %216, %219 : vector<16x16xf32>
    %221 = math.exp %220 : vector<16x16xf32>
    %cst_72 = arith.constant dense<0.000000e+00> : vector<16xf32>
    %222 = vector.multi_reduction <add>, %221, %cst_72 [1] : vector<16x16xf32> to vector<16xf32>
    %223 = vector.shape_cast %222 : vector<16xf32> to vector<16x1xf32>
    %224 = tpu.reciprocal %223 {approx = true} : vector<16x1xf32> -> vector<16x1xf32>
    %225 = vector.broadcast %224 : vector<16x1xf32> to vector<16x16xf32>
    %226 = arith.mulf %221, %225 : vector<16x16xf32>
    %cst_73 = arith.constant dense<0.000000e+00> : vector<16x16xf32>
    %227 = tpu.matmul %226, %209, %cst_73 {dimension_numbers = #tpu.dot_dimension_numbers<[1], [0], [0], [1], [0, 0, 1, 1], [], []>} : vector<16x16xf32>, vector<16x16xf32>, vector<16x16xf32> -> vector<16x16xf32>
    %228 = tpu.concatenate %204, %227 in 1 : vector<16x16xf32>, vector<16x16xf32> -> vector<16x32xf32>
    %c0_74 = arith.constant 0 : index
    %c0_75 = arith.constant 0 : index
    %c0_76 = arith.constant 0 : index
    %229 = vector.load %arg10[%c0_74, %c0_75, %c0_76] : memref<2x32x32xf32, #tpu.memory_space<vmem>>, vector<1x32x32xf32>
    %230 = vector.shape_cast %229 : vector<1x32x32xf32> to vector<32x32xf32>
    %cst_77 = arith.constant dense<0.000000e+00> : vector<16x32xf32>
    %231 = tpu.matmul %228, %230, %cst_77 {dimension_numbers = #tpu.dot_dimension_numbers<[1], [0], [0], [1], [0, 0, 1, 1], [], []>} : vector<16x32xf32>, vector<32x32xf32>, vector<16x32xf32> -> vector<16x32xf32>
    %c1_78 = arith.constant 1 : index
    %c0_79 = arith.constant 0 : index
    %232 = vector.load %arg14[%c1_78, %c0_79] : memref<16x32xf32, #tpu.memory_space<vmem>>, vector<1x32xf32>
    %233 = arith.negf %133 : vector<16x32xf32>
    %234 = math.exp %233 : vector<16x32xf32>
    %cst_80 = arith.constant 1.000000e+00 : f32
    %235 = vector.broadcast %cst_80 : f32 to vector<16x32xf32>
    %236 = arith.addf %235, %234 : vector<16x32xf32>
    %237 = arith.divf %235, %236 : vector<16x32xf32>
    %238 = arith.mulf %231, %237 : vector<16x32xf32>
    %cst_81 = arith.constant 1.000000e+00 : f32
    %239 = vector.broadcast %cst_81 : f32 to vector<1x32xf32>
    %240 = arith.addf %232, %239 : vector<1x32xf32>
    %241 = vector.broadcast %240 : vector<1x32xf32> to vector<16x32xf32>
    %242 = arith.mulf %231, %241 : vector<16x32xf32>
    %243 = vector.shape_cast %89 : vector<16x1xi1> to vector<16x1xi1>
    %244 = vector.broadcast %243 : vector<16x1xi1> to vector<16x32xi1>
    %245 = arith.select %244, %238, %242 : vector<16x32xi1>, vector<16x32xf32>
    %246 = arith.addf %130, %245 : vector<16x32xf32>
    %247 = vector.extract_strided_slice %129 {offsets = [0, 96], sizes = [16, 32], strides = [1, 1]} : vector<16x384xf32> to vector<16x32xf32>
    %248 = vector.extract_strided_slice %129 {offsets = [0, 128], sizes = [16, 32], strides = [1, 1]} : vector<16x384xf32> to vector<16x32xf32>
    %249 = vector.extract_strided_slice %129 {offsets = [0, 160], sizes = [16, 32], strides = [1, 1]} : vector<16x384xf32> to vector<16x32xf32>
    %c3_82 = arith.constant 3 : index
    %c0_83 = arith.constant 0 : index
    %250 = vector.load %arg14[%c3_82, %c0_83] : memref<16x32xf32, #tpu.memory_space<vmem>>, vector<1x32xf32>
    %cst_84 = arith.constant dense<0.000000e+00> : vector<16xf32>
    %251 = vector.multi_reduction <add>, %246, %cst_84 [1] : vector<16x32xf32> to vector<16xf32>
    %252 = vector.shape_cast %251 : vector<16xf32> to vector<16x1xf32>
    %cst_85 = arith.constant 3.200000e+01 : f32
    %253 = vector.broadcast %cst_85 : f32 to vector<16x1xf32>
    %254 = arith.divf %252, %253 : vector<16x1xf32>
    %255 = vector.broadcast %254 : vector<16x1xf32> to vector<16x32xf32>
    %256 = arith.subf %246, %255 : vector<16x32xf32>
    %257 = arith.mulf %256, %256 : vector<16x32xf32>
    %cst_86 = arith.constant dense<0.000000e+00> : vector<16xf32>
    %258 = vector.multi_reduction <add>, %257, %cst_86 [1] : vector<16x32xf32> to vector<16xf32>
    %259 = vector.shape_cast %258 : vector<16xf32> to vector<16x1xf32>
    %cst_87 = arith.constant 3.200000e+01 : f32
    %260 = vector.broadcast %cst_87 : f32 to vector<16x1xf32>
    %261 = arith.divf %259, %260 : vector<16x1xf32>
    %262 = vector.broadcast %254 : vector<16x1xf32> to vector<16x32xf32>
    %263 = arith.subf %246, %262 : vector<16x32xf32>
    %cst_88 = arith.constant 9.99999974E-6 : f32
    %264 = vector.broadcast %cst_88 : f32 to vector<16x1xf32>
    %265 = arith.addf %261, %264 : vector<16x1xf32>
    %266 = math.rsqrt %265 : vector<16x1xf32>
    %267 = vector.broadcast %266 : vector<16x1xf32> to vector<16x32xf32>
    %268 = arith.mulf %263, %267 : vector<16x32xf32>
    %cst_89 = arith.constant 1.000000e+00 : f32
    %269 = vector.broadcast %cst_89 : f32 to vector<1x32xf32>
    %270 = arith.addf %250, %269 : vector<1x32xf32>
    %271 = vector.broadcast %270 : vector<1x32xf32> to vector<16x32xf32>
    %272 = arith.mulf %268, %271 : vector<16x32xf32>
    %cst_90 = arith.constant 1.000000e+00 : f32
    %273 = vector.broadcast %cst_90 : f32 to vector<16x32xf32>
    %274 = arith.addf %247, %273 : vector<16x32xf32>
    %275 = arith.mulf %268, %274 : vector<16x32xf32>
    %276 = arith.addf %275, %248 : vector<16x32xf32>
    %277 = vector.shape_cast %89 : vector<16x1xi1> to vector<16x1xi1>
    %278 = vector.broadcast %277 : vector<16x1xi1> to vector<16x32xi1>
    %279 = arith.select %278, %276, %272 : vector<16x32xi1>, vector<16x32xf32>
    %c5_91 = arith.constant 5 : index
    %c0_92 = arith.constant 0 : index
    %280 = vector.load %arg14[%c5_91, %c0_92] : memref<16x32xf32, #tpu.memory_space<vmem>>, vector<1x32xf32>
    %281 = arith.mulf %279, %279 : vector<16x32xf32>
    %cst_93 = arith.constant dense<0.000000e+00> : vector<16xf32>
    %282 = vector.multi_reduction <add>, %281, %cst_93 [1] : vector<16x32xf32> to vector<16xf32>
    %283 = vector.shape_cast %282 : vector<16xf32> to vector<16x1xf32>
    %cst_94 = arith.constant 1.000000e-24 : f32
    %284 = vector.broadcast %cst_94 : f32 to vector<16x1xf32>
    %285 = arith.maximumf %283, %284 : vector<16x1xf32>
    %286 = math.rsqrt %285 : vector<16x1xf32>
    %287 = vector.broadcast %286 : vector<16x1xf32> to vector<16x32xf32>
    %288 = arith.mulf %279, %287 : vector<16x32xf32>
    %cst_95 = arith.constant 5.65685415 : f32
    %289 = vector.broadcast %cst_95 : f32 to vector<16x32xf32>
    %290 = arith.mulf %288, %289 : vector<16x32xf32>
    %cst_96 = arith.constant 1.000000e+00 : f32
    %291 = vector.broadcast %cst_96 : f32 to vector<1x32xf32>
    %292 = arith.addf %280, %291 : vector<1x32xf32>
    %293 = vector.broadcast %292 : vector<1x32xf32> to vector<16x32xf32>
    %294 = arith.mulf %290, %293 : vector<16x32xf32>
    %c0_97 = arith.constant 0 : index
    %c0_98 = arith.constant 0 : index
    %c0_99 = arith.constant 0 : index
    %295 = vector.load %arg11[%c0_97, %c0_98, %c0_99] : memref<2x32x256xf32, #tpu.memory_space<vmem>>, vector<1x32x256xf32>
    %296 = vector.shape_cast %295 : vector<1x32x256xf32> to vector<32x256xf32>
    %cst_100 = arith.constant dense<0.000000e+00> : vector<16x256xf32>
    %297 = tpu.matmul %294, %296, %cst_100 {dimension_numbers = #tpu.dot_dimension_numbers<[1], [0], [0], [1], [0, 0, 1, 1], [], []>} : vector<16x32xf32>, vector<32x256xf32>, vector<16x256xf32> -> vector<16x256xf32>
    %c0_101 = arith.constant 0 : index
    %c0_102 = arith.constant 0 : index
    %c0_103 = arith.constant 0 : index
    %298 = vector.load %arg12[%c0_101, %c0_102, %c0_103] : memref<2x1x256xf32, #tpu.memory_space<vmem>>, vector<1x1x256xf32>
    %299 = vector.shape_cast %298 : vector<1x1x256xf32> to vector<1x256xf32>
    %300 = vector.broadcast %299 : vector<1x256xf32> to vector<16x256xf32>
    %301 = arith.addf %297, %300 : vector<16x256xf32>
    %302 = vector.extract_strided_slice %301 {offsets = [0, 0], sizes = [16, 128], strides = [1, 1]} : vector<16x256xf32> to vector<16x128xf32>
    %303 = vector.extract_strided_slice %301 {offsets = [0, 128], sizes = [16, 128], strides = [1, 1]} : vector<16x256xf32> to vector<16x128xf32>
    %304 = arith.mulf %303, %303 : vector<16x128xf32>
    %305 = arith.mulf %303, %304 : vector<16x128xf32>
    %cst_104 = arith.constant 4.471500e-02 : f32
    %306 = vector.broadcast %cst_104 : f32 to vector<16x128xf32>
    %307 = arith.mulf %306, %305 : vector<16x128xf32>
    %308 = arith.addf %303, %307 : vector<16x128xf32>
    %cst_105 = arith.constant 0.797884583 : f32
    %309 = vector.broadcast %cst_105 : f32 to vector<16x128xf32>
    %310 = arith.mulf %309, %308 : vector<16x128xf32>
    %311 = math.tanh %310 : vector<16x128xf32>
    %cst_106 = arith.constant 1.000000e+00 : f32
    %312 = vector.broadcast %cst_106 : f32 to vector<16x128xf32>
    %313 = arith.addf %312, %311 : vector<16x128xf32>
    %cst_107 = arith.constant 5.000000e-01 : f32
    %314 = vector.broadcast %cst_107 : f32 to vector<16x128xf32>
    %315 = arith.mulf %314, %313 : vector<16x128xf32>
    %316 = arith.mulf %303, %315 : vector<16x128xf32>
    %317 = arith.mulf %316, %302 : vector<16x128xf32>
    %c0_108 = arith.constant 0 : index
    %c0_109 = arith.constant 0 : index
    %c0_110 = arith.constant 0 : index
    %318 = vector.load %arg13[%c0_108, %c0_109, %c0_110] : memref<2x128x32xf32, #tpu.memory_space<vmem>>, vector<1x128x32xf32>
    %319 = vector.shape_cast %318 : vector<1x128x32xf32> to vector<128x32xf32>
    %cst_111 = arith.constant dense<0.000000e+00> : vector<16x32xf32>
    %320 = tpu.matmul %317, %319, %cst_111 {dimension_numbers = #tpu.dot_dimension_numbers<[1], [0], [0], [1], [0, 0, 1, 1], [], []>} : vector<16x128xf32>, vector<128x32xf32>, vector<16x32xf32> -> vector<16x32xf32>
    %c12 = arith.constant 12 : index
    %c0_112 = arith.constant 0 : index
    %321 = vector.load %arg14[%c12, %c0_112] : memref<16x32xf32, #tpu.memory_space<vmem>>, vector<1x32xf32>
    %322 = vector.broadcast %321 : vector<1x32xf32> to vector<16x32xf32>
    %323 = arith.addf %320, %322 : vector<16x32xf32>
    %c4_113 = arith.constant 4 : index
    %c0_114 = arith.constant 0 : index
    %324 = vector.load %arg14[%c4_113, %c0_114] : memref<16x32xf32, #tpu.memory_space<vmem>>, vector<1x32xf32>
    %325 = arith.negf %249 : vector<16x32xf32>
    %326 = math.exp %325 : vector<16x32xf32>
    %cst_115 = arith.constant 1.000000e+00 : f32
    %327 = vector.broadcast %cst_115 : f32 to vector<16x32xf32>
    %328 = arith.addf %327, %326 : vector<16x32xf32>
    %329 = arith.divf %327, %328 : vector<16x32xf32>
    %330 = arith.mulf %323, %329 : vector<16x32xf32>
    %cst_116 = arith.constant 1.000000e+00 : f32
    %331 = vector.broadcast %cst_116 : f32 to vector<1x32xf32>
    %332 = arith.addf %324, %331 : vector<1x32xf32>
    %333 = vector.broadcast %332 : vector<1x32xf32> to vector<16x32xf32>
    %334 = arith.mulf %323, %333 : vector<16x32xf32>
    %335 = vector.shape_cast %89 : vector<16x1xi1> to vector<16x1xi1>
    %336 = vector.broadcast %335 : vector<16x1xi1> to vector<16x32xi1>
    %337 = arith.select %336, %330, %334 : vector<16x32xi1>, vector<16x32xf32>
    %338 = arith.addf %246, %337 : vector<16x32xf32>
    %339 = vector.extract_strided_slice %129 {offsets = [0, 192], sizes = [16, 32], strides = [1, 1]} : vector<16x384xf32> to vector<16x32xf32>
    %340 = vector.extract_strided_slice %129 {offsets = [0, 224], sizes = [16, 32], strides = [1, 1]} : vector<16x384xf32> to vector<16x32xf32>
    %341 = vector.extract_strided_slice %129 {offsets = [0, 256], sizes = [16, 32], strides = [1, 1]} : vector<16x384xf32> to vector<16x32xf32>
    %c6 = arith.constant 6 : index
    %c0_117 = arith.constant 0 : index
    %342 = vector.load %arg14[%c6, %c0_117] : memref<16x32xf32, #tpu.memory_space<vmem>>, vector<1x32xf32>
    %cst_118 = arith.constant dense<0.000000e+00> : vector<16xf32>
    %343 = vector.multi_reduction <add>, %338, %cst_118 [1] : vector<16x32xf32> to vector<16xf32>
    %344 = vector.shape_cast %343 : vector<16xf32> to vector<16x1xf32>
    %cst_119 = arith.constant 3.200000e+01 : f32
    %345 = vector.broadcast %cst_119 : f32 to vector<16x1xf32>
    %346 = arith.divf %344, %345 : vector<16x1xf32>
    %347 = vector.broadcast %346 : vector<16x1xf32> to vector<16x32xf32>
    %348 = arith.subf %338, %347 : vector<16x32xf32>
    %349 = arith.mulf %348, %348 : vector<16x32xf32>
    %cst_120 = arith.constant dense<0.000000e+00> : vector<16xf32>
    %350 = vector.multi_reduction <add>, %349, %cst_120 [1] : vector<16x32xf32> to vector<16xf32>
    %351 = vector.shape_cast %350 : vector<16xf32> to vector<16x1xf32>
    %cst_121 = arith.constant 3.200000e+01 : f32
    %352 = vector.broadcast %cst_121 : f32 to vector<16x1xf32>
    %353 = arith.divf %351, %352 : vector<16x1xf32>
    %354 = vector.broadcast %346 : vector<16x1xf32> to vector<16x32xf32>
    %355 = arith.subf %338, %354 : vector<16x32xf32>
    %cst_122 = arith.constant 9.99999974E-6 : f32
    %356 = vector.broadcast %cst_122 : f32 to vector<16x1xf32>
    %357 = arith.addf %353, %356 : vector<16x1xf32>
    %358 = math.rsqrt %357 : vector<16x1xf32>
    %359 = vector.broadcast %358 : vector<16x1xf32> to vector<16x32xf32>
    %360 = arith.mulf %355, %359 : vector<16x32xf32>
    %cst_123 = arith.constant 1.000000e+00 : f32
    %361 = vector.broadcast %cst_123 : f32 to vector<1x32xf32>
    %362 = arith.addf %342, %361 : vector<1x32xf32>
    %363 = vector.broadcast %362 : vector<1x32xf32> to vector<16x32xf32>
    %364 = arith.mulf %360, %363 : vector<16x32xf32>
    %cst_124 = arith.constant 1.000000e+00 : f32
    %365 = vector.broadcast %cst_124 : f32 to vector<16x32xf32>
    %366 = arith.addf %339, %365 : vector<16x32xf32>
    %367 = arith.mulf %360, %366 : vector<16x32xf32>
    %368 = arith.addf %367, %340 : vector<16x32xf32>
    %369 = vector.shape_cast %89 : vector<16x1xi1> to vector<16x1xi1>
    %370 = vector.broadcast %369 : vector<16x1xi1> to vector<16x32xi1>
    %371 = arith.select %370, %368, %364 : vector<16x32xi1>, vector<16x32xf32>
    %c8 = arith.constant 8 : index
    %c0_125 = arith.constant 0 : index
    %372 = vector.load %arg14[%c8, %c0_125] : memref<16x32xf32, #tpu.memory_space<vmem>>, vector<1x32xf32>
    %373 = arith.mulf %371, %371 : vector<16x32xf32>
    %cst_126 = arith.constant dense<0.000000e+00> : vector<16xf32>
    %374 = vector.multi_reduction <add>, %373, %cst_126 [1] : vector<16x32xf32> to vector<16xf32>
    %375 = vector.shape_cast %374 : vector<16xf32> to vector<16x1xf32>
    %cst_127 = arith.constant 1.000000e-24 : f32
    %376 = vector.broadcast %cst_127 : f32 to vector<16x1xf32>
    %377 = arith.maximumf %375, %376 : vector<16x1xf32>
    %378 = math.rsqrt %377 : vector<16x1xf32>
    %379 = vector.broadcast %378 : vector<16x1xf32> to vector<16x32xf32>
    %380 = arith.mulf %371, %379 : vector<16x32xf32>
    %cst_128 = arith.constant 5.65685415 : f32
    %381 = vector.broadcast %cst_128 : f32 to vector<16x32xf32>
    %382 = arith.mulf %380, %381 : vector<16x32xf32>
    %cst_129 = arith.constant 1.000000e+00 : f32
    %383 = vector.broadcast %cst_129 : f32 to vector<1x32xf32>
    %384 = arith.addf %372, %383 : vector<1x32xf32>
    %385 = vector.broadcast %384 : vector<1x32xf32> to vector<16x32xf32>
    %386 = arith.mulf %382, %385 : vector<16x32xf32>
    %c1_130 = arith.constant 1 : index
    %c0_131 = arith.constant 0 : index
    %c0_132 = arith.constant 0 : index
    %387 = vector.load %arg9[%c1_130, %c0_131, %c0_132] : memref<2x32x96xf32, #tpu.memory_space<vmem>>, vector<1x32x96xf32>
    %388 = vector.shape_cast %387 : vector<1x32x96xf32> to vector<32x96xf32>
    %cst_133 = arith.constant dense<0.000000e+00> : vector<16x96xf32>
    %389 = tpu.matmul %386, %388, %cst_133 {dimension_numbers = #tpu.dot_dimension_numbers<[1], [0], [0], [1], [0, 0, 1, 1], [], []>} : vector<16x32xf32>, vector<32x96xf32>, vector<16x96xf32> -> vector<16x96xf32>
    %390 = vector.extract_strided_slice %389 {offsets = [0, 0], sizes = [16, 16], strides = [1, 1]} : vector<16x96xf32> to vector<16x16xf32>
    %cst_134 = arith.constant 2.500000e-01 : f32
    %391 = vector.broadcast %cst_134 : f32 to vector<16x16xf32>
    %392 = arith.mulf %390, %391 : vector<16x16xf32>
    %393 = vector.extract_strided_slice %389 {offsets = [0, 32], sizes = [16, 16], strides = [1, 1]} : vector<16x96xf32> to vector<16x16xf32>
    %394 = vector.extract_strided_slice %389 {offsets = [0, 64], sizes = [16, 16], strides = [1, 1]} : vector<16x96xf32> to vector<16x16xf32>
    %cst_135 = arith.constant dense<0.000000e+00> : vector<16x16xf32>
    %395 = tpu.matmul %392, %393, %cst_135 {dimension_numbers = #tpu.dot_dimension_numbers<[1], [1], [0], [0], [0, 0, 1, 0], [], []>} : vector<16x16xf32>, vector<16x16xf32>, vector<16x16xf32> -> vector<16x16xf32>
    %cst_136 = arith.constant 5.000000e+01 : f32
    %396 = vector.broadcast %cst_136 : f32 to vector<16x16xf32>
    %397 = arith.divf %395, %396 : vector<16x16xf32>
    %398 = math.tanh %397 : vector<16x16xf32>
    %cst_137 = arith.constant 5.000000e+01 : f32
    %399 = vector.broadcast %cst_137 : f32 to vector<16x16xf32>
    %400 = arith.mulf %398, %399 : vector<16x16xf32>
    %401 = arith.addf %400, %93 : vector<16x16xf32>
    %cst_138 = arith.constant dense<0xFF800000> : vector<16xf32>
    %402 = vector.multi_reduction <maximumf>, %401, %cst_138 [1] : vector<16x16xf32> to vector<16xf32>
    %403 = vector.shape_cast %402 : vector<16xf32> to vector<16x1xf32>
    %404 = vector.broadcast %403 : vector<16x1xf32> to vector<16x16xf32>
    %405 = arith.subf %401, %404 : vector<16x16xf32>
    %406 = math.exp %405 : vector<16x16xf32>
    %cst_139 = arith.constant dense<0.000000e+00> : vector<16xf32>
    %407 = vector.multi_reduction <add>, %406, %cst_139 [1] : vector<16x16xf32> to vector<16xf32>
    %408 = vector.shape_cast %407 : vector<16xf32> to vector<16x1xf32>
    %409 = tpu.reciprocal %408 {approx = true} : vector<16x1xf32> -> vector<16x1xf32>
    %410 = vector.broadcast %409 : vector<16x1xf32> to vector<16x16xf32>
    %411 = arith.mulf %406, %410 : vector<16x16xf32>
    %cst_140 = arith.constant dense<0.000000e+00> : vector<16x16xf32>
    %412 = tpu.matmul %411, %394, %cst_140 {dimension_numbers = #tpu.dot_dimension_numbers<[1], [0], [0], [1], [0, 0, 1, 1], [], []>} : vector<16x16xf32>, vector<16x16xf32>, vector<16x16xf32> -> vector<16x16xf32>
    %413 = vector.extract_strided_slice %389 {offsets = [0, 16], sizes = [16, 16], strides = [1, 1]} : vector<16x96xf32> to vector<16x16xf32>
    %cst_141 = arith.constant 2.500000e-01 : f32
    %414 = vector.broadcast %cst_141 : f32 to vector<16x16xf32>
    %415 = arith.mulf %413, %414 : vector<16x16xf32>
    %416 = vector.extract_strided_slice %389 {offsets = [0, 48], sizes = [16, 16], strides = [1, 1]} : vector<16x96xf32> to vector<16x16xf32>
    %417 = vector.extract_strided_slice %389 {offsets = [0, 80], sizes = [16, 16], strides = [1, 1]} : vector<16x96xf32> to vector<16x16xf32>
    %cst_142 = arith.constant dense<0.000000e+00> : vector<16x16xf32>
    %418 = tpu.matmul %415, %416, %cst_142 {dimension_numbers = #tpu.dot_dimension_numbers<[1], [1], [0], [0], [0, 0, 1, 0], [], []>} : vector<16x16xf32>, vector<16x16xf32>, vector<16x16xf32> -> vector<16x16xf32>
    %cst_143 = arith.constant 5.000000e+01 : f32
    %419 = vector.broadcast %cst_143 : f32 to vector<16x16xf32>
    %420 = arith.divf %418, %419 : vector<16x16xf32>
    %421 = math.tanh %420 : vector<16x16xf32>
    %cst_144 = arith.constant 5.000000e+01 : f32
    %422 = vector.broadcast %cst_144 : f32 to vector<16x16xf32>
    %423 = arith.mulf %421, %422 : vector<16x16xf32>
    %424 = arith.addf %423, %93 : vector<16x16xf32>
    %cst_145 = arith.constant dense<0xFF800000> : vector<16xf32>
    %425 = vector.multi_reduction <maximumf>, %424, %cst_145 [1] : vector<16x16xf32> to vector<16xf32>
    %426 = vector.shape_cast %425 : vector<16xf32> to vector<16x1xf32>
    %427 = vector.broadcast %426 : vector<16x1xf32> to vector<16x16xf32>
    %428 = arith.subf %424, %427 : vector<16x16xf32>
    %429 = math.exp %428 : vector<16x16xf32>
    %cst_146 = arith.constant dense<0.000000e+00> : vector<16xf32>
    %430 = vector.multi_reduction <add>, %429, %cst_146 [1] : vector<16x16xf32> to vector<16xf32>
    %431 = vector.shape_cast %430 : vector<16xf32> to vector<16x1xf32>
    %432 = tpu.reciprocal %431 {approx = true} : vector<16x1xf32> -> vector<16x1xf32>
    %433 = vector.broadcast %432 : vector<16x1xf32> to vector<16x16xf32>
    %434 = arith.mulf %429, %433 : vector<16x16xf32>
    %cst_147 = arith.constant dense<0.000000e+00> : vector<16x16xf32>
    %435 = tpu.matmul %434, %417, %cst_147 {dimension_numbers = #tpu.dot_dimension_numbers<[1], [0], [0], [1], [0, 0, 1, 1], [], []>} : vector<16x16xf32>, vector<16x16xf32>, vector<16x16xf32> -> vector<16x16xf32>
    %436 = tpu.concatenate %412, %435 in 1 : vector<16x16xf32>, vector<16x16xf32> -> vector<16x32xf32>
    %c1_148 = arith.constant 1 : index
    %c0_149 = arith.constant 0 : index
    %c0_150 = arith.constant 0 : index
    %437 = vector.load %arg10[%c1_148, %c0_149, %c0_150] : memref<2x32x32xf32, #tpu.memory_space<vmem>>, vector<1x32x32xf32>
    %438 = vector.shape_cast %437 : vector<1x32x32xf32> to vector<32x32xf32>
    %cst_151 = arith.constant dense<0.000000e+00> : vector<16x32xf32>
    %439 = tpu.matmul %436, %438, %cst_151 {dimension_numbers = #tpu.dot_dimension_numbers<[1], [0], [0], [1], [0, 0, 1, 1], [], []>} : vector<16x32xf32>, vector<32x32xf32>, vector<16x32xf32> -> vector<16x32xf32>
    %c7 = arith.constant 7 : index
    %c0_152 = arith.constant 0 : index
    %440 = vector.load %arg14[%c7, %c0_152] : memref<16x32xf32, #tpu.memory_space<vmem>>, vector<1x32xf32>
    %441 = arith.negf %341 : vector<16x32xf32>
    %442 = math.exp %441 : vector<16x32xf32>
    %cst_153 = arith.constant 1.000000e+00 : f32
    %443 = vector.broadcast %cst_153 : f32 to vector<16x32xf32>
    %444 = arith.addf %443, %442 : vector<16x32xf32>
    %445 = arith.divf %443, %444 : vector<16x32xf32>
    %446 = arith.mulf %439, %445 : vector<16x32xf32>
    %cst_154 = arith.constant 1.000000e+00 : f32
    %447 = vector.broadcast %cst_154 : f32 to vector<1x32xf32>
    %448 = arith.addf %440, %447 : vector<1x32xf32>
    %449 = vector.broadcast %448 : vector<1x32xf32> to vector<16x32xf32>
    %450 = arith.mulf %439, %449 : vector<16x32xf32>
    %451 = vector.shape_cast %89 : vector<16x1xi1> to vector<16x1xi1>
    %452 = vector.broadcast %451 : vector<16x1xi1> to vector<16x32xi1>
    %453 = arith.select %452, %446, %450 : vector<16x32xi1>, vector<16x32xf32>
    %454 = arith.addf %338, %453 : vector<16x32xf32>
    %455 = vector.extract_strided_slice %129 {offsets = [0, 288], sizes = [16, 32], strides = [1, 1]} : vector<16x384xf32> to vector<16x32xf32>
    %456 = vector.extract_strided_slice %129 {offsets = [0, 320], sizes = [16, 32], strides = [1, 1]} : vector<16x384xf32> to vector<16x32xf32>
    %457 = vector.extract_strided_slice %129 {offsets = [0, 352], sizes = [16, 32], strides = [1, 1]} : vector<16x384xf32> to vector<16x32xf32>
    %c9 = arith.constant 9 : index
    %c0_155 = arith.constant 0 : index
    %458 = vector.load %arg14[%c9, %c0_155] : memref<16x32xf32, #tpu.memory_space<vmem>>, vector<1x32xf32>
    %cst_156 = arith.constant dense<0.000000e+00> : vector<16xf32>
    %459 = vector.multi_reduction <add>, %454, %cst_156 [1] : vector<16x32xf32> to vector<16xf32>
    %460 = vector.shape_cast %459 : vector<16xf32> to vector<16x1xf32>
    %cst_157 = arith.constant 3.200000e+01 : f32
    %461 = vector.broadcast %cst_157 : f32 to vector<16x1xf32>
    %462 = arith.divf %460, %461 : vector<16x1xf32>
    %463 = vector.broadcast %462 : vector<16x1xf32> to vector<16x32xf32>
    %464 = arith.subf %454, %463 : vector<16x32xf32>
    %465 = arith.mulf %464, %464 : vector<16x32xf32>
    %cst_158 = arith.constant dense<0.000000e+00> : vector<16xf32>
    %466 = vector.multi_reduction <add>, %465, %cst_158 [1] : vector<16x32xf32> to vector<16xf32>
    %467 = vector.shape_cast %466 : vector<16xf32> to vector<16x1xf32>
    %cst_159 = arith.constant 3.200000e+01 : f32
    %468 = vector.broadcast %cst_159 : f32 to vector<16x1xf32>
    %469 = arith.divf %467, %468 : vector<16x1xf32>
    %470 = vector.broadcast %462 : vector<16x1xf32> to vector<16x32xf32>
    %471 = arith.subf %454, %470 : vector<16x32xf32>
    %cst_160 = arith.constant 9.99999974E-6 : f32
    %472 = vector.broadcast %cst_160 : f32 to vector<16x1xf32>
    %473 = arith.addf %469, %472 : vector<16x1xf32>
    %474 = math.rsqrt %473 : vector<16x1xf32>
    %475 = vector.broadcast %474 : vector<16x1xf32> to vector<16x32xf32>
    %476 = arith.mulf %471, %475 : vector<16x32xf32>
    %cst_161 = arith.constant 1.000000e+00 : f32
    %477 = vector.broadcast %cst_161 : f32 to vector<1x32xf32>
    %478 = arith.addf %458, %477 : vector<1x32xf32>
    %479 = vector.broadcast %478 : vector<1x32xf32> to vector<16x32xf32>
    %480 = arith.mulf %476, %479 : vector<16x32xf32>
    %cst_162 = arith.constant 1.000000e+00 : f32
    %481 = vector.broadcast %cst_162 : f32 to vector<16x32xf32>
    %482 = arith.addf %455, %481 : vector<16x32xf32>
    %483 = arith.mulf %476, %482 : vector<16x32xf32>
    %484 = arith.addf %483, %456 : vector<16x32xf32>
    %485 = vector.shape_cast %89 : vector<16x1xi1> to vector<16x1xi1>
    %486 = vector.broadcast %485 : vector<16x1xi1> to vector<16x32xi1>
    %487 = arith.select %486, %484, %480 : vector<16x32xi1>, vector<16x32xf32>
    %c11 = arith.constant 11 : index
    %c0_163 = arith.constant 0 : index
    %488 = vector.load %arg14[%c11, %c0_163] : memref<16x32xf32, #tpu.memory_space<vmem>>, vector<1x32xf32>
    %489 = arith.mulf %487, %487 : vector<16x32xf32>
    %cst_164 = arith.constant dense<0.000000e+00> : vector<16xf32>
    %490 = vector.multi_reduction <add>, %489, %cst_164 [1] : vector<16x32xf32> to vector<16xf32>
    %491 = vector.shape_cast %490 : vector<16xf32> to vector<16x1xf32>
    %cst_165 = arith.constant 1.000000e-24 : f32
    %492 = vector.broadcast %cst_165 : f32 to vector<16x1xf32>
    %493 = arith.maximumf %491, %492 : vector<16x1xf32>
    %494 = math.rsqrt %493 : vector<16x1xf32>
    %495 = vector.broadcast %494 : vector<16x1xf32> to vector<16x32xf32>
    %496 = arith.mulf %487, %495 : vector<16x32xf32>
    %cst_166 = arith.constant 5.65685415 : f32
    %497 = vector.broadcast %cst_166 : f32 to vector<16x32xf32>
    %498 = arith.mulf %496, %497 : vector<16x32xf32>
    %cst_167 = arith.constant 1.000000e+00 : f32
    %499 = vector.broadcast %cst_167 : f32 to vector<1x32xf32>
    %500 = arith.addf %488, %499 : vector<1x32xf32>
    %501 = vector.broadcast %500 : vector<1x32xf32> to vector<16x32xf32>
    %502 = arith.mulf %498, %501 : vector<16x32xf32>
    %c1_168 = arith.constant 1 : index
    %c0_169 = arith.constant 0 : index
    %c0_170 = arith.constant 0 : index
    %503 = vector.load %arg11[%c1_168, %c0_169, %c0_170] : memref<2x32x256xf32, #tpu.memory_space<vmem>>, vector<1x32x256xf32>
    %504 = vector.shape_cast %503 : vector<1x32x256xf32> to vector<32x256xf32>
    %cst_171 = arith.constant dense<0.000000e+00> : vector<16x256xf32>
    %505 = tpu.matmul %502, %504, %cst_171 {dimension_numbers = #tpu.dot_dimension_numbers<[1], [0], [0], [1], [0, 0, 1, 1], [], []>} : vector<16x32xf32>, vector<32x256xf32>, vector<16x256xf32> -> vector<16x256xf32>
    %c1_172 = arith.constant 1 : index
    %c0_173 = arith.constant 0 : index
    %c0_174 = arith.constant 0 : index
    %506 = vector.load %arg12[%c1_172, %c0_173, %c0_174] : memref<2x1x256xf32, #tpu.memory_space<vmem>>, vector<1x1x256xf32>
    %507 = vector.shape_cast %506 : vector<1x1x256xf32> to vector<1x256xf32>
    %508 = vector.broadcast %507 : vector<1x256xf32> to vector<16x256xf32>
    %509 = arith.addf %505, %508 : vector<16x256xf32>
    %510 = vector.extract_strided_slice %509 {offsets = [0, 0], sizes = [16, 128], strides = [1, 1]} : vector<16x256xf32> to vector<16x128xf32>
    %511 = vector.extract_strided_slice %509 {offsets = [0, 128], sizes = [16, 128], strides = [1, 1]} : vector<16x256xf32> to vector<16x128xf32>
    %512 = arith.mulf %511, %511 : vector<16x128xf32>
    %513 = arith.mulf %511, %512 : vector<16x128xf32>
    %cst_175 = arith.constant 4.471500e-02 : f32
    %514 = vector.broadcast %cst_175 : f32 to vector<16x128xf32>
    %515 = arith.mulf %514, %513 : vector<16x128xf32>
    %516 = arith.addf %511, %515 : vector<16x128xf32>
    %cst_176 = arith.constant 0.797884583 : f32
    %517 = vector.broadcast %cst_176 : f32 to vector<16x128xf32>
    %518 = arith.mulf %517, %516 : vector<16x128xf32>
    %519 = math.tanh %518 : vector<16x128xf32>
    %cst_177 = arith.constant 1.000000e+00 : f32
    %520 = vector.broadcast %cst_177 : f32 to vector<16x128xf32>
    %521 = arith.addf %520, %519 : vector<16x128xf32>
    %cst_178 = arith.constant 5.000000e-01 : f32
    %522 = vector.broadcast %cst_178 : f32 to vector<16x128xf32>
    %523 = arith.mulf %522, %521 : vector<16x128xf32>
    %524 = arith.mulf %511, %523 : vector<16x128xf32>
    %525 = arith.mulf %524, %510 : vector<16x128xf32>
    %c1_179 = arith.constant 1 : index
    %c0_180 = arith.constant 0 : index
    %c0_181 = arith.constant 0 : index
    %526 = vector.load %arg13[%c1_179, %c0_180, %c0_181] : memref<2x128x32xf32, #tpu.memory_space<vmem>>, vector<1x128x32xf32>
    %527 = vector.shape_cast %526 : vector<1x128x32xf32> to vector<128x32xf32>
    %cst_182 = arith.constant dense<0.000000e+00> : vector<16x32xf32>
    %528 = tpu.matmul %525, %527, %cst_182 {dimension_numbers = #tpu.dot_dimension_numbers<[1], [0], [0], [1], [0, 0, 1, 1], [], []>} : vector<16x128xf32>, vector<128x32xf32>, vector<16x32xf32> -> vector<16x32xf32>
    %c13 = arith.constant 13 : index
    %c0_183 = arith.constant 0 : index
    %529 = vector.load %arg14[%c13, %c0_183] : memref<16x32xf32, #tpu.memory_space<vmem>>, vector<1x32xf32>
    %530 = vector.broadcast %529 : vector<1x32xf32> to vector<16x32xf32>
    %531 = arith.addf %528, %530 : vector<16x32xf32>
    %c10 = arith.constant 10 : index
    %c0_184 = arith.constant 0 : index
    %532 = vector.load %arg14[%c10, %c0_184] : memref<16x32xf32, #tpu.memory_space<vmem>>, vector<1x32xf32>
    %533 = arith.negf %457 : vector<16x32xf32>
    %534 = math.exp %533 : vector<16x32xf32>
    %cst_185 = arith.constant 1.000000e+00 : f32
    %535 = vector.broadcast %cst_185 : f32 to vector<16x32xf32>
    %536 = arith.addf %535, %534 : vector<16x32xf32>
    %537 = arith.divf %535, %536 : vector<16x32xf32>
    %538 = arith.mulf %531, %537 : vector<16x32xf32>
    %cst_186 = arith.constant 1.000000e+00 : f32
    %539 = vector.broadcast %cst_186 : f32 to vector<1x32xf32>
    %540 = arith.addf %532, %539 : vector<1x32xf32>
    %541 = vector.broadcast %540 : vector<1x32xf32> to vector<16x32xf32>
    %542 = arith.mulf %531, %541 : vector<16x32xf32>
    %543 = vector.shape_cast %89 : vector<16x1xi1> to vector<16x1xi1>
    %544 = vector.broadcast %543 : vector<16x1xi1> to vector<16x32xi1>
    %545 = arith.select %544, %538, %542 : vector<16x32xi1>, vector<16x32xf32>
    %546 = arith.addf %454, %545 : vector<16x32xf32>
    %c14 = arith.constant 14 : index
    %c0_187 = arith.constant 0 : index
    %547 = vector.load %arg14[%c14, %c0_187] : memref<16x32xf32, #tpu.memory_space<vmem>>, vector<1x32xf32>
    %548 = arith.mulf %546, %546 : vector<16x32xf32>
    %cst_188 = arith.constant dense<0.000000e+00> : vector<16xf32>
    %549 = vector.multi_reduction <add>, %548, %cst_188 [1] : vector<16x32xf32> to vector<16xf32>
    %550 = vector.shape_cast %549 : vector<16xf32> to vector<16x1xf32>
    %cst_189 = arith.constant 1.000000e-24 : f32
    %551 = vector.broadcast %cst_189 : f32 to vector<16x1xf32>
    %552 = arith.maximumf %550, %551 : vector<16x1xf32>
    %553 = math.rsqrt %552 : vector<16x1xf32>
    %554 = vector.broadcast %553 : vector<16x1xf32> to vector<16x32xf32>
    %555 = arith.mulf %546, %554 : vector<16x32xf32>
    %cst_190 = arith.constant 5.65685415 : f32
    %556 = vector.broadcast %cst_190 : f32 to vector<16x32xf32>
    %557 = arith.mulf %555, %556 : vector<16x32xf32>
    %cst_191 = arith.constant 1.000000e+00 : f32
    %558 = vector.broadcast %cst_191 : f32 to vector<1x32xf32>
    %559 = arith.addf %547, %558 : vector<1x32xf32>
    %560 = vector.broadcast %559 : vector<1x32xf32> to vector<16x32xf32>
    %561 = arith.mulf %557, %560 : vector<16x32xf32>
    %c0_192 = arith.constant 0 : index
    %c0_193 = arith.constant 0 : index
    %562 = vector.load %arg15[%c0_192, %c0_193] : memref<16x32xf32, #tpu.memory_space<vmem>>, vector<16x32xf32>
    tpu.vector_store %arg15[%c0_192, %c0_193], %561 {strides = array<i32>} : memref<16x32xf32, #tpu.memory_space<vmem>>, vector<16x32xf32>,
    return
  }
}

</mosaic_0001>

<llo_original>
// kernel: tpu_custom_call.1
$region0: #{tpu_custom_call.1}
  #allocation0 [shape = 'u32[]', space=smem, size = 0x4, offset = 0x4, fixed_abs, tag = 'smem constant byte address 0x4 - core index']
  #allocation1 [shape = 'u32[72,128]{1,0:T(1,128)}', space=vmem, size = 0x9000, scoped, tag = 'internal scratch']
  %s0 = inlined_call_operand.vmem [shape: s32[6], index: 0, kind: input, shape index: {}]
  %s1 = inlined_call_operand.vmem [shape: f32[16,1], index: 1, kind: input, shape index: {}]
  %s2 = inlined_call_operand.vmem [shape: f32[16,32], index: 2, kind: input, shape index: {}]
  %s3 = inlined_call_operand.vmem [shape: f32[1,32], index: 3, kind: input, shape index: {}]
  %s4 = inlined_call_operand.vmem [shape: f32[1,128], index: 4, kind: input, shape index: {}]
  %s5 = inlined_call_operand.vmem [shape: f32[32,128], index: 5, kind: input, shape index: {}]
  %s6 = inlined_call_operand.vmem [shape: f32[1,128], index: 6, kind: input, shape index: {}]
  %s7 = inlined_call_operand.hbm [shape: f32[128,384], index: 7, kind: input, shape index: {}]
  %s8 = inlined_call_operand.vmem [shape: f32[1,384], index: 8, kind: input, shape index: {}]
  %s9 = inlined_call_operand.vmem [shape: f32[2,32,96], index: 9, kind: input, shape index: {}]
  %s10 = inlined_call_operand.vmem [shape: f32[2,32,32], index: 10, kind: input, shape index: {}]
  %s11 = inlined_call_operand.vmem [shape: f32[2,32,256], index: 11, kind: input, shape index: {}]
  %s12 = inlined_call_operand.vmem [shape: f32[2,1,256], index: 12, kind: input, shape index: {}]
  %s13 = inlined_call_operand.vmem [shape: f32[2,128,32], index: 13, kind: input, shape index: {}]
  %s14 = inlined_call_operand.vmem [shape: f32[16,32], index: 14, kind: input, shape index: {}]
  %s15 = inlined_call_operand.hbm [shape: f32[16,32], index: 15, kind: output, shape index: {}]
  %s16 = sld [smem:[#allocation0]]
  $region78: #{tpu_custom_call.1} parent=0
    _
  %s18 = ssub.s32 1, %s16
  %s19 = scalar_select 0, %s18, %s16
  $region1: #{tpu_custom_call.1} parent=0
    #allocation2 [shape = 'u8[512]{0}', space=smem, size = 0x200, scoped, tag = 'input window, operand 0, single buffered']
    #allocation3 [shape = 's32[1]{0}', space=sflag, size = 0x4, scoped, tag = 'scoped memory for tpu_custom_call.1']
    #allocation4 [shape = 's32[1]{0}', space=sflag, size = 0x4, scoped, tag = 'scoped memory for tpu_custom_call.1']
    #allocation5 [shape = 's32[1]{0}', space=sflag, size = 0x4, scoped, tag = 'scoped memory for tpu_custom_call.1']
    #allocation6 [shape = 'u8[196608]{0}', space=vmem, size = 0x30000, scoped, tag = 'input window, operand 7, single buffered']
    #allocation7 [shape = 'u8[8192]{0}', space=vmem, size = 0x2000, scoped, tag = 'output window, operand 0, single buffered']
    %20 = vsyncpa [#allocation5], 0
    %21 = vsyncpa [#allocation3], 0
    %22 = vsyncpa [#allocation4], 0
    // Predicated region
    $region2: #{tpu_custom_call.1} parent=1 // pred_check
      _
    $region3: #{tpu_custom_call.1} parent=1 // pred_check_branch
      %24 = sbr.rel (0) target = $region5
    $region4: #{tpu_custom_call.1} parent=1 // pred_region
      %26 = vsyncadd [#allocation5], 0
      %s28 = sshll.u32 %s0, 4
      %s29 = int_to_ptr.vmem [resolvable:$true] %s28
      %31 = dma.vmem_to_smem %s29, 16, [#allocation2], [#allocation5]
    $region5: #{tpu_custom_call.1} parent=1 // pred_fallthru
      _
    // Predicated region
    $region6: #{tpu_custom_call.1} parent=1 // pred_check
      _
    $region7: #{tpu_custom_call.1} parent=1 // pred_check_branch
      %33 = sbr.rel (0) target = $region9
    $region8: #{tpu_custom_call.1} parent=1 // pred_region
      _
    $region9: #{tpu_custom_call.1} parent=1 // pred_fallthru
      _
    // Predicated region
    $region10: #{tpu_custom_call.1} parent=1 // pred_check
      _
    $region11: #{tpu_custom_call.1} parent=1 // pred_check_branch
      %35 = sbr.rel (0) target = $region13
    $region12: #{tpu_custom_call.1} parent=1 // pred_region
      _
    $region13: #{tpu_custom_call.1} parent=1 // pred_fallthru
      _
    // Predicated region
    $region14: #{tpu_custom_call.1} parent=1 // pred_check
      _
    $region15: #{tpu_custom_call.1} parent=1 // pred_check_branch
      %37 = sbr.rel (0) target = $region17
    $region16: #{tpu_custom_call.1} parent=1 // pred_region
      _
    $region17: #{tpu_custom_call.1} parent=1 // pred_fallthru
      _
    // Predicated region
    $region18: #{tpu_custom_call.1} parent=1 // pred_check
      _
    $region19: #{tpu_custom_call.1} parent=1 // pred_check_branch
      %39 = sbr.rel (0) target = $region21
    $region20: #{tpu_custom_call.1} parent=1 // pred_region
      _
    $region21: #{tpu_custom_call.1} parent=1 // pred_fallthru
      _
    // Predicated region
    $region22: #{tpu_custom_call.1} parent=1 // pred_check
      _
    $region23: #{tpu_custom_call.1} parent=1 // pred_check_branch
      %41 = sbr.rel (0) target = $region25
    $region24: #{tpu_custom_call.1} parent=1 // pred_region
      _
    $region25: #{tpu_custom_call.1} parent=1 // pred_fallthru
      _
    // Predicated region
    $region26: #{tpu_custom_call.1} parent=1 // pred_check
      _
    $region27: #{tpu_custom_call.1} parent=1 // pred_check_branch
      %43 = sbr.rel (0) target = $region29
    $region28: #{tpu_custom_call.1} parent=1 // pred_region
      _
    $region29: #{tpu_custom_call.1} parent=1 // pred_fallthru
      _
    // Predicated region
    $region30: #{tpu_custom_call.1} parent=1 // pred_check
      _
    $region31: #{tpu_custom_call.1} parent=1 // pred_check_branch
      %45 = sbr.rel (0) target = $region33
    $region32: #{tpu_custom_call.1} parent=1 // pred_region
      %47 = vsyncadd [#allocation3], 0
      %s48 = sshll.u32 %s7, 4
      %s49 = int_to_ptr.hbm [resolvable:$true] %s48
      %s50 = sshll.u32 [#allocation6], 4
      %s51 = int_to_ptr.vmem [resolvable:$true] %s50
      %56 = dma.hbm_to_vmem [thread:$0]  %s49, 6144, %s51, [#allocation3], 384, 384, 24
    $region33: #{tpu_custom_call.1} parent=1 // pred_fallthru
      _
    // Predicated region
    $region34: #{tpu_custom_call.1} parent=1 // pred_check
      _
    $region35: #{tpu_custom_call.1} parent=1 // pred_check_branch
      %58 = sbr.rel (0) target = $region37
    $region36: #{tpu_custom_call.1} parent=1 // pred_region
      _
    $region37: #{tpu_custom_call.1} parent=1 // pred_fallthru
      _
    // Predicated region
    $region38: #{tpu_custom_call.1} parent=1 // pred_check
      _
    $region39: #{tpu_custom_call.1} parent=1 // pred_check_branch
      %60 = sbr.rel (0) target = $region41
    $region40: #{tpu_custom_call.1} parent=1 // pred_region
      _
    $region41: #{tpu_custom_call.1} parent=1 // pred_fallthru
      _
    // Predicated region
    $region42: #{tpu_custom_call.1} parent=1 // pred_check
      _
    $region43: #{tpu_custom_call.1} parent=1 // pred_check_branch
      %62 = sbr.rel (0) target = $region45
    $region44: #{tpu_custom_call.1} parent=1 // pred_region
      _
    $region45: #{tpu_custom_call.1} parent=1 // pred_fallthru
      _
    // Predicated region
    $region46: #{tpu_custom_call.1} parent=1 // pred_check
      _
    $region47: #{tpu_custom_call.1} parent=1 // pred_check_branch
      %64 = sbr.rel (0) target = $region49
    $region48: #{tpu_custom_call.1} parent=1 // pred_region
      _
    $region49: #{tpu_custom_call.1} parent=1 // pred_fallthru
      _
    // Predicated region
    $region50: #{tpu_custom_call.1} parent=1 // pred_check
      _
    $region51: #{tpu_custom_call.1} parent=1 // pred_check_branch
      %66 = sbr.rel (0) target = $region53
    $region52: #{tpu_custom_call.1} parent=1 // pred_region
      _
    $region53: #{tpu_custom_call.1} parent=1 // pred_fallthru
      _
    // Predicated region
    $region54: #{tpu_custom_call.1} parent=1 // pred_check
      _
    $region55: #{tpu_custom_call.1} parent=1 // pred_check_branch
      %68 = sbr.rel (0) target = $region57
    $region56: #{tpu_custom_call.1} parent=1 // pred_region
      _
    $region57: #{tpu_custom_call.1} parent=1 // pred_fallthru
      _
    // Predicated region
    $region58: #{tpu_custom_call.1} parent=1 // pred_check
      _
    $region59: #{tpu_custom_call.1} parent=1 // pred_check_branch
      %70 = sbr.rel (0) target = $region61
    $region60: #{tpu_custom_call.1} parent=1 // pred_region
      _
    $region61: #{tpu_custom_call.1} parent=1 // pred_fallthru
      _
    // Predicated region
    $region62: #{tpu_custom_call.1} parent=1 // pred_check
      _
    $region63: #{tpu_custom_call.1} parent=1 // pred_check_branch
      %72 = sbr.rel (0) target = $region65
    $region64: #{tpu_custom_call.1} parent=1 // pred_region
      %74 = dma.done [#allocation5], 16
    $region65: #{tpu_custom_call.1} parent=1 // pred_fallthru
      _
    // Predicated region
    $region66: #{tpu_custom_call.1} parent=1 // pred_check
      _
    $region67: #{tpu_custom_call.1} parent=1 // pred_check_branch
      %76 = sbr.rel (0) target = $region69
    $region68: #{tpu_custom_call.1} parent=1 // pred_region
      %78 = dma.done [#allocation3], 6144
    $region69: #{tpu_custom_call.1} parent=1 // pred_fallthru
      _
    %79 = sfence
    %v80 = vlaneseq
    %v81 = vshrl.u32 %v80, 7
    %v82 = vadd.s32 %v81, 8
    %v83 = vlaneseq
    %v84 = vand.u32 %v83, 127
    %vm85 = vcmp.ge.s32.totalorder %v81, 0
    %vm86 = vcmp.ge.s32.totalorder %v82, 0
    %vm87 = vcmp.lt.s32.totalorder %v81, 8
    %vm88 = vcmp.lt.s32.totalorder %v82, 8
    %vm89 = vmand %vm85, %vm87
    %vm90 = vmand %vm86, %vm88
    %vm91 = vcmp.ge.s32.totalorder %v84, 0
    %vm92 = vmand %vm89, %vm91
    %vm93 = vmand %vm90, %vm91
    %vm94 = vcmp.lt.s32.totalorder %v84, 8
    %vm95 = vmand %vm92, %vm94
    %vm96 = vmand %vm93, %vm94
    %vm97 = vcmp.ge.s32.totalorder %v81, %v84
    %vm98 = vcmp.ge.s32.totalorder %v82, %v84
    %vm99 = vmand %vm95, %vm97
    %vm100 = vmand %vm96, %vm98
    %s101 = sld [smem:[#allocation2]]
    %s102 = sld [smem:[#allocation2 + $0x1]]
    %s103 = sld [smem:[#allocation2 + $0x2]]
    %v104 = vstv %s102
    %vm105 = vcmp.ge.s32.totalorder %v81, %v104
    %vm106 = vcmp.ge.s32.totalorder %v82, %v104
    %vm107 = vmand %vm95, %vm105
    %vm108 = vmand %vm96, %vm106
    %s109 = sadd.s32 %s102, %s103
    %v110 = vstv %s109
    %vm111 = vcmp.lt.s32.totalorder %v84, %v110
    %vm112 = vmand %vm107, %vm111
    %vm113 = vmand %vm108, %vm111
    %vm114 = vmor %vm99, %vm112
    %vm115 = vmor %vm100, %vm113
    %vm116 = vmand %vm89, %vm105
    %vm117 = vmand %vm90, %vm106
    %vm118 = vcmp.lt.s32.totalorder %v81, %v110
    %vm119 = vcmp.lt.s32.totalorder %v82, %v110
    %vm120 = vmand %vm116, %vm118
    %vm121 = vmand %vm117, %vm119
    %p122 = scmp.eq.s32.totalorder %s101, 0
    %s123 = scalar_select %p122, 1, 0
    %v124 = vstv %s123
    %vm125 = vcmp.eq.s32.totalorder %v124, 1
    %vm126 = vmand %vm120, %vm125
    %vm127 = vmand %vm121, %vm125
    %vm128 = vcmp.ge.s32.totalorder %v81, 8
    %vm129 = vcmp.ge.s32.totalorder %v82, 8
    %vm130 = vcmp.lt.s32.totalorder %v81, 16
    %vm131 = vcmp.lt.s32.totalorder %v82, 16
    %vm132 = vmand %vm128, %vm130
    %vm133 = vmand %vm129, %vm131
    %vm134 = vcmp.ge.s32.totalorder %v84, 8
    %vm135 = vmand %vm132, %vm134
    %vm136 = vmand %vm133, %vm134
    %vm137 = vcmp.lt.s32.totalorder %v84, 16
    %vm138 = vmand %vm135, %vm137
    %vm139 = vmand %vm136, %vm137
    %vm140 = vmand %vm138, %vm97
    %vm141 = vmand %vm139, %vm98
    %s142 = sld [smem:[#allocation2 + $0x3]]
    %s143 = sld [smem:[#allocation2 + $0x4]]
    %s144 = sld [smem:[#allocation2 + $0x5]]
    %s145 = sadd.s32 %s143, 8
    %v146 = vstv %s145
    %vm147 = vcmp.ge.s32.totalorder %v81, %v146
    %vm148 = vcmp.ge.s32.totalorder %v82, %v146
    %vm149 = vmand %vm138, %vm147
    %vm150 = vmand %vm139, %vm148
    %s151 = sadd.s32 %s145, %s144
    %v152 = vstv %s151
    %vm153 = vcmp.lt.s32.totalorder %v84, %v152
    %vm154 = vmand %vm149, %vm153
    %vm155 = vmand %vm150, %vm153
    %vm156 = vmor %vm140, %vm154
    %vm157 = vmor %vm141, %vm155
    %vm158 = vmand %vm132, %vm147
    %vm159 = vmand %vm133, %vm148
    %vm160 = vcmp.lt.s32.totalorder %v81, %v152
    %vm161 = vcmp.lt.s32.totalorder %v82, %v152
    %vm162 = vmand %vm158, %vm160
    %vm163 = vmand %vm159, %vm161
    %p164 = scmp.eq.s32.totalorder %s142, 0
    %s165 = scalar_select %p164, 1, 0
    %v166 = vstv %s165
    %vm167 = vcmp.eq.s32.totalorder %v166, 1
    %vm168 = vmand %vm162, %vm167
    %vm169 = vmand %vm163, %vm167
    %vm170 = vmor %vm126, %vm168
    %vm171 = vmor %vm127, %vm169
    %vm172 = vmor %vm114, %vm156
    %vm173 = vmor %vm115, %vm157
    %v174 = vsel %vm172, 0.0, -3.4028235e+38
    %v175 = vsel %vm173, 0.0, -3.4028235e+38
    %v176 = vld [vmem:[%s1] sm:$0xff]
    %v177 = vld [vmem:[%s1 + $0x8] sm:$0xff]
    %v178 = vld [vmem:[%s3] sm:$0x1]
    %180 = vset.pattern.permute.xlu0 0
    %181 = vperm.xlu0 %180, %v176
    %v182 = vpop.permute.xlu0 %181
    %185 = vset.pattern.permute.xlu0 0
    %186 = vperm.xlu0 %185, %v177
    %v187 = vpop.permute.xlu0 %186
    %v190 = vperm.slane %v178, 0
    %v192 = vmul.f32 %v182, %v190
    %v193 = vmul.f32 %v187, %v190
    %v194 = vmul.f32 %v192, 6.2831855
    %v195 = vmul.f32 %v193, 6.2831855
    %v196 = vand.u32 2147483647, %v194
    %vm197 = vcmp.le.f32.partialorder %v196, 0.7853982
    %vm198 = vcmp.lt.s32.totalorder %v194, 0
    %v199 = vand.u32 %v194, 2139095040
    %v200 = vshrl.u32 %v199, 23
    %v201 = vsub.s32 %v200, 127
    %v202 = vand.u32 2147483647, %v194
    %v203 = vand.u32 %v202, 8388607
    %v204 = vor.u32 %v203, 8388608
    %v205 = vsub.s32 0, %v204
    %v206 = vadd.s32 %v201, 1
    %vm207 = vcmp.gt.s32.totalorder %v206, 0
    %v208 = vsel %vm207, %v206, 0
    %v209 = vshrl.u32 %v208, 5
    %v210 = vand.u32 %v208, 31
    %v211 = vsub.s32 32, %v210
    %v212 = vshrl.u32 683565275, %v211
    %v213 = vshll.u32 683565275, %v210
    %v214 = vshrl.u32 2475754826, %v211
    %v215 = vor.u32 %v213, %v214
    %v216 = vshll.u32 2475754826, %v210
    %v217 = vshrl.u32 2131351028, %v211
    %v218 = vor.u32 %v216, %v217
    %v219 = vshll.u32 2131351028, %v210
    %v220 = vshrl.u32 2102212464, %v211
    %v221 = vor.u32 %v219, %v220
    %v222 = vshll.u32 2102212464, %v210
    %v223 = vshrl.u32 920167782, %v211
    %v224 = vor.u32 %v222, %v223
    %v225 = vshll.u32 920167782, %v210
    %v226 = vshrl.u32 1326507024, %v211
    %v227 = vor.u32 %v225, %v226
    %vm228 = vcmp.lt.s32.totalorder %v209, 1
    %vm229 = vcmp.lt.s32.totalorder %v209, 2
    %vm230 = vcmp.lt.s32.totalorder %v209, 3
    %vm231 = vcmp.lt.s32.totalorder %v209, 4
    %v232 = vsel %vm228, %v212, %v215
    %v233 = vsel %vm231, %v221, 2102212464
    %v234 = vsel %vm230, %v218, %v233
    %v235 = vsel %vm229, %v232, %v234
    %v236 = vsel %vm228, %v215, %v218
    %v237 = vsel %vm231, %v224, 920167782
    %v238 = vsel %vm230, %v221, %v237
    %v239 = vsel %vm229, %v236, %v238
    %v240 = vsel %vm228, %v218, %v221
    %v241 = vsel %vm231, %v227, 1326507024
    %v242 = vsel %vm230, %v224, %v241
    %v243 = vsel %vm229, %v240, %v242
    %v244 = vshll.u32 %v204, 8
    %v245 = vand.u32 %v244, 65535
    %v246 = vshrl.u32 %v244, 16
    %v247 = vand.u32 %v243, 65535
    %v248 = vshrl.u32 %v243, 16
    %v249 = vmul.u32 %v245, %v247
    %v250 = vmul.u32 %v245, %v248
    %v251 = vmul.u32 %v246, %v247
    %v252 = vmul.u32 %v246, %v248
    %v253 = vshll.u32 %v250, 16
    %v254 = vshrl.u32 %v250, 16
    %v255 = vshll.u32 %v251, 16
    %v256 = vshrl.u32 %v251, 16
    %vm257 = vc.u32 %v249, %v253
    %v258 = vsel %vm257, 1, 0
    %v259 = vadd.s32 %v249, %v253
    %v260 = vadd.s32 %v252, %v258
    %vm261 = vc.u32 %v259, %v255
    %v262 = vsel %vm261, 1, 0
    %v263 = vadd.s32 %v259, %v255
    %v264 = vadd.s32 %v260, %v262
    %v265 = vadd.s32 %v264, %v254
    %v266 = vadd.s32 %v265, %v256
    %v267 = vand.u32 %v244, 65535
    %v268 = vshrl.u32 %v244, 16
    %v269 = vand.u32 %v239, 65535
    %v270 = vshrl.u32 %v239, 16
    %v271 = vmul.u32 %v267, %v269
    %v272 = vmul.u32 %v267, %v270
    %v273 = vmul.u32 %v268, %v269
    %v274 = vmul.u32 %v268, %v270
    %v275 = vshll.u32 %v272, 16
    %v276 = vshrl.u32 %v272, 16
    %v277 = vshll.u32 %v273, 16
    %v278 = vshrl.u32 %v273, 16
    %vm279 = vc.u32 %v271, %v275
    %v280 = vsel %vm279, 1, 0
    %v281 = vadd.s32 %v271, %v275
    %v282 = vadd.s32 %v274, %v280
    %vm283 = vc.u32 %v281, %v277
    %v284 = vsel %vm283, 1, 0
    %v285 = vadd.s32 %v281, %v277
    %v286 = vadd.s32 %v282, %v284
    %v287 = vadd.s32 %v286, %v276
    %v288 = vadd.s32 %v287, %v278
    %v289 = vmul.u32 %v244, %v235
    %v290 = vadd.s32 %v266, %v285
    %vm291 = vc.u32 %v266, %v285
    %v292 = vadd.s32 %v288, 1
    %v293 = vsel %vm291, %v292, %v288
    %v294 = vadd.s32 %v289, %v293
    %v295 = vadd.s32 %v294, 536870912
    %v296 = vshrl.u32 %v295, 30
    %v297 = vshll.u32 %v296, 30
    %v298 = vsub.s32 %v294, %v297
    %vm299 = vcmp.lt.s32.totalorder %v298, 0
    %v300 = vsub.s32 0, %v298
    %v301 = vsel %vm299, %v300, %v298
    %v302 = vclz %v301
    %v303 = vsub.s32 %v302, 2
    %vm304 = vcmp.gt.s32.totalorder 0, %v303
    %v305 = vsel %vm304, 0, %v303
    %v306 = vsub.s32 32, %v305
    %v307 = vshll.u32 %v298, %v305
    %v308 = vshrl.u32 %v290, %v306
    %v309 = vor.u32 %v307, %v308
    %v310 = vsub.s32 4294967266, %v305
    %v311 = vadd.s32 %v310, 127
    %v312 = vshll.u32 %v311, 23
    %v313 = vor.u32 4788187, %v312
    %v314 = vand.u32 2147483647, %v313
    %v316 = vcvt.s32.f32 %v309
    %v317 = vmul.f32 %v316, %v314
    %v318 = vxor.u32 %v317, 2147483648
    %v319 = vsel %vm198, %v318, %v317
    %v320 = vsub.s32 4, %v296
    %v321 = vsel %vm198, %v320, %v296
    %v322 = vsel %vm197, %v194, %v319
    %v323 = vsel %vm197, 0, %v321
    %v324 = vmul.f32 %v322, %v322
    %v325 = vmul.f32 %v324, -0.001358992
    %v326 = vadd.f32 %v325, 0.041655596
    %v327 = vmul.f32 %v324, %v326
    %v328 = vadd.f32 %v327, -0.4999988
    %v329 = vmul.f32 %v324, %v328
    %v330 = vadd.f32 1.0, %v329
    %v331 = vmul.f32 %v322, %v322
    %v332 = vmul.f32 %v331, -0.00019511016
    %v333 = vadd.f32 %v332, 0.008332121
    %v334 = vmul.f32 %v331, %v333
    %v335 = vadd.f32 %v334, -0.16666654
    %v336 = vmul.f32 %v331, %v335
    %v337 = vadd.f32 %v336, 1.0
    %v338 = vmul.f32 %v337, %v322
    %vm339 = vweird.f32 %v194
    %v340 = vadd.s32 %v323, 3
    %v341 = vand.u32 %v340, 3
    %vm342 = vcmp.lt.s32.totalorder %v341, 2
    %vm343 = vcmp.eq.s32.totalorder %v341, 0
    %v344 = vxor.u32 %v338, 2147483648
    %v345 = vsel %vm343, %v330, %v344
    %vm346 = vcmp.eq.s32.totalorder %v341, 2
    %v347 = vxor.u32 %v330, 2147483648
    %v348 = vsel %vm346, %v347, %v338
    %v349 = vsel %vm342, %v345, %v348
    %v350 = vsel %vm339, nan, %v349
    %v351 = vand.u32 2147483647, %v195
    %vm352 = vcmp.le.f32.partialorder %v351, 0.7853982
    %vm353 = vcmp.lt.s32.totalorder %v195, 0
    %v354 = vand.u32 %v195, 2139095040
    %v355 = vshrl.u32 %v354, 23
    %v356 = vsub.s32 %v355, 127
    %v357 = vand.u32 2147483647, %v195
    %v358 = vand.u32 %v357, 8388607
    %v359 = vor.u32 %v358, 8388608
    %v360 = vsub.s32 0, %v359
    %v361 = vadd.s32 %v356, 1
    %vm362 = vcmp.gt.s32.totalorder %v361, 0
    %v363 = vsel %vm362, %v361, 0
    %v364 = vshrl.u32 %v363, 5
    %v365 = vand.u32 %v363, 31
    %v366 = vsub.s32 32, %v365
    %v367 = vshrl.u32 683565275, %v366
    %v368 = vshll.u32 683565275, %v365
    %v369 = vshrl.u32 2475754826, %v366
    %v370 = vor.u32 %v368, %v369
    %v371 = vshll.u32 2475754826, %v365
    %v372 = vshrl.u32 2131351028, %v366
    %v373 = vor.u32 %v371, %v372
    %v374 = vshll.u32 2131351028, %v365
    %v375 = vshrl.u32 2102212464, %v366
    %v376 = vor.u32 %v374, %v375
    %v377 = vshll.u32 2102212464, %v365
    %v378 = vshrl.u32 920167782, %v366
    %v379 = vor.u32 %v377, %v378
    %v380 = vshll.u32 920167782, %v365
    %v381 = vshrl.u32 1326507024, %v366
    %v382 = vor.u32 %v380, %v381
    %vm383 = vcmp.lt.s32.totalorder %v364, 1
    %vm384 = vcmp.lt.s32.totalorder %v364, 2
    %vm385 = vcmp.lt.s32.totalorder %v364, 3
    %vm386 = vcmp.lt.s32.totalorder %v364, 4
    %v387 = vsel %vm383, %v367, %v370
    %v388 = vsel %vm386, %v376, 2102212464
    %v389 = vsel %vm385, %v373, %v388
    %v390 = vsel %vm384, %v387, %v389
    %v391 = vsel %vm383, %v370, %v373
    %v392 = vsel %vm386, %v379, 920167782
    %v393 = vsel %vm385, %v376, %v392
    %v394 = vsel %vm384, %v391, %v393
    %v395 = vsel %vm383, %v373, %v376
    %v396 = vsel %vm386, %v382, 1326507024
    %v397 = vsel %vm385, %v379, %v396
    %v398 = vsel %vm384, %v395, %v397
    %v399 = vshll.u32 %v359, 8
    %v400 = vand.u32 %v399, 65535
    %v401 = vshrl.u32 %v399, 16
    %v402 = vand.u32 %v398, 65535
    %v403 = vshrl.u32 %v398, 16
    %v404 = vmul.u32 %v400, %v402
    %v405 = vmul.u32 %v400, %v403
    %v406 = vmul.u32 %v401, %v402
    %v407 = vmul.u32 %v401, %v403
    %v408 = vshll.u32 %v405, 16
    %v409 = vshrl.u32 %v405, 16
    %v410 = vshll.u32 %v406, 16
    %v411 = vshrl.u32 %v406, 16
    %vm412 = vc.u32 %v404, %v408
    %v413 = vsel %vm412, 1, 0
    %v414 = vadd.s32 %v404, %v408
    %v415 = vadd.s32 %v407, %v413
    %vm416 = vc.u32 %v414, %v410
    %v417 = vsel %vm416, 1, 0
    %v418 = vadd.s32 %v414, %v410
    %v419 = vadd.s32 %v415, %v417
    %v420 = vadd.s32 %v419, %v409
    %v421 = vadd.s32 %v420, %v411
    %v422 = vand.u32 %v399, 65535
    %v423 = vshrl.u32 %v399, 16
    %v424 = vand.u32 %v394, 65535
    %v425 = vshrl.u32 %v394, 16
    %v426 = vmul.u32 %v422, %v424
    %v427 = vmul.u32 %v422, %v425
    %v428 = vmul.u32 %v423, %v424
    %v429 = vmul.u32 %v423, %v425
    %v430 = vshll.u32 %v427, 16
    %v431 = vshrl.u32 %v427, 16
    %v432 = vshll.u32 %v428, 16
    %v433 = vshrl.u32 %v428, 16
    %vm434 = vc.u32 %v426, %v430
    %v435 = vsel %vm434, 1, 0
    %v436 = vadd.s32 %v426, %v430
    %v437 = vadd.s32 %v429, %v435
    %vm438 = vc.u32 %v436, %v432
    %v439 = vsel %vm438, 1, 0
    %v440 = vadd.s32 %v436, %v432
    %v441 = vadd.s32 %v437, %v439
    %v442 = vadd.s32 %v441, %v431
    %v443 = vadd.s32 %v442, %v433
    %v444 = vmul.u32 %v399, %v390
    %v445 = vadd.s32 %v421, %v440
    %vm446 = vc.u32 %v421, %v440
    %v447 = vadd.s32 %v443, 1
    %v448 = vsel %vm446, %v447, %v443
    %v449 = vadd.s32 %v444, %v448
    %v450 = vadd.s32 %v449, 536870912
    %v451 = vshrl.u32 %v450, 30
    %v452 = vshll.u32 %v451, 30
    %v453 = vsub.s32 %v449, %v452
    %vm454 = vcmp.lt.s32.totalorder %v453, 0
    %v455 = vsub.s32 0, %v453
    %v456 = vsel %vm454, %v455, %v453
    %v457 = vclz %v456
    %v458 = vsub.s32 %v457, 2
    %vm459 = vcmp.gt.s32.totalorder 0, %v458
    %v460 = vsel %vm459, 0, %v458
    %v461 = vsub.s32 32, %v460
    %v462 = vshll.u32 %v453, %v460
    %v463 = vshrl.u32 %v445, %v461
    %v464 = vor.u32 %v462, %v463
    %v465 = vsub.s32 4294967266, %v460
    %v466 = vadd.s32 %v465, 127
    %v467 = vshll.u32 %v466, 23
    %v468 = vor.u32 4788187, %v467
    %v469 = vand.u32 2147483647, %v468
    %v471 = vcvt.s32.f32 %v464
    %v472 = vmul.f32 %v471, %v469
    %v473 = vxor.u32 %v472, 2147483648
    %v474 = vsel %vm353, %v473, %v472
    %v475 = vsub.s32 4, %v451
    %v476 = vsel %vm353, %v475, %v451
    %v477 = vsel %vm352, %v195, %v474
    %v478 = vsel %vm352, 0, %v476
    %v479 = vmul.f32 %v477, %v477
    %v480 = vmul.f32 %v479, -0.001358992
    %v481 = vadd.f32 %v480, 0.041655596
    %v482 = vmul.f32 %v479, %v481
    %v483 = vadd.f32 %v482, -0.4999988
    %v484 = vmul.f32 %v479, %v483
    %v485 = vadd.f32 1.0, %v484
    %v486 = vmul.f32 %v477, %v477
    %v487 = vmul.f32 %v486, -0.00019511016
    %v488 = vadd.f32 %v487, 0.008332121
    %v489 = vmul.f32 %v486, %v488
    %v490 = vadd.f32 %v489, -0.16666654
    %v491 = vmul.f32 %v486, %v490
    %v492 = vadd.f32 %v491, 1.0
    %v493 = vmul.f32 %v492, %v477
    %vm494 = vweird.f32 %v195
    %v495 = vadd.s32 %v478, 3
    %v496 = vand.u32 %v495, 3
    %vm497 = vcmp.lt.s32.totalorder %v496, 2
    %vm498 = vcmp.eq.s32.totalorder %v496, 0
    %v499 = vxor.u32 %v493, 2147483648
    %v500 = vsel %vm498, %v485, %v499
    %vm501 = vcmp.eq.s32.totalorder %v496, 2
    %v502 = vxor.u32 %v485, 2147483648
    %v503 = vsel %vm501, %v502, %v493
    %v504 = vsel %vm497, %v500, %v503
    %v505 = vsel %vm494, nan, %v504
    %v506 = vand.u32 2147483647, %v194
    %vm507 = vcmp.le.f32.partialorder %v506, 0.7853982
    %vm508 = vcmp.lt.s32.totalorder %v194, 0
    %v509 = vand.u32 %v194, 2139095040
    %v510 = vshrl.u32 %v509, 23
    %v511 = vsub.s32 %v510, 127
    %v512 = vand.u32 2147483647, %v194
    %v513 = vand.u32 %v512, 8388607
    %v514 = vor.u32 %v513, 8388608
    %v515 = vsub.s32 0, %v514
    %v516 = vadd.s32 %v511, 1
    %vm517 = vcmp.gt.s32.totalorder %v516, 0
    %v518 = vsel %vm517, %v516, 0
    %v519 = vshrl.u32 %v518, 5
    %v520 = vand.u32 %v518, 31
    %v521 = vsub.s32 32, %v520
    %v522 = vshrl.u32 683565275, %v521
    %v523 = vshll.u32 683565275, %v520
    %v524 = vshrl.u32 2475754826, %v521
    %v525 = vor.u32 %v523, %v524
    %v526 = vshll.u32 2475754826, %v520
    %v527 = vshrl.u32 2131351028, %v521
    %v528 = vor.u32 %v526, %v527
    %v529 = vshll.u32 2131351028, %v520
    %v530 = vshrl.u32 2102212464, %v521
    %v531 = vor.u32 %v529, %v530
    %v532 = vshll.u32 2102212464, %v520
    %v533 = vshrl.u32 920167782, %v521
    %v534 = vor.u32 %v532, %v533
    %v535 = vshll.u32 920167782, %v520
    %v536 = vshrl.u32 1326507024, %v521
    %v537 = vor.u32 %v535, %v536
    %vm538 = vcmp.lt.s32.totalorder %v519, 1
    %vm539 = vcmp.lt.s32.totalorder %v519, 2
    %vm540 = vcmp.lt.s32.totalorder %v519, 3
    %vm541 = vcmp.lt.s32.totalorder %v519, 4
    %v542 = vsel %vm538, %v522, %v525
    %v543 = vsel %vm541, %v531, 2102212464
    %v544 = vsel %vm540, %v528, %v543
    %v545 = vsel %vm539, %v542, %v544
    %v546 = vsel %vm538, %v525, %v528
    %v547 = vsel %vm541, %v534, 920167782
    %v548 = vsel %vm540, %v531, %v547
    %v549 = vsel %vm539, %v546, %v548
    %v550 = vsel %vm538, %v528, %v531
    %v551 = vsel %vm541, %v537, 1326507024
    %v552 = vsel %vm540, %v534, %v551
    %v553 = vsel %vm539, %v550, %v552
    %v554 = vshll.u32 %v514, 8
    %v555 = vand.u32 %v554, 65535
    %v556 = vshrl.u32 %v554, 16
    %v557 = vand.u32 %v553, 65535
    %v558 = vshrl.u32 %v553, 16
    %v559 = vmul.u32 %v555, %v557
    %v560 = vmul.u32 %v555, %v558
    %v561 = vmul.u32 %v556, %v557
    %v562 = vmul.u32 %v556, %v558
    %v563 = vshll.u32 %v560, 16
    %v564 = vshrl.u32 %v560, 16
    %v565 = vshll.u32 %v561, 16
    %v566 = vshrl.u32 %v561, 16
    %vm567 = vc.u32 %v559, %v563
    %v568 = vsel %vm567, 1, 0
    %v569 = vadd.s32 %v559, %v563
    %v570 = vadd.s32 %v562, %v568
    %vm571 = vc.u32 %v569, %v565
    %v572 = vsel %vm571, 1, 0
    %v573 = vadd.s32 %v569, %v565
    %v574 = vadd.s32 %v570, %v572
    %v575 = vadd.s32 %v574, %v564
    %v576 = vadd.s32 %v575, %v566
    %v577 = vand.u32 %v554, 65535
    %v578 = vshrl.u32 %v554, 16
    %v579 = vand.u32 %v549, 65535
    %v580 = vshrl.u32 %v549, 16
    %v581 = vmul.u32 %v577, %v579
    %v582 = vmul.u32 %v577, %v580
    %v583 = vmul.u32 %v578, %v579
    %v584 = vmul.u32 %v578, %v580
    %v585 = vshll.u32 %v582, 16
    %v586 = vshrl.u32 %v582, 16
    %v587 = vshll.u32 %v583, 16
    %v588 = vshrl.u32 %v583, 16
    %vm589 = vc.u32 %v581, %v585
    %v590 = vsel %vm589, 1, 0
    %v591 = vadd.s32 %v581, %v585
    %v592 = vadd.s32 %v584, %v590
    %vm593 = vc.u32 %v591, %v587
    %v594 = vsel %vm593, 1, 0
    %v595 = vadd.s32 %v591, %v587
    %v596 = vadd.s32 %v592, %v594
    %v597 = vadd.s32 %v596, %v586
    %v598 = vadd.s32 %v597, %v588
    %v599 = vmul.u32 %v554, %v545
    %v600 = vadd.s32 %v576, %v595
    %vm601 = vc.u32 %v576, %v595
    %v602 = vadd.s32 %v598, 1
    %v603 = vsel %vm601, %v602, %v598
    %v604 = vadd.s32 %v599, %v603
    %v605 = vadd.s32 %v604, 536870912
    %v606 = vshrl.u32 %v605, 30
    %v607 = vshll.u32 %v606, 30
    %v608 = vsub.s32 %v604, %v607
    %vm609 = vcmp.lt.s32.totalorder %v608, 0
    %v610 = vsub.s32 0, %v608
    %v611 = vsel %vm609, %v610, %v608
    %v612 = vclz %v611
    %v613 = vsub.s32 %v612, 2
    %vm614 = vcmp.gt.s32.totalorder 0, %v613
    %v615 = vsel %vm614, 0, %v613
    %v616 = vsub.s32 32, %v615
    %v617 = vshll.u32 %v608, %v615
    %v618 = vshrl.u32 %v600, %v616
    %v619 = vor.u32 %v617, %v618
    %v620 = vsub.s32 4294967266, %v615
    %v621 = vadd.s32 %v620, 127
    %v622 = vshll.u32 %v621, 23
    %v623 = vor.u32 4788187, %v622
    %v624 = vand.u32 2147483647, %v623
    %v626 = vcvt.s32.f32 %v619
    %v627 = vmul.f32 %v626, %v624
    %v628 = vxor.u32 %v627, 2147483648
    %v629 = vsel %vm508, %v628, %v627
    %v630 = vsub.s32 4, %v606
    %v631 = vsel %vm508, %v630, %v606
    %v632 = vsel %vm507, %v194, %v629
    %v633 = vsel %vm507, 0, %v631
    %v634 = vmul.f32 %v632, %v632
    %v635 = vmul.f32 %v634, -0.001358992
    %v636 = vadd.f32 %v635, 0.041655596
    %v637 = vmul.f32 %v634, %v636
    %v638 = vadd.f32 %v637, -0.4999988
    %v639 = vmul.f32 %v634, %v638
    %v640 = vadd.f32 1.0, %v639
    %v641 = vmul.f32 %v632, %v632
    %v642 = vmul.f32 %v641, -0.00019511016
    %v643 = vadd.f32 %v642, 0.008332121
    %v644 = vmul.f32 %v641, %v643
    %v645 = vadd.f32 %v644, -0.16666654
    %v646 = vmul.f32 %v641, %v645
    %v647 = vadd.f32 %v646, 1.0
    %v648 = vmul.f32 %v647, %v632
    %vm649 = vweird.f32 %v194
    %v650 = vand.u32 %v633, 3
    %vm651 = vcmp.lt.s32.totalorder %v650, 2
    %vm652 = vcmp.eq.s32.totalorder %v650, 0
    %v653 = vxor.u32 %v648, 2147483648
    %v654 = vsel %vm652, %v640, %v653
    %vm655 = vcmp.eq.s32.totalorder %v650, 2
    %v656 = vxor.u32 %v640, 2147483648
    %v657 = vsel %vm655, %v656, %v648
    %v658 = vsel %vm651, %v654, %v657
    %v659 = vsel %vm649, nan, %v658
    %v660 = vand.u32 2147483647, %v195
    %vm661 = vcmp.le.f32.partialorder %v660, 0.7853982
    %vm662 = vcmp.lt.s32.totalorder %v195, 0
    %v663 = vand.u32 %v195, 2139095040
    %v664 = vshrl.u32 %v663, 23
    %v665 = vsub.s32 %v664, 127
    %v666 = vand.u32 2147483647, %v195
    %v667 = vand.u32 %v666, 8388607
    %v668 = vor.u32 %v667, 8388608
    %v669 = vsub.s32 0, %v668
    %v670 = vadd.s32 %v665, 1
    %vm671 = vcmp.gt.s32.totalorder %v670, 0
    %v672 = vsel %vm671, %v670, 0
    %v673 = vshrl.u32 %v672, 5
    %v674 = vand.u32 %v672, 31
    %v675 = vsub.s32 32, %v674
    %v676 = vshrl.u32 683565275, %v675
    %v677 = vshll.u32 683565275, %v674
    %v678 = vshrl.u32 2475754826, %v675
    %v679 = vor.u32 %v677, %v678
    %v680 = vshll.u32 2475754826, %v674
    %v681 = vshrl.u32 2131351028, %v675
    %v682 = vor.u32 %v680, %v681
    %v683 = vshll.u32 2131351028, %v674
    %v684 = vshrl.u32 2102212464, %v675
    %v685 = vor.u32 %v683, %v684
    %v686 = vshll.u32 2102212464, %v674
    %v687 = vshrl.u32 920167782, %v675
    %v688 = vor.u32 %v686, %v687
    %v689 = vshll.u32 920167782, %v674
    %v690 = vshrl.u32 1326507024, %v675
    %v691 = vor.u32 %v689, %v690
    %vm692 = vcmp.lt.s32.totalorder %v673, 1
    %vm693 = vcmp.lt.s32.totalorder %v673, 2
    %vm694 = vcmp.lt.s32.totalorder %v673, 3
    %vm695 = vcmp.lt.s32.totalorder %v673, 4
    %v696 = vsel %vm692, %v676, %v679
    %v697 = vsel %vm695, %v685, 2102212464
    %v698 = vsel %vm694, %v682, %v697
    %v699 = vsel %vm693, %v696, %v698
    %v700 = vsel %vm692, %v679, %v682
    %v701 = vsel %vm695, %v688, 920167782
    %v702 = vsel %vm694, %v685, %v701
    %v703 = vsel %vm693, %v700, %v702
    %v704 = vsel %vm692, %v682, %v685
    %v705 = vsel %vm695, %v691, 1326507024
    %v706 = vsel %vm694, %v688, %v705
    %v707 = vsel %vm693, %v704, %v706
    %v708 = vshll.u32 %v668, 8
    %v709 = vand.u32 %v708, 65535
    %v710 = vshrl.u32 %v708, 16
    %v711 = vand.u32 %v707, 65535
    %v712 = vshrl.u32 %v707, 16
    %v713 = vmul.u32 %v709, %v711
    %v714 = vmul.u32 %v709, %v712
    %v715 = vmul.u32 %v710, %v711
    %v716 = vmul.u32 %v710, %v712
    %v717 = vshll.u32 %v714, 16
    %v718 = vshrl.u32 %v714, 16
    %v719 = vshll.u32 %v715, 16
    %v720 = vshrl.u32 %v715, 16
    %vm721 = vc.u32 %v713, %v717
    %v722 = vsel %vm721, 1, 0
    %v723 = vadd.s32 %v713, %v717
    %v724 = vadd.s32 %v716, %v722
    %vm725 = vc.u32 %v723, %v719
    %v726 = vsel %vm725, 1, 0
    %v727 = vadd.s32 %v723, %v719
    %v728 = vadd.s32 %v724, %v726
    %v729 = vadd.s32 %v728, %v718
    %v730 = vadd.s32 %v729, %v720
    %v731 = vand.u32 %v708, 65535
    %v732 = vshrl.u32 %v708, 16
    %v733 = vand.u32 %v703, 65535
    %v734 = vshrl.u32 %v703, 16
    %v735 = vmul.u32 %v731, %v733
    %v736 = vmul.u32 %v731, %v734
    %v737 = vmul.u32 %v732, %v733
    %v738 = vmul.u32 %v732, %v734
    %v739 = vshll.u32 %v736, 16
    %v740 = vshrl.u32 %v736, 16
    %v741 = vshll.u32 %v737, 16
    %v742 = vshrl.u32 %v737, 16
    %vm743 = vc.u32 %v735, %v739
    %v744 = vsel %vm743, 1, 0
    %v745 = vadd.s32 %v735, %v739
    %v746 = vadd.s32 %v738, %v744
    %vm747 = vc.u32 %v745, %v741
    %v748 = vsel %vm747, 1, 0
    %v749 = vadd.s32 %v745, %v741
    %v750 = vadd.s32 %v746, %v748
    %v751 = vadd.s32 %v750, %v740
    %v752 = vadd.s32 %v751, %v742
    %v753 = vmul.u32 %v708, %v699
    %v754 = vadd.s32 %v730, %v749
    %vm755 = vc.u32 %v730, %v749
    %v756 = vadd.s32 %v752, 1
    %v757 = vsel %vm755, %v756, %v752
    %v758 = vadd.s32 %v753, %v757
    %v759 = vadd.s32 %v758, 536870912
    %v760 = vshrl.u32 %v759, 30
    %v761 = vshll.u32 %v760, 30
    %v762 = vsub.s32 %v758, %v761
    %vm763 = vcmp.lt.s32.totalorder %v762, 0
    %v764 = vsub.s32 0, %v762
    %v765 = vsel %vm763, %v764, %v762
    %v766 = vclz %v765
    %v767 = vsub.s32 %v766, 2
    %vm768 = vcmp.gt.s32.totalorder 0, %v767
    %v769 = vsel %vm768, 0, %v767
    %v770 = vsub.s32 32, %v769
    %v771 = vshll.u32 %v762, %v769
    %v772 = vshrl.u32 %v754, %v770
    %v773 = vor.u32 %v771, %v772
    %v774 = vsub.s32 4294967266, %v769
    %v775 = vadd.s32 %v774, 127
    %v776 = vshll.u32 %v775, 23
    %v777 = vor.u32 4788187, %v776
    %v778 = vand.u32 2147483647, %v777
    %v780 = vcvt.s32.f32 %v773
    %v781 = vmul.f32 %v780, %v778
    %v782 = vxor.u32 %v781, 2147483648
    %v783 = vsel %vm662, %v782, %v781
    %v784 = vsub.s32 4, %v760
    %v785 = vsel %vm662, %v784, %v760
    %v786 = vsel %vm661, %v195, %v783
    %v787 = vsel %vm661, 0, %v785
    %v788 = vmul.f32 %v786, %v786
    %v789 = vmul.f32 %v788, -0.001358992
    %v790 = vadd.f32 %v789, 0.041655596
    %v791 = vmul.f32 %v788, %v790
    %v792 = vadd.f32 %v791, -0.4999988
    %v793 = vmul.f32 %v788, %v792
    %v794 = vadd.f32 1.0, %v793
    %v795 = vmul.f32 %v786, %v786
    %v796 = vmul.f32 %v795, -0.00019511016
    %v797 = vadd.f32 %v796, 0.008332121
    %v798 = vmul.f32 %v795, %v797
    %v799 = vadd.f32 %v798, -0.16666654
    %v800 = vmul.f32 %v795, %v799
    %v801 = vadd.f32 %v800, 1.0
    %v802 = vmul.f32 %v801, %v786
    %vm803 = vweird.f32 %v195
    %v804 = vand.u32 %v787, 3
    %vm805 = vcmp.lt.s32.totalorder %v804, 2
    %vm806 = vcmp.eq.s32.totalorder %v804, 0
    %v807 = vxor.u32 %v802, 2147483648
    %v808 = vsel %vm806, %v794, %v807
    %vm809 = vcmp.eq.s32.totalorder %v804, 2
    %v810 = vxor.u32 %v794, 2147483648
    %v811 = vsel %vm809, %v810, %v802
    %v812 = vsel %vm805, %v808, %v811
    %v813 = vsel %vm803, nan, %v812
    %v814 = vsel %vm137, 1, 0
    %vm815 = vcmp.eq.s32.totalorder %v814, 1
    %v816 = vsel %vm815, %v350, %v659
    %v817 = vsel %vm815, %v505, %v813
    %v818 = vld [vmem:[%s4] sm:$0x1]
    %v820 = vperm.slane %v818, 0
    %v822 = vmul.f32 %v182, %v820
    %v823 = vmul.f32 %v187, %v820
    %v824 = vld [vmem:[%s5] sm:$0xff]
    %v825 = vld [vmem:[%s5 + $0x8] sm:$0xff]
    %v826 = vld [vmem:[%s5 + $0x10] sm:$0xff]
    %v827 = vld [vmem:[%s5 + $0x18] sm:$0xff]
    %vm828 = vcmask 261120
    %v830 = vsel %vm828, %v816, 0
    %v833 = vsel %vm828, %v817, 0
    %835 = vmatpush.msra.mxu0 0.0
    %836 = vmatpush.msra.mxu0 0.0
    %837 = vmatpush.msra.mxu0 0.0
    %838 = vmatpush.msra.mxu0 0.0
    %839 = vmatpush.msra.mxu0 0.0
    %840 = vmatpush.msra.mxu0 0.0
    %841 = vmatpush.msra.mxu0 0.0
    %842 = vmatpush.msra.mxu0 0.0
    %843 = vmatpush.msra.mxu0 0.0
    %844 = vmatpush.msra.mxu0 0.0
    %845 = vmatpush.msra.mxu0 0.0
    %846 = vmatpush.msra.mxu0 0.0
    %847 = vmatpush.msra.mxu0 %v827
    %848 = vmatpush.msra.mxu0 %v826
    %849 = vmatpush.msra.mxu0 %v825
    %850 = vmatpush.msra.mxu0 %v824
    %851 = vmatmul.f32.gmra.mxu0 %v830
    %v852 = vpop.f32.mrf.mxu0
    %v853 = vadd.f32 0.0, %v852
    %854 = vmatmul.f32.gmra.mxu0 %v833
    %v855 = vpop.f32.mrf.mxu0
    %v856 = vadd.f32 0.0, %v855
    %857 = vdwg.mxu0
    %v858 = vadd.f32 %v822, %v853
    %v859 = vadd.f32 %v823, %v856
    %v860 = vld [vmem:[%s6] sm:$0x1]
    %v862 = vperm.slane %v860, 0
    %v864 = vadd.f32 %v858, %v862
    %v865 = vadd.f32 %v859, %v862
    %v866 = vxor.u32 %v864, 2147483648
    %v867 = vxor.u32 %v865, 2147483648
    %v868 = vmul.f32 %v866, 1.442695
    %v869 = vpow.pop %v868
    %v870 = vmul.f32 %v867, 1.442695
    %v871 = vpow.pop %v870
    %v872 = vadd.f32 %v869, 1.0
    %v873 = vadd.f32 %v871, 1.0
    %v874 = vrcp.pop %v872
    %v875 = vmul.f32 %v872, %v874
    %v876 = vsub.f32 1.0, %v875
    %v877 = vmul.f32 %v874, %v876
    %v878 = vadd.f32 %v874, %v877
    %vm879 = vweird.f32 %v872
    %vm880 = vweird.f32 %v874
    %vm881 = vmor %vm879, %vm880
    %v882 = vsel %vm881, %v874, %v878
    %v883 = vand.u32 2147483647, %v872
    %vm884 = vcmp.eq.f32.partialorder %v883, 8.507059e+37
    %v885 = vand.u32 %v872, 2147483648
    %v886 = vor.u32 1.1754944e-38, %v885
    %v887 = vsel %vm884, %v886, %v882
    %v888 = vmul.f32 1.0, %v887
    %v889 = vrcp.pop %v873
    %v890 = vmul.f32 %v873, %v889
    %v891 = vsub.f32 1.0, %v890
    %v892 = vmul.f32 %v889, %v891
    %v893 = vadd.f32 %v889, %v892
    %vm894 = vweird.f32 %v873
    %vm895 = vweird.f32 %v889
    %vm896 = vmor %vm894, %vm895
    %v897 = vsel %vm896, %v889, %v893
    %v898 = vand.u32 2147483647, %v873
    %vm899 = vcmp.eq.f32.partialorder %v898, 8.507059e+37
    %v900 = vand.u32 %v873, 2147483648
    %v901 = vor.u32 1.1754944e-38, %v900
    %v902 = vsel %vm899, %v901, %v897
    %v903 = vmul.f32 1.0, %v902
    %v904 = vmul.f32 %v864, %v888
    %v905 = vmul.f32 %v865, %v903
    %v906 = vld [vmem:[#allocation6] sm:$0xff]
    %v907 = vld [vmem:[#allocation6 + $0x8] sm:$0xff]
    %v908 = vld [vmem:[#allocation6 + $0x10] sm:$0xff]
    %v909 = vld [vmem:[#allocation6 + $0x18] sm:$0xff]
    %v910 = vld [vmem:[#allocation6 + $0x20] sm:$0xff]
    %v911 = vld [vmem:[#allocation6 + $0x28] sm:$0xff]
    %v912 = vld [vmem:[#allocation6 + $0x30] sm:$0xff]
    %v913 = vld [vmem:[#allocation6 + $0x38] sm:$0xff]
    %v914 = vld [vmem:[#allocation6 + $0x40] sm:$0xff]
    %v915 = vld [vmem:[#allocation6 + $0x48] sm:$0xff]
    %v916 = vld [vmem:[#allocation6 + $0x50] sm:$0xff]
    %v917 = vld [vmem:[#allocation6 + $0x58] sm:$0xff]
    %v918 = vld [vmem:[#allocation6 + $0x60] sm:$0xff]
    %v919 = vld [vmem:[#allocation6 + $0x68] sm:$0xff]
    %v920 = vld [vmem:[#allocation6 + $0x70] sm:$0xff]
    %v921 = vld [vmem:[#allocation6 + $0x78] sm:$0xff]
    %v922 = vld [vmem:[#allocation6 + $0x80] sm:$0xff]
    %v923 = vld [vmem:[#allocation6 + $0x88] sm:$0xff]
    %v924 = vld [vmem:[#allocation6 + $0x90] sm:$0xff]
    %v925 = vld [vmem:[#allocation6 + $0x98] sm:$0xff]
    %v926 = vld [vmem:[#allocation6 + $0xa0] sm:$0xff]
    %v927 = vld [vmem:[#allocation6 + $0xa8] sm:$0xff]
    %v928 = vld [vmem:[#allocation6 + $0xb0] sm:$0xff]
    %v929 = vld [vmem:[#allocation6 + $0xb8] sm:$0xff]
    %v930 = vld [vmem:[#allocation6 + $0xc0] sm:$0xff]
    %v931 = vld [vmem:[#allocation6 + $0xc8] sm:$0xff]
    %v932 = vld [vmem:[#allocation6 + $0xd0] sm:$0xff]
    %v933 = vld [vmem:[#allocation6 + $0xd8] sm:$0xff]
    %v934 = vld [vmem:[#allocation6 + $0xe0] sm:$0xff]
    %v935 = vld [vmem:[#allocation6 + $0xe8] sm:$0xff]
    %v936 = vld [vmem:[#allocation6 + $0xf0] sm:$0xff]
    %v937 = vld [vmem:[#allocation6 + $0xf8] sm:$0xff]
    %v938 = vld [vmem:[#allocation6 + $0x100] sm:$0xff]
    %v939 = vld [vmem:[#allocation6 + $0x108] sm:$0xff]
    %v940 = vld [vmem:[#allocation6 + $0x110] sm:$0xff]
    %v941 = vld [vmem:[#allocation6 + $0x118] sm:$0xff]
    %v942 = vld [vmem:[#allocation6 + $0x120] sm:$0xff]
    %v943 = vld [vmem:[#allocation6 + $0x128] sm:$0xff]
    %v944 = vld [vmem:[#allocation6 + $0x130] sm:$0xff]
    %v945 = vld [vmem:[#allocation6 + $0x138] sm:$0xff]
    %v946 = vld [vmem:[#allocation6 + $0x140] sm:$0xff]
    %v947 = vld [vmem:[#allocation6 + $0x148] sm:$0xff]
    %v948 = vld [vmem:[#allocation6 + $0x150] sm:$0xff]
    %v949 = vld [vmem:[#allocation6 + $0x158] sm:$0xff]
    %v950 = vld [vmem:[#allocation6 + $0x160] sm:$0xff]
    %v951 = vld [vmem:[#allocation6 + $0x168] sm:$0xff]
    %v952 = vld [vmem:[#allocation6 + $0x170] sm:$0xff]
    %v953 = vld [vmem:[#allocation6 + $0x178] sm:$0xff]
    %v954 = vld [vmem:[%s8] sm:$0x7]
    %v956 = vperm.slane %v954, 0
    %v957 = vperm.slane %v954, 1
    %v958 = vperm.slane %v954, 2
    %962 = vmatpush.msra.mxu0 %v951
    %963 = vmatpush.msra.mxu0 %v948
    %964 = vmatpush.msra.mxu0 %v945
    %965 = vmatpush.msra.mxu0 %v942
    %966 = vmatpush.msra.mxu0 %v939
    %967 = vmatpush.msra.mxu0 %v936
    %968 = vmatpush.msra.mxu0 %v933
    %969 = vmatpush.msra.mxu0 %v930
    %970 = vmatpush.msra.mxu0 %v927
    %971 = vmatpush.msra.mxu0 %v924
    %972 = vmatpush.msra.mxu0 %v921
    %973 = vmatpush.msra.mxu0 %v918
    %974 = vmatpush.msra.mxu0 %v915
    %975 = vmatpush.msra.mxu0 %v912
    %976 = vmatpush.msra.mxu0 %v909
    %977 = vmatpush.msra.mxu0 %v906
    %978 = vmatmul.f32.gmra.mxu0 %v904
    %v979 = vpop.f32.mrf.mxu0
    %v980 = vadd.f32 %v956, %v979
    %981 = vmatmul.f32.gmra.mxu0 %v905
    %v982 = vpop.f32.mrf.mxu0
    %v983 = vadd.f32 %v956, %v982
    %984 = vdwg.mxu0
    %985 = vmatpush.msra.mxu0 %v952
    %986 = vmatpush.msra.mxu0 %v949
    %987 = vmatpush.msra.mxu0 %v946
    %988 = vmatpush.msra.mxu0 %v943
    %989 = vmatpush.msra.mxu0 %v940
    %990 = vmatpush.msra.mxu0 %v937
    %991 = vmatpush.msra.mxu0 %v934
    %992 = vmatpush.msra.mxu0 %v931
    %993 = vmatpush.msra.mxu0 %v928
    %994 = vmatpush.msra.mxu0 %v925
    %995 = vmatpush.msra.mxu0 %v922
    %996 = vmatpush.msra.mxu0 %v919
    %997 = vmatpush.msra.mxu0 %v916
    %998 = vmatpush.msra.mxu0 %v913
    %999 = vmatpush.msra.mxu0 %v910
    %1000 = vmatpush.msra.mxu0 %v907
    %1001 = vmatmul.f32.gmra.mxu0 %v904
    %v1002 = vpop.f32.mrf.mxu0
    %v1003 = vadd.f32 %v957, %v1002
    %1004 = vmatmul.f32.gmra.mxu0 %v905
    %v1005 = vpop.f32.mrf.mxu0
    %v1006 = vadd.f32 %v957, %v1005
    %1007 = vdwg.mxu0
    %1008 = vmatpush.msra.mxu0 %v953
    %1009 = vmatpush.msra.mxu0 %v950
    %1010 = vmatpush.msra.mxu0 %v947
    %1011 = vmatpush.msra.mxu0 %v944
    %1012 = vmatpush.msra.mxu0 %v941
    %1013 = vmatpush.msra.mxu0 %v938
    %1014 = vmatpush.msra.mxu0 %v935
    %1015 = vmatpush.msra.mxu0 %v932
    %1016 = vmatpush.msra.mxu0 %v929
    %1017 = vmatpush.msra.mxu0 %v926
    %1018 = vmatpush.msra.mxu0 %v923
    %1019 = vmatpush.msra.mxu0 %v920
    %1020 = vmatpush.msra.mxu0 %v917
    %1021 = vmatpush.msra.mxu0 %v914
    %1022 = vmatpush.msra.mxu0 %v911
    %1023 = vmatpush.msra.mxu0 %v908
    %1024 = vmatmul.f32.gmra.mxu0 %v904
    %v1025 = vpop.f32.mrf.mxu0
    %v1026 = vadd.f32 %v958, %v1025
    %1027 = vmatmul.f32.gmra.mxu0 %v905
    %v1028 = vpop.f32.mrf.mxu0
    %v1029 = vadd.f32 %v958, %v1028
    %1030 = vdwg.mxu0
    %v1031 = vld [vmem:[%s2] sm:$0xff]
    %v1032 = vld [vmem:[%s2 + $0x8] sm:$0xff]
    %v1033 = vld [vmem:[%s14] sm:$0x1]
    %v1034 = vsel %vm828, %v1031, 0.0
    %1035 = vadd.xlane.f32.xlu0 %v1034
    %v1036 = vpop.xlane.xlu0 %1035
    %v1037 = vsel %vm828, %v1032, 0.0
    %1038 = vadd.xlane.f32.xlu0 %v1037
    %v1039 = vpop.xlane.xlu0 %1038
    %v1040 = vrcp.pop 32.0
    %v1041 = vmul.f32 32.0, %v1040
    %v1042 = vsub.f32 1.0, %v1041
    %v1043 = vmul.f32 %v1040, %v1042
    %v1044 = vadd.f32 %v1040, %v1043
    %vm1045 = vweird.f32 %v1040
    %v1046 = vsel %vm1045, %v1040, %v1044
    %v1047 = vmul.f32 %v1036, %v1046
    %v1048 = vmul.f32 %v1039, %v1046
    %v1049 = vsub.f32 %v1031, %v1047
    %v1050 = vsub.f32 %v1032, %v1048
    %v1051 = vmul.f32 %v1049, %v1049
    %v1052 = vmul.f32 %v1050, %v1050
    %v1053 = vsel %vm828, %v1051, 0.0
    %1054 = vadd.xlane.f32.xlu0 %v1053
    %v1055 = vpop.xlane.xlu0 %1054
    %v1056 = vsel %vm828, %v1052, 0.0
    %1057 = vadd.xlane.f32.xlu0 %v1056
    %v1058 = vpop.xlane.xlu0 %1057
    %v1059 = vmul.f32 %v1055, %v1046
    %v1060 = vmul.f32 %v1058, %v1046
    %v1061 = vadd.f32 %v1059, 1e-05
    %v1062 = vadd.f32 %v1060, 1e-05
    %v1063 = vrsqrt.pop %v1061
    %v1064 = vmul.f32 %v1063, %v1061
    %v1065 = vmul.f32 %v1064, %v1063
    %v1066 = vmul.f32 0.5, %v1065
    %v1067 = vsub.f32 1.5, %v1066
    %v1068 = vmul.f32 %v1063, %v1067
    %vm1069 = vweird.f32 %v1061
    %vm1070 = vweird.f32 %v1063
    %vm1071 = vmor %vm1069, %vm1070
    %v1072 = vsel %vm1071, %v1063, %v1068
    %v1073 = vrsqrt.pop %v1062
    %v1074 = vmul.f32 %v1073, %v1062
    %v1075 = vmul.f32 %v1074, %v1073
    %v1076 = vmul.f32 0.5, %v1075
    %v1077 = vsub.f32 1.5, %v1076
    %v1078 = vmul.f32 %v1073, %v1077
    %vm1079 = vweird.f32 %v1062
    %vm1080 = vweird.f32 %v1073
    %vm1081 = vmor %vm1079, %vm1080
    %v1082 = vsel %vm1081, %v1073, %v1078
    %v1083 = vmul.f32 %v1049, %v1072
    %v1084 = vmul.f32 %v1050, %v1082
    %v1085 = vadd.f32 %v1033, 1.0
    %v1086 = vperm.slane %v1085, 0
    %v1087 = vmul.f32 %v1083, %v1086
    %v1088 = vmul.f32 %v1084, %v1086
    %v1089 = vadd.f32 %v980, 1.0
    %v1090 = vadd.f32 %v983, 1.0
    %v1091 = vmul.f32 %v1083, %v1089
    %v1092 = vmul.f32 %v1084, %v1090
    %1095 = vrot.lane.b32.xlu0 %v980, 96
    %v1096 = vpop.permute.xlu0 %1095
    %1097 = vrot.lane.b32.xlu0 %v983, 96
    %v1098 = vpop.permute.xlu0 %1097
    %v1101 = vadd.f32 %v1091, %v1096
    %v1102 = vadd.f32 %v1092, %v1098
    %v1103 = vsel %vm170, 1, 0
    %v1104 = vsel %vm171, 1, 0
    %vm1105 = vcmp.eq.s32.totalorder %v1103, 1
    %vm1106 = vcmp.eq.s32.totalorder %v1104, 1
    %v1107 = vsel %vm1105, %v1101, %v1087
    %v1108 = vsel %vm1106, %v1102, %v1088
    %v1109 = vld [vmem:[%s14 + $0x2] sm:$0x1]
    %v1110 = vmul.f32 %v1107, %v1107
    %v1111 = vmul.f32 %v1108, %v1108
    %v1112 = vsel %vm828, %v1110, 0.0
    %1113 = vadd.xlane.f32.xlu0 %v1112
    %v1114 = vpop.xlane.xlu0 %1113
    %v1115 = vsel %vm828, %v1111, 0.0
    %1116 = vadd.xlane.f32.xlu0 %v1115
    %v1117 = vpop.xlane.xlu0 %1116
    %v1118 = vmax.f32 %v1114, 1e-24
    %v1119 = vmax.f32 %v1117, 1e-24
    %v1120 = vrsqrt.pop %v1118
    %v1121 = vmul.f32 %v1120, %v1118
    %v1122 = vmul.f32 %v1121, %v1120
    %v1123 = vmul.f32 0.5, %v1122
    %v1124 = vsub.f32 1.5, %v1123
    %v1125 = vmul.f32 %v1120, %v1124
    %vm1126 = vweird.f32 %v1118
    %vm1127 = vweird.f32 %v1120
    %vm1128 = vmor %vm1126, %vm1127
    %v1129 = vsel %vm1128, %v1120, %v1125
    %v1130 = vrsqrt.pop %v1119
    %v1131 = vmul.f32 %v1130, %v1119
    %v1132 = vmul.f32 %v1131, %v1130
    %v1133 = vmul.f32 0.5, %v1132
    %v1134 = vsub.f32 1.5, %v1133
    %v1135 = vmul.f32 %v1130, %v1134
    %vm1136 = vweird.f32 %v1119
    %vm1137 = vweird.f32 %v1130
    %vm1138 = vmor %vm1136, %vm1137
    %v1139 = vsel %vm1138, %v1130, %v1135
    %v1140 = vmul.f32 %v1107, %v1129
    %v1141 = vmul.f32 %v1108, %v1139
    %v1142 = vmul.f32 %v1140, 5.656854
    %v1143 = vmul.f32 %v1141, 5.656854
    %v1144 = vadd.f32 %v1109, 1.0
    %v1145 = vperm.slane %v1144, 0
    %v1146 = vmul.f32 %v1142, %v1145
    %v1147 = vmul.f32 %v1143, %v1145
    %v1148 = vld [vmem:[%s9] sm:$0xff]
    %v1149 = vld [vmem:[%s9 + $0x8] sm:$0xff]
    %v1150 = vld [vmem:[%s9 + $0x10] sm:$0xff]
    %v1151 = vld [vmem:[%s9 + $0x18] sm:$0xff]
    %v1153 = vsel %vm828, %v1146, 0
    %v1156 = vsel %vm828, %v1147, 0
    %1158 = vmatpush.msra.mxu0 0.0
    %1159 = vmatpush.msra.mxu0 0.0
    %1160 = vmatpush.msra.mxu0 0.0
    %1161 = vmatpush.msra.mxu0 0.0
    %1162 = vmatpush.msra.mxu0 0.0
    %1163 = vmatpush.msra.mxu0 0.0
    %1164 = vmatpush.msra.mxu0 0.0
    %1165 = vmatpush.msra.mxu0 0.0
    %1166 = vmatpush.msra.mxu0 0.0
    %1167 = vmatpush.msra.mxu0 0.0
    %1168 = vmatpush.msra.mxu0 0.0
    %1169 = vmatpush.msra.mxu0 0.0
    %1170 = vmatpush.msra.mxu0 %v1151
    %1171 = vmatpush.msra.mxu0 %v1150
    %1172 = vmatpush.msra.mxu0 %v1149
    %1173 = vmatpush.msra.mxu0 %v1148
    %1174 = vmatmul.f32.gmra.mxu0 %v1153
    %v1175 = vpop.f32.mrf.mxu0
    %v1176 = vadd.f32 0.0, %v1175
    %1177 = vmatmul.f32.gmra.mxu0 %v1156
    %v1178 = vpop.f32.mrf.mxu0
    %v1179 = vadd.f32 0.0, %v1178
    %1180 = vdwg.mxu0
    %v1181 = vmul.f32 %v1176, 0.25
    %v1182 = vmul.f32 %v1179, 0.25
    %1185 = vrot.lane.b32.xlu0 %v1176, 96
    %v1186 = vpop.permute.xlu0 %1185
    %1187 = vrot.lane.b32.xlu0 %v1179, 96
    %v1188 = vpop.permute.xlu0 %1187
    %vm1189 = vcmask 130048
    %v1191 = vsel %vm1189, %v1181, 0
    %v1194 = vsel %vm1189, %v1182, 0
    %v1196 = vsel %vm1189, %v1186, 0
    %v1198 = vsel %vm1189, %v1188, 0
    %1200 = vmatpush.xpose.msra.mxu0 0.0
    %1201 = vmatpush.xpose.msra.mxu0 0.0
    %1202 = vmatpush.xpose.msra.mxu0 0.0
    %1203 = vmatpush.xpose.msra.mxu0 0.0
    %1204 = vmatpush.xpose.msra.mxu0 0.0
    %1205 = vmatpush.xpose.msra.mxu0 0.0
    %1206 = vmatpush.xpose.msra.mxu0 0.0
    %1207 = vmatpush.xpose.msra.mxu0 0.0
    %1208 = vmatpush.xpose.msra.mxu0 0.0
    %1209 = vmatpush.xpose.msra.mxu0 0.0
    %1210 = vmatpush.xpose.msra.mxu0 0.0
    %1211 = vmatpush.xpose.msra.mxu0 0.0
    %1212 = vmatpush.xpose.msra.mxu0 0.0
    %1213 = vmatpush.xpose.msra.mxu0 0.0
    %1214 = vmatpush.xpose.msra.mxu0 %v1198
    %1215 = vmatpush.xpose.msra.mxu0 %v1196
    %1216 = vmatmul.f32.gmra.mxu0 %v1191
    %v1217 = vpop.f32.mrf.mxu0
    %v1218 = vadd.f32 0.0, %v1217
    %1219 = vmatmul.f32.gmra.mxu0 %v1194
    %v1220 = vpop.f32.mrf.mxu0
    %v1221 = vadd.f32 0.0, %v1220
    %1222 = vdwg.mxu0
    %v1223 = vrcp.pop 50.0
    %v1224 = vmul.f32 50.0, %v1223
    %v1225 = vsub.f32 1.0, %v1224
    %v1226 = vmul.f32 %v1223, %v1225
    %v1227 = vadd.f32 %v1223, %v1226
    %vm1228 = vweird.f32 %v1223
    %v1229 = vsel %vm1228, %v1223, %v1227
    %v1230 = vmul.f32 %v1218, %v1229
    %v1231 = vmul.f32 %v1221, %v1229
    %v1232 = vtanh.pop %v1230
    %v1233 = vtanh.pop %v1231
    %v1234 = vmul.f32 %v1232, 50.0
    %v1235 = vmul.f32 %v1233, 50.0
    %v1236 = vadd.f32 %v1234, %v174
    %v1237 = vadd.f32 %v1235, %v175
    %v1238 = vsel %vm1189, %v1236, -inf
    %1239 = vmax.xlane.f32.xlu0 %v1238
    %v1240 = vpop.xlane.xlu0 %1239
    %v1241 = vsel %vm1189, %v1237, -inf
    %1242 = vmax.xlane.f32.xlu0 %v1241
    %v1243 = vpop.xlane.xlu0 %1242
    %v1244 = vsub.f32 %v1236, %v1240
    %v1245 = vsub.f32 %v1237, %v1243
    %v1246 = vmul.f32 %v1244, 1.442695
    %v1247 = vpow.pop %v1246
    %v1248 = vmul.f32 %v1245, 1.442695
    %v1249 = vpow.pop %v1248
    %v1250 = vsel %vm1189, %v1247, 0.0
    %1251 = vadd.xlane.f32.xlu0 %v1250
    %v1252 = vpop.xlane.xlu0 %1251
    %v1253 = vsel %vm1189, %v1249, 0.0
    %1254 = vadd.xlane.f32.xlu0 %v1253
    %v1255 = vpop.xlane.xlu0 %1254
    %v1256 = vrcp.pop %v1252
    %v1257 = vrcp.pop %v1255
    %v1258 = vmul.f32 %v1247, %v1256
    %v1259 = vmul.f32 %v1249, %v1257
    %1260 = vrot.lane.b32.xlu0 %v1176, 64
    %v1261 = vpop.permute.xlu0 %1260
    %1262 = vrot.lane.b32.xlu0 %v1179, 64
    %v1263 = vpop.permute.xlu0 %1262
    %v1267 = vsel %vm1189, %v1258, 0
    %v1270 = vsel %vm1189, %v1259, 0
    %1272 = vmatpush.msra.mxu0 0.0
    %1273 = vmatpush.msra.mxu0 0.0
    %1274 = vmatpush.msra.mxu0 0.0
    %1275 = vmatpush.msra.mxu0 0.0
    %1276 = vmatpush.msra.mxu0 0.0
    %1277 = vmatpush.msra.mxu0 0.0
    %1278 = vmatpush.msra.mxu0 0.0
    %1279 = vmatpush.msra.mxu0 0.0
    %1280 = vmatpush.msra.mxu0 0.0
    %1281 = vmatpush.msra.mxu0 0.0
    %1282 = vmatpush.msra.mxu0 0.0
    %1283 = vmatpush.msra.mxu0 0.0
    %1284 = vmatpush.msra.mxu0 0.0
    %1285 = vmatpush.msra.mxu0 0.0
    %1286 = vmatpush.msra.mxu0 %v1263
    %1287 = vmatpush.msra.mxu0 %v1261
    %1288 = vmatmul.f32.gmra.mxu0 %v1267
    %v1289 = vpop.f32.mrf.mxu0
    %v1290 = vadd.f32 0.0, %v1289
    %1291 = vmatmul.f32.gmra.mxu0 %v1270
    %v1292 = vpop.f32.mrf.mxu0
    %v1293 = vadd.f32 0.0, %v1292
    %1294 = vdwg.mxu0
    %1295 = vrot.lane.b32.xlu0 %v1181, 112
    %v1296 = vpop.permute.xlu0 %1295
    %1297 = vrot.lane.b32.xlu0 %v1182, 112
    %v1298 = vpop.permute.xlu0 %1297
    %1299 = vrot.lane.b32.xlu0 %v1176, 80
    %v1300 = vpop.permute.xlu0 %1299
    %1301 = vrot.lane.b32.xlu0 %v1179, 80
    %v1302 = vpop.permute.xlu0 %1301
    %v1303 = vsel %vm1189, %v1296, 0
    %v1305 = vsel %vm1189, %v1298, 0
    %v1307 = vsel %vm1189, %v1300, 0
    %v1309 = vsel %vm1189, %v1302, 0
    %1311 = vmatpush.xpose.msra.mxu0 0.0
    %1312 = vmatpush.xpose.msra.mxu0 0.0
    %1313 = vmatpush.xpose.msra.mxu0 0.0
    %1314 = vmatpush.xpose.msra.mxu0 0.0
    %1315 = vmatpush.xpose.msra.mxu0 0.0
    %1316 = vmatpush.xpose.msra.mxu0 0.0
    %1317 = vmatpush.xpose.msra.mxu0 0.0
    %1318 = vmatpush.xpose.msra.mxu0 0.0
    %1319 = vmatpush.xpose.msra.mxu0 0.0
    %1320 = vmatpush.xpose.msra.mxu0 0.0
    %1321 = vmatpush.xpose.msra.mxu0 0.0
    %1322 = vmatpush.xpose.msra.mxu0 0.0
    %1323 = vmatpush.xpose.msra.mxu0 0.0
    %1324 = vmatpush.xpose.msra.mxu0 0.0
    %1325 = vmatpush.xpose.msra.mxu0 %v1309
    %1326 = vmatpush.xpose.msra.mxu0 %v1307
    %1327 = vmatmul.f32.gmra.mxu0 %v1303
    %v1328 = vpop.f32.mrf.mxu0
    %v1329 = vadd.f32 0.0, %v1328
    %1330 = vmatmul.f32.gmra.mxu0 %v1305
    %v1331 = vpop.f32.mrf.mxu0
    %v1332 = vadd.f32 0.0, %v1331
    %1333 = vdwg.mxu0
    %v1334 = vmul.f32 %v1329, %v1229
    %v1335 = vmul.f32 %v1332, %v1229
    %v1336 = vtanh.pop %v1334
    %v1337 = vtanh.pop %v1335
    %v1338 = vmul.f32 %v1336, 50.0
    %v1339 = vmul.f32 %v1337, 50.0
    %v1340 = vadd.f32 %v1338, %v174
    %v1341 = vadd.f32 %v1339, %v175
    %v1342 = vsel %vm1189, %v1340, -inf
    %1343 = vmax.xlane.f32.xlu0 %v1342
    %v1344 = vpop.xlane.xlu0 %1343
    %v1345 = vsel %vm1189, %v1341, -inf
    %1346 = vmax.xlane.f32.xlu0 %v1345
    %v1347 = vpop.xlane.xlu0 %1346
    %v1348 = vsub.f32 %v1340, %v1344
    %v1349 = vsub.f32 %v1341, %v1347
    %v1350 = vmul.f32 %v1348, 1.442695
    %v1351 = vpow.pop %v1350
    %v1352 = vmul.f32 %v1349, 1.442695
    %v1353 = vpow.pop %v1352
    %v1354 = vsel %vm1189, %v1351, 0.0
    %1355 = vadd.xlane.f32.xlu0 %v1354
    %v1356 = vpop.xlane.xlu0 %1355
    %v1357 = vsel %vm1189, %v1353, 0.0
    %1358 = vadd.xlane.f32.xlu0 %v1357
    %v1359 = vpop.xlane.xlu0 %1358
    %v1360 = vrcp.pop %v1356
    %v1361 = vrcp.pop %v1359
    %v1362 = vmul.f32 %v1351, %v1360
    %v1363 = vmul.f32 %v1353, %v1361
    %1364 = vrot.lane.b32.xlu0 %v1176, 48
    %v1365 = vpop.permute.xlu0 %1364
    %1366 = vrot.lane.b32.xlu0 %v1179, 48
    %v1367 = vpop.permute.xlu0 %1366
    %v1371 = vsel %vm1189, %v1362, 0
    %v1374 = vsel %vm1189, %v1363, 0
    %1376 = vmatpush.msra.mxu0 0.0
    %1377 = vmatpush.msra.mxu0 0.0
    %1378 = vmatpush.msra.mxu0 0.0
    %1379 = vmatpush.msra.mxu0 0.0
    %1380 = vmatpush.msra.mxu0 0.0
    %1381 = vmatpush.msra.mxu0 0.0
    %1382 = vmatpush.msra.mxu0 0.0
    %1383 = vmatpush.msra.mxu0 0.0
    %1384 = vmatpush.msra.mxu0 0.0
    %1385 = vmatpush.msra.mxu0 0.0
    %1386 = vmatpush.msra.mxu0 0.0
    %1387 = vmatpush.msra.mxu0 0.0
    %1388 = vmatpush.msra.mxu0 0.0
    %1389 = vmatpush.msra.mxu0 0.0
    %1390 = vmatpush.msra.mxu0 %v1367
    %1391 = vmatpush.msra.mxu0 %v1365
    %1392 = vmatmul.f32.gmra.mxu0 %v1371
    %v1393 = vpop.f32.mrf.mxu0
    %v1394 = vadd.f32 0.0, %v1393
    %1395 = vmatmul.f32.gmra.mxu0 %v1374
    %v1396 = vpop.f32.mrf.mxu0
    %v1397 = vadd.f32 0.0, %v1396
    %1398 = vdwg.mxu0
    %1401 = vrot.lane.b32.xlu0 %v1394, 16
    %v1402 = vpop.permute.xlu0 %1401
    %1403 = vrot.lane.b32.xlu0 %v1397, 16
    %v1404 = vpop.permute.xlu0 %1403
    %v1407 = vsel %vm1189, %v1290, %v1402
    %v1408 = vsel %vm1189, %v1293, %v1404
    %v1409 = vld [vmem:[%s10] sm:$0xff]
    %v1410 = vld [vmem:[%s10 + $0x8] sm:$0xff]
    %v1411 = vld [vmem:[%s10 + $0x10] sm:$0xff]
    %v1412 = vld [vmem:[%s10 + $0x18] sm:$0xff]
    %v1414 = vsel %vm828, %v1407, 0
    %v1417 = vsel %vm828, %v1408, 0
    %1419 = vmatpush.msra.mxu0 0.0
    %1420 = vmatpush.msra.mxu0 0.0
    %1421 = vmatpush.msra.mxu0 0.0
    %1422 = vmatpush.msra.mxu0 0.0
    %1423 = vmatpush.msra.mxu0 0.0
    %1424 = vmatpush.msra.mxu0 0.0
    %1425 = vmatpush.msra.mxu0 0.0
    %1426 = vmatpush.msra.mxu0 0.0
    %1427 = vmatpush.msra.mxu0 0.0
    %1428 = vmatpush.msra.mxu0 0.0
    %1429 = vmatpush.msra.mxu0 0.0
    %1430 = vmatpush.msra.mxu0 0.0
    %1431 = vmatpush.msra.mxu0 %v1412
    %1432 = vmatpush.msra.mxu0 %v1411
    %1433 = vmatpush.msra.mxu0 %v1410
    %1434 = vmatpush.msra.mxu0 %v1409
    %1435 = vmatmul.f32.gmra.mxu0 %v1414
    %v1436 = vpop.f32.mrf.mxu0
    %v1437 = vadd.f32 0.0, %v1436
    %1438 = vmatmul.f32.gmra.mxu0 %v1417
    %v1439 = vpop.f32.mrf.mxu0
    %v1440 = vadd.f32 0.0, %v1439
    %1441 = vdwg.mxu0
    %v1442 = vld [vmem:[%s14 + $0x1] sm:$0x1]
    %v1443 = vxor.u32 %v980, 2147483648
    %v1444 = vxor.u32 %v983, 2147483648
    %v1445 = vmul.f32 %v1443, 1.442695
    %v1446 = vpow.pop %v1445
    %v1447 = vmul.f32 %v1444, 1.442695
    %v1448 = vpow.pop %v1447
    %v1449 = vadd.f32 %v1446, 1.0
    %v1450 = vadd.f32 %v1448, 1.0
    %v1451 = vrcp.pop %v1449
    %v1452 = vmul.f32 %v1449, %v1451
    %v1453 = vsub.f32 1.0, %v1452
    %v1454 = vmul.f32 %v1451, %v1453
    %v1455 = vadd.f32 %v1451, %v1454
    %vm1456 = vweird.f32 %v1449
    %vm1457 = vweird.f32 %v1451
    %vm1458 = vmor %vm1456, %vm1457
    %v1459 = vsel %vm1458, %v1451, %v1455
    %v1460 = vand.u32 2147483647, %v1449
    %vm1461 = vcmp.eq.f32.partialorder %v1460, 8.507059e+37
    %v1462 = vand.u32 %v1449, 2147483648
    %v1463 = vor.u32 1.1754944e-38, %v1462
    %v1464 = vsel %vm1461, %v1463, %v1459
    %v1465 = vmul.f32 1.0, %v1464
    %v1466 = vrcp.pop %v1450
    %v1467 = vmul.f32 %v1450, %v1466
    %v1468 = vsub.f32 1.0, %v1467
    %v1469 = vmul.f32 %v1466, %v1468
    %v1470 = vadd.f32 %v1466, %v1469
    %vm1471 = vweird.f32 %v1450
    %vm1472 = vweird.f32 %v1466
    %vm1473 = vmor %vm1471, %vm1472
    %v1474 = vsel %vm1473, %v1466, %v1470
    %v1475 = vand.u32 2147483647, %v1450
    %vm1476 = vcmp.eq.f32.partialorder %v1475, 8.507059e+37
    %v1477 = vand.u32 %v1450, 2147483648
    %v1478 = vor.u32 1.1754944e-38, %v1477
    %v1479 = vsel %vm1476, %v1478, %v1474
    %v1480 = vmul.f32 1.0, %v1479
    %1483 = vrot.lane.b32.xlu0 %v1465, 64
    %v1484 = vpop.permute.xlu0 %1483
    %1485 = vrot.lane.b32.xlu0 %v1480, 64
    %v1486 = vpop.permute.xlu0 %1485
    %v1489 = vmul.f32 %v1437, %v1484
    %v1490 = vmul.f32 %v1440, %v1486
    %v1491 = vadd.f32 %v1442, 1.0
    %v1492 = vperm.slane %v1491, 0
    %v1493 = vmul.f32 %v1437, %v1492
    %v1494 = vmul.f32 %v1440, %v1492
    %v1495 = vsel %vm1105, %v1489, %v1493
    %v1496 = vsel %vm1106, %v1490, %v1494
    %v1497 = vadd.f32 %v1031, %v1495
    %v1498 = vadd.f32 %v1032, %v1496
    %v1499 = vld [vmem:[%s14 + $0x3] sm:$0x1]
    %v1500 = vsel %vm828, %v1497, 0.0
    %1501 = vadd.xlane.f32.xlu0 %v1500
    %v1502 = vpop.xlane.xlu0 %1501
    %v1503 = vsel %vm828, %v1498, 0.0
    %1504 = vadd.xlane.f32.xlu0 %v1503
    %v1505 = vpop.xlane.xlu0 %1504
    %v1506 = vmul.f32 %v1502, %v1046
    %v1507 = vmul.f32 %v1505, %v1046
    %v1508 = vsub.f32 %v1497, %v1506
    %v1509 = vsub.f32 %v1498, %v1507
    %v1510 = vmul.f32 %v1508, %v1508
    %v1511 = vmul.f32 %v1509, %v1509
    %v1512 = vsel %vm828, %v1510, 0.0
    %1513 = vadd.xlane.f32.xlu0 %v1512
    %v1514 = vpop.xlane.xlu0 %1513
    %v1515 = vsel %vm828, %v1511, 0.0
    %1516 = vadd.xlane.f32.xlu0 %v1515
    %v1517 = vpop.xlane.xlu0 %1516
    %v1518 = vmul.f32 %v1514, %v1046
    %v1519 = vmul.f32 %v1517, %v1046
    %v1520 = vadd.f32 %v1518, 1e-05
    %v1521 = vadd.f32 %v1519, 1e-05
    %v1522 = vrsqrt.pop %v1520
    %v1523 = vmul.f32 %v1522, %v1520
    %v1524 = vmul.f32 %v1523, %v1522
    %v1525 = vmul.f32 0.5, %v1524
    %v1526 = vsub.f32 1.5, %v1525
    %v1527 = vmul.f32 %v1522, %v1526
    %vm1528 = vweird.f32 %v1520
    %vm1529 = vweird.f32 %v1522
    %vm1530 = vmor %vm1528, %vm1529
    %v1531 = vsel %vm1530, %v1522, %v1527
    %v1532 = vrsqrt.pop %v1521
    %v1533 = vmul.f32 %v1532, %v1521
    %v1534 = vmul.f32 %v1533, %v1532
    %v1535 = vmul.f32 0.5, %v1534
    %v1536 = vsub.f32 1.5, %v1535
    %v1537 = vmul.f32 %v1532, %v1536
    %vm1538 = vweird.f32 %v1521
    %vm1539 = vweird.f32 %v1532
    %vm1540 = vmor %vm1538, %vm1539
    %v1541 = vsel %vm1540, %v1532, %v1537
    %v1542 = vmul.f32 %v1508, %v1531
    %v1543 = vmul.f32 %v1509, %v1541
    %v1544 = vadd.f32 %v1499, 1.0
    %v1545 = vperm.slane %v1544, 0
    %v1546 = vmul.f32 %v1542, %v1545
    %v1547 = vmul.f32 %v1543, %v1545
    %1550 = vrot.lane.b32.xlu0 %v1089, 32
    %v1551 = vpop.permute.xlu0 %1550
    %1552 = vrot.lane.b32.xlu0 %v1090, 32
    %v1553 = vpop.permute.xlu0 %1552
    %v1556 = vmul.f32 %v1542, %v1551
    %v1557 = vmul.f32 %v1543, %v1553
    %v1558 = vadd.f32 %v1556, %v1003
    %v1559 = vadd.f32 %v1557, %v1006
    %v1560 = vsel %vm1105, %v1558, %v1546
    %v1561 = vsel %vm1106, %v1559, %v1547
    %v1562 = vld [vmem:[%s14 + $0x5] sm:$0x1]
    %v1563 = vmul.f32 %v1560, %v1560
    %v1564 = vmul.f32 %v1561, %v1561
    %v1565 = vsel %vm828, %v1563, 0.0
    %1566 = vadd.xlane.f32.xlu0 %v1565
    %v1567 = vpop.xlane.xlu0 %1566
    %v1568 = vsel %vm828, %v1564, 0.0
    %1569 = vadd.xlane.f32.xlu0 %v1568
    %v1570 = vpop.xlane.xlu0 %1569
    %v1571 = vmax.f32 %v1567, 1e-24
    %v1572 = vmax.f32 %v1570, 1e-24
    %v1573 = vrsqrt.pop %v1571
    %v1574 = vmul.f32 %v1573, %v1571
    %v1575 = vmul.f32 %v1574, %v1573
    %v1576 = vmul.f32 0.5, %v1575
    %v1577 = vsub.f32 1.5, %v1576
    %v1578 = vmul.f32 %v1573, %v1577
    %vm1579 = vweird.f32 %v1571
    %vm1580 = vweird.f32 %v1573
    %vm1581 = vmor %vm1579, %vm1580
    %v1582 = vsel %vm1581, %v1573, %v1578
    %v1583 = vrsqrt.pop %v1572
    %v1584 = vmul.f32 %v1583, %v1572
    %v1585 = vmul.f32 %v1584, %v1583
    %v1586 = vmul.f32 0.5, %v1585
    %v1587 = vsub.f32 1.5, %v1586
    %v1588 = vmul.f32 %v1583, %v1587
    %vm1589 = vweird.f32 %v1572
    %vm1590 = vweird.f32 %v1583
    %vm1591 = vmor %vm1589, %vm1590
    %v1592 = vsel %vm1591, %v1583, %v1588
    %v1593 = vmul.f32 %v1560, %v1582
    %v1594 = vmul.f32 %v1561, %v1592
    %v1595 = vmul.f32 %v1593, 5.656854
    %v1596 = vmul.f32 %v1594, 5.656854
    %v1597 = vadd.f32 %v1562, 1.0
    %v1598 = vperm.slane %v1597, 0
    %v1599 = vmul.f32 %v1595, %v1598
    %v1600 = vmul.f32 %v1596, %v1598
    %v1601 = vld [vmem:[%s11] sm:$0xff]
    %v1602 = vld [vmem:[%s11 + $0x8] sm:$0xff]
    %v1603 = vld [vmem:[%s11 + $0x10] sm:$0xff]
    %v1604 = vld [vmem:[%s11 + $0x18] sm:$0xff]
    %v1605 = vld [vmem:[%s11 + $0x20] sm:$0xff]
    %v1606 = vld [vmem:[%s11 + $0x28] sm:$0xff]
    %v1607 = vld [vmem:[%s11 + $0x30] sm:$0xff]
    %v1608 = vld [vmem:[%s11 + $0x38] sm:$0xff]
    %v1609 = vld [vmem:[%s12] sm:$0x3]
    %v1611 = vperm.slane %v1609, 0
    %v1612 = vperm.slane %v1609, 1
    %v1616 = vsel %vm828, %v1599, 0
    %v1619 = vsel %vm828, %v1600, 0
    %1621 = vmatpush.msra.mxu0 0.0
    %1622 = vmatpush.msra.mxu0 0.0
    %1623 = vmatpush.msra.mxu0 0.0
    %1624 = vmatpush.msra.mxu0 0.0
    %1625 = vmatpush.msra.mxu0 0.0
    %1626 = vmatpush.msra.mxu0 0.0
    %1627 = vmatpush.msra.mxu0 0.0
    %1628 = vmatpush.msra.mxu0 0.0
    %1629 = vmatpush.msra.mxu0 0.0
    %1630 = vmatpush.msra.mxu0 0.0
    %1631 = vmatpush.msra.mxu0 0.0
    %1632 = vmatpush.msra.mxu0 0.0
    %1633 = vmatpush.msra.mxu0 %v1607
    %1634 = vmatpush.msra.mxu0 %v1605
    %1635 = vmatpush.msra.mxu0 %v1603
    %1636 = vmatpush.msra.mxu0 %v1601
    %1637 = vmatmul.f32.gmra.mxu0 %v1616
    %v1638 = vpop.f32.mrf.mxu0
    %v1639 = vadd.f32 %v1611, %v1638
    %1640 = vmatmul.f32.gmra.mxu0 %v1619
    %v1641 = vpop.f32.mrf.mxu0
    %v1642 = vadd.f32 %v1611, %v1641
    %1643 = vdwg.mxu0
    %1644 = vmatpush.msra.mxu0 0.0
    %1645 = vmatpush.msra.mxu0 0.0
    %1646 = vmatpush.msra.mxu0 0.0
    %1647 = vmatpush.msra.mxu0 0.0
    %1648 = vmatpush.msra.mxu0 0.0
    %1649 = vmatpush.msra.mxu0 0.0
    %1650 = vmatpush.msra.mxu0 0.0
    %1651 = vmatpush.msra.mxu0 0.0
    %1652 = vmatpush.msra.mxu0 0.0
    %1653 = vmatpush.msra.mxu0 0.0
    %1654 = vmatpush.msra.mxu0 0.0
    %1655 = vmatpush.msra.mxu0 0.0
    %1656 = vmatpush.msra.mxu0 %v1608
    %1657 = vmatpush.msra.mxu0 %v1606
    %1658 = vmatpush.msra.mxu0 %v1604
    %1659 = vmatpush.msra.mxu0 %v1602
    %1660 = vmatmul.f32.gmra.mxu0 %v1616
    %v1661 = vpop.f32.mrf.mxu0
    %v1662 = vadd.f32 %v1612, %v1661
    %1663 = vmatmul.f32.gmra.mxu0 %v1619
    %v1664 = vpop.f32.mrf.mxu0
    %v1665 = vadd.f32 %v1612, %v1664
    %1666 = vdwg.mxu0
    %v1667 = vmul.f32 %v1662, %v1662
    %v1668 = vmul.f32 %v1665, %v1665
    %v1669 = vmul.f32 %v1662, %v1667
    %v1670 = vmul.f32 %v1665, %v1668
    %v1671 = vmul.f32 %v1669, 0.044715
    %v1672 = vmul.f32 %v1670, 0.044715
    %v1673 = vadd.f32 %v1662, %v1671
    %v1674 = vadd.f32 %v1665, %v1672
    %v1675 = vmul.f32 %v1673, 0.7978846
    %v1676 = vmul.f32 %v1674, 0.7978846
    %v1677 = vtanh.pop %v1675
    %v1678 = vtanh.pop %v1676
    %v1679 = vadd.f32 %v1677, 1.0
    %v1680 = vadd.f32 %v1678, 1.0
    %v1681 = vmul.f32 %v1679, 0.5
    %v1682 = vmul.f32 %v1680, 0.5
    %v1683 = vmul.f32 %v1662, %v1681
    %v1684 = vmul.f32 %v1665, %v1682
    %v1685 = vmul.f32 %v1683, %v1639
    %v1686 = vmul.f32 %v1684, %v1642
    %v1687 = vld [vmem:[%s13] sm:$0xff]
    %v1688 = vld [vmem:[%s13 + $0x8] sm:$0xff]
    %v1689 = vld [vmem:[%s13 + $0x10] sm:$0xff]
    %v1690 = vld [vmem:[%s13 + $0x18] sm:$0xff]
    %v1691 = vld [vmem:[%s13 + $0x20] sm:$0xff]
    %v1692 = vld [vmem:[%s13 + $0x28] sm:$0xff]
    %v1693 = vld [vmem:[%s13 + $0x30] sm:$0xff]
    %v1694 = vld [vmem:[%s13 + $0x38] sm:$0xff]
    %v1695 = vld [vmem:[%s13 + $0x40] sm:$0xff]
    %v1696 = vld [vmem:[%s13 + $0x48] sm:$0xff]
    %v1697 = vld [vmem:[%s13 + $0x50] sm:$0xff]
    %v1698 = vld [vmem:[%s13 + $0x58] sm:$0xff]
    %v1699 = vld [vmem:[%s13 + $0x60] sm:$0xff]
    %v1700 = vld [vmem:[%s13 + $0x68] sm:$0xff]
    %v1701 = vld [vmem:[%s13 + $0x70] sm:$0xff]
    %v1702 = vld [vmem:[%s13 + $0x78] sm:$0xff]
    %v1703 = vld [vmem:[%s14 + $0xc] sm:$0x1]
    %v1704 = vperm.slane %v1703, 0
    %1705 = vmatpush.msra.mxu0 %v1702
    %1706 = vmatpush.msra.mxu0 %v1701
    %1707 = vmatpush.msra.mxu0 %v1700
    %1708 = vmatpush.msra.mxu0 %v1699
    %1709 = vmatpush.msra.mxu0 %v1698
    %1710 = vmatpush.msra.mxu0 %v1697
    %1711 = vmatpush.msra.mxu0 %v1696
    %1712 = vmatpush.msra.mxu0 %v1695
    %1713 = vmatpush.msra.mxu0 %v1694
    %1714 = vmatpush.msra.mxu0 %v1693
    %1715 = vmatpush.msra.mxu0 %v1692
    %1716 = vmatpush.msra.mxu0 %v1691
    %1717 = vmatpush.msra.mxu0 %v1690
    %1718 = vmatpush.msra.mxu0 %v1689
    %1719 = vmatpush.msra.mxu0 %v1688
    %1720 = vmatpush.msra.mxu0 %v1687
    %1721 = vmatmul.f32.gmra.mxu0 %v1685
    %v1722 = vpop.f32.mrf.mxu0
    %v1723 = vadd.f32 %v1704, %v1722
    %1724 = vmatmul.f32.gmra.mxu0 %v1686
    %v1725 = vpop.f32.mrf.mxu0
    %v1726 = vadd.f32 %v1704, %v1725
    %1727 = vdwg.mxu0
    %v1728 = vld [vmem:[%s14 + $0x4] sm:$0x1]
    %v1729 = vxor.u32 %v1003, 2147483648
    %v1730 = vxor.u32 %v1006, 2147483648
    %v1731 = vmul.f32 %v1729, 1.442695
    %v1732 = vpow.pop %v1731
    %v1733 = vmul.f32 %v1730, 1.442695
    %v1734 = vpow.pop %v1733
    %v1735 = vadd.f32 %v1732, 1.0
    %v1736 = vadd.f32 %v1734, 1.0
    %v1737 = vrcp.pop %v1735
    %v1738 = vmul.f32 %v1735, %v1737
    %v1739 = vsub.f32 1.0, %v1738
    %v1740 = vmul.f32 %v1737, %v1739
    %v1741 = vadd.f32 %v1737, %v1740
    %vm1742 = vweird.f32 %v1735
    %vm1743 = vweird.f32 %v1737
    %vm1744 = vmor %vm1742, %vm1743
    %v1745 = vsel %vm1744, %v1737, %v1741
    %v1746 = vand.u32 2147483647, %v1735
    %vm1747 = vcmp.eq.f32.partialorder %v1746, 8.507059e+37
    %v1748 = vand.u32 %v1735, 2147483648
    %v1749 = vor.u32 1.1754944e-38, %v1748
    %v1750 = vsel %vm1747, %v1749, %v1745
    %v1751 = vmul.f32 1.0, %v1750
    %v1752 = vrcp.pop %v1736
    %v1753 = vmul.f32 %v1736, %v1752
    %v1754 = vsub.f32 1.0, %v1753
    %v1755 = vmul.f32 %v1752, %v1754
    %v1756 = vadd.f32 %v1752, %v1755
    %vm1757 = vweird.f32 %v1736
    %vm1758 = vweird.f32 %v1752
    %vm1759 = vmor %vm1757, %vm1758
    %v1760 = vsel %vm1759, %v1752, %v1756
    %v1761 = vand.u32 2147483647, %v1736
    %vm1762 = vcmp.eq.f32.partialorder %v1761, 8.507059e+37
    %v1763 = vand.u32 %v1736, 2147483648
    %v1764 = vor.u32 1.1754944e-38, %v1763
    %v1765 = vsel %vm1762, %v1764, %v1760
    %v1766 = vmul.f32 1.0, %v1765
    %1769 = vrot.lane.b32.xlu0 %v1751, 96
    %v1770 = vpop.permute.xlu0 %1769
    %1771 = vrot.lane.b32.xlu0 %v1766, 96
    %v1772 = vpop.permute.xlu0 %1771
    %v1775 = vmul.f32 %v1723, %v1770
    %v1776 = vmul.f32 %v1726, %v1772
    %v1777 = vadd.f32 %v1728, 1.0
    %v1778 = vperm.slane %v1777, 0
    %v1779 = vmul.f32 %v1723, %v1778
    %v1780 = vmul.f32 %v1726, %v1778
    %v1781 = vsel %vm1105, %v1775, %v1779
    %v1782 = vsel %vm1106, %v1776, %v1780
    %v1783 = vadd.f32 %v1497, %v1781
    %v1784 = vadd.f32 %v1498, %v1782
    %v1785 = vld [vmem:[%s14 + $0x6] sm:$0x1]
    %v1786 = vsel %vm828, %v1783, 0.0
    %1787 = vadd.xlane.f32.xlu0 %v1786
    %v1788 = vpop.xlane.xlu0 %1787
    %v1789 = vsel %vm828, %v1784, 0.0
    %1790 = vadd.xlane.f32.xlu0 %v1789
    %v1791 = vpop.xlane.xlu0 %1790
    %v1792 = vmul.f32 %v1788, %v1046
    %v1793 = vmul.f32 %v1791, %v1046
    %v1794 = vsub.f32 %v1783, %v1792
    %v1795 = vsub.f32 %v1784, %v1793
    %v1796 = vmul.f32 %v1794, %v1794
    %v1797 = vmul.f32 %v1795, %v1795
    %v1798 = vsel %vm828, %v1796, 0.0
    %1799 = vadd.xlane.f32.xlu0 %v1798
    %v1800 = vpop.xlane.xlu0 %1799
    %v1801 = vsel %vm828, %v1797, 0.0
    %1802 = vadd.xlane.f32.xlu0 %v1801
    %v1803 = vpop.xlane.xlu0 %1802
    %v1804 = vmul.f32 %v1800, %v1046
    %v1805 = vmul.f32 %v1803, %v1046
    %v1806 = vadd.f32 %v1804, 1e-05
    %v1807 = vadd.f32 %v1805, 1e-05
    %v1808 = vrsqrt.pop %v1806
    %v1809 = vmul.f32 %v1808, %v1806
    %v1810 = vmul.f32 %v1809, %v1808
    %v1811 = vmul.f32 0.5, %v1810
    %v1812 = vsub.f32 1.5, %v1811
    %v1813 = vmul.f32 %v1808, %v1812
    %vm1814 = vweird.f32 %v1806
    %vm1815 = vweird.f32 %v1808
    %vm1816 = vmor %vm1814, %vm1815
    %v1817 = vsel %vm1816, %v1808, %v1813
    %v1818 = vrsqrt.pop %v1807
    %v1819 = vmul.f32 %v1818, %v1807
    %v1820 = vmul.f32 %v1819, %v1818
    %v1821 = vmul.f32 0.5, %v1820
    %v1822 = vsub.f32 1.5, %v1821
    %v1823 = vmul.f32 %v1818, %v1822
    %vm1824 = vweird.f32 %v1807
    %vm1825 = vweird.f32 %v1818
    %vm1826 = vmor %vm1824, %vm1825
    %v1827 = vsel %vm1826, %v1818, %v1823
    %v1828 = vmul.f32 %v1794, %v1817
    %v1829 = vmul.f32 %v1795, %v1827
    %v1830 = vadd.f32 %v1785, 1.0
    %v1831 = vperm.slane %v1830, 0
    %v1832 = vmul.f32 %v1828, %v1831
    %v1833 = vmul.f32 %v1829, %v1831
    %v1834 = vadd.f32 %v1003, 1.0
    %v1835 = vadd.f32 %v1006, 1.0
    %1838 = vrot.lane.b32.xlu0 %v1834, 64
    %v1839 = vpop.permute.xlu0 %1838
    %1840 = vrot.lane.b32.xlu0 %v1835, 64
    %v1841 = vpop.permute.xlu0 %1840
    %v1844 = vmul.f32 %v1828, %v1839
    %v1845 = vmul.f32 %v1829, %v1841
    %1848 = vrot.lane.b32.xlu0 %v1003, 32
    %v1849 = vpop.permute.xlu0 %1848
    %1850 = vrot.lane.b32.xlu0 %v1006, 32
    %v1851 = vpop.permute.xlu0 %1850
    %v1854 = vadd.f32 %v1844, %v1849
    %v1855 = vadd.f32 %v1845, %v1851
    %v1856 = vsel %vm1105, %v1854, %v1832
    %v1857 = vsel %vm1106, %v1855, %v1833
    %v1858 = vld [vmem:[%s14 + $0x8] sm:$0x1]
    %v1859 = vmul.f32 %v1856, %v1856
    %v1860 = vmul.f32 %v1857, %v1857
    %v1861 = vsel %vm828, %v1859, 0.0
    %1862 = vadd.xlane.f32.xlu0 %v1861
    %v1863 = vpop.xlane.xlu0 %1862
    %v1864 = vsel %vm828, %v1860, 0.0
    %1865 = vadd.xlane.f32.xlu0 %v1864
    %v1866 = vpop.xlane.xlu0 %1865
    %v1867 = vmax.f32 %v1863, 1e-24
    %v1868 = vmax.f32 %v1866, 1e-24
    %v1869 = vrsqrt.pop %v1867
    %v1870 = vmul.f32 %v1869, %v1867
    %v1871 = vmul.f32 %v1870, %v1869
    %v1872 = vmul.f32 0.5, %v1871
    %v1873 = vsub.f32 1.5, %v1872
    %v1874 = vmul.f32 %v1869, %v1873
    %vm1875 = vweird.f32 %v1867
    %vm1876 = vweird.f32 %v1869
    %vm1877 = vmor %vm1875, %vm1876
    %v1878 = vsel %vm1877, %v1869, %v1874
    %v1879 = vrsqrt.pop %v1868
    %v1880 = vmul.f32 %v1879, %v1868
    %v1881 = vmul.f32 %v1880, %v1879
    %v1882 = vmul.f32 0.5, %v1881
    %v1883 = vsub.f32 1.5, %v1882
    %v1884 = vmul.f32 %v1879, %v1883
    %vm1885 = vweird.f32 %v1868
    %vm1886 = vweird.f32 %v1879
    %vm1887 = vmor %vm1885, %vm1886
    %v1888 = vsel %vm1887, %v1879, %v1884
    %v1889 = vmul.f32 %v1856, %v1878
    %v1890 = vmul.f32 %v1857, %v1888
    %v1891 = vmul.f32 %v1889, 5.656854
    %v1892 = vmul.f32 %v1890, 5.656854
    %v1893 = vadd.f32 %v1858, 1.0
    %v1894 = vperm.slane %v1893, 0
    %v1895 = vmul.f32 %v1891, %v1894
    %v1896 = vmul.f32 %v1892, %v1894
    %s1897 = scalar_lea.vmem %s9, 32
    %v1898 = vld [vmem:[%s1897] sm:$0xff]
    %v1899 = vld [vmem:[%s1897 + $0x8] sm:$0xff]
    %v1900 = vld [vmem:[%s1897 + $0x10] sm:$0xff]
    %v1901 = vld [vmem:[%s1897 + $0x18] sm:$0xff]
    %v1903 = vsel %vm828, %v1895, 0
    %v1906 = vsel %vm828, %v1896, 0
    %1908 = vmatpush.msra.mxu0 0.0
    %1909 = vmatpush.msra.mxu0 0.0
    %1910 = vmatpush.msra.mxu0 0.0
    %1911 = vmatpush.msra.mxu0 0.0
    %1912 = vmatpush.msra.mxu0 0.0
    %1913 = vmatpush.msra.mxu0 0.0
    %1914 = vmatpush.msra.mxu0 0.0
    %1915 = vmatpush.msra.mxu0 0.0
    %1916 = vmatpush.msra.mxu0 0.0
    %1917 = vmatpush.msra.mxu0 0.0
    %1918 = vmatpush.msra.mxu0 0.0
    %1919 = vmatpush.msra.mxu0 0.0
    %1920 = vmatpush.msra.mxu0 %v1901
    %1921 = vmatpush.msra.mxu0 %v1900
    %1922 = vmatpush.msra.mxu0 %v1899
    %1923 = vmatpush.msra.mxu0 %v1898
    %1924 = vmatmul.f32.gmra.mxu0 %v1903
    %v1925 = vpop.f32.mrf.mxu0
    %v1926 = vadd.f32 0.0, %v1925
    %1927 = vmatmul.f32.gmra.mxu0 %v1906
    %v1928 = vpop.f32.mrf.mxu0
    %v1929 = vadd.f32 0.0, %v1928
    %1930 = vdwg.mxu0
    %v1931 = vmul.f32 %v1926, 0.25
    %v1932 = vmul.f32 %v1929, 0.25
    %1935 = vrot.lane.b32.xlu0 %v1926, 96
    %v1936 = vpop.permute.xlu0 %1935
    %1937 = vrot.lane.b32.xlu0 %v1929, 96
    %v1938 = vpop.permute.xlu0 %1937
    %v1940 = vsel %vm1189, %v1931, 0
    %v1943 = vsel %vm1189, %v1932, 0
    %v1945 = vsel %vm1189, %v1936, 0
    %v1947 = vsel %vm1189, %v1938, 0
    %1949 = vmatpush.xpose.msra.mxu0 0.0
    %1950 = vmatpush.xpose.msra.mxu0 0.0
    %1951 = vmatpush.xpose.msra.mxu0 0.0
    %1952 = vmatpush.xpose.msra.mxu0 0.0
    %1953 = vmatpush.xpose.msra.mxu0 0.0
    %1954 = vmatpush.xpose.msra.mxu0 0.0
    %1955 = vmatpush.xpose.msra.mxu0 0.0
    %1956 = vmatpush.xpose.msra.mxu0 0.0
    %1957 = vmatpush.xpose.msra.mxu0 0.0
    %1958 = vmatpush.xpose.msra.mxu0 0.0
    %1959 = vmatpush.xpose.msra.mxu0 0.0
    %1960 = vmatpush.xpose.msra.mxu0 0.0
    %1961 = vmatpush.xpose.msra.mxu0 0.0
    %1962 = vmatpush.xpose.msra.mxu0 0.0
    %1963 = vmatpush.xpose.msra.mxu0 %v1947
    %1964 = vmatpush.xpose.msra.mxu0 %v1945
    %1965 = vmatmul.f32.gmra.mxu0 %v1940
    %v1966 = vpop.f32.mrf.mxu0
    %v1967 = vadd.f32 0.0, %v1966
    %1968 = vmatmul.f32.gmra.mxu0 %v1943
    %v1969 = vpop.f32.mrf.mxu0
    %v1970 = vadd.f32 0.0, %v1969
    %1971 = vdwg.mxu0
    %v1972 = vmul.f32 %v1967, %v1229
    %v1973 = vmul.f32 %v1970, %v1229
    %v1974 = vtanh.pop %v1972
    %v1975 = vtanh.pop %v1973
    %v1976 = vmul.f32 %v1974, 50.0
    %v1977 = vmul.f32 %v1975, 50.0
    %v1978 = vadd.f32 %v1976, %v174
    %v1979 = vadd.f32 %v1977, %v175
    %v1980 = vsel %vm1189, %v1978, -inf
    %1981 = vmax.xlane.f32.xlu0 %v1980
    %v1982 = vpop.xlane.xlu0 %1981
    %v1983 = vsel %vm1189, %v1979, -inf
    %1984 = vmax.xlane.f32.xlu0 %v1983
    %v1985 = vpop.xlane.xlu0 %1984
    %v1986 = vsub.f32 %v1978, %v1982
    %v1987 = vsub.f32 %v1979, %v1985
    %v1988 = vmul.f32 %v1986, 1.442695
    %v1989 = vpow.pop %v1988
    %v1990 = vmul.f32 %v1987, 1.442695
    %v1991 = vpow.pop %v1990
    %v1992 = vsel %vm1189, %v1989, 0.0
    %1993 = vadd.xlane.f32.xlu0 %v1992
    %v1994 = vpop.xlane.xlu0 %1993
    %v1995 = vsel %vm1189, %v1991, 0.0
    %1996 = vadd.xlane.f32.xlu0 %v1995
    %v1997 = vpop.xlane.xlu0 %1996
    %v1998 = vrcp.pop %v1994
    %v1999 = vrcp.pop %v1997
    %v2000 = vmul.f32 %v1989, %v1998
    %v2001 = vmul.f32 %v1991, %v1999
    %2002 = vrot.lane.b32.xlu0 %v1926, 64
    %v2003 = vpop.permute.xlu0 %2002
    %2004 = vrot.lane.b32.xlu0 %v1929, 64
    %v2005 = vpop.permute.xlu0 %2004
    %v2009 = vsel %vm1189, %v2000, 0
    %v2012 = vsel %vm1189, %v2001, 0
    %2014 = vmatpush.msra.mxu0 0.0
    %2015 = vmatpush.msra.mxu0 0.0
    %2016 = vmatpush.msra.mxu0 0.0
    %2017 = vmatpush.msra.mxu0 0.0
    %2018 = vmatpush.msra.mxu0 0.0
    %2019 = vmatpush.msra.mxu0 0.0
    %2020 = vmatpush.msra.mxu0 0.0
    %2021 = vmatpush.msra.mxu0 0.0
    %2022 = vmatpush.msra.mxu0 0.0
    %2023 = vmatpush.msra.mxu0 0.0
    %2024 = vmatpush.msra.mxu0 0.0
    %2025 = vmatpush.msra.mxu0 0.0
    %2026 = vmatpush.msra.mxu0 0.0
    %2027 = vmatpush.msra.mxu0 0.0
    %2028 = vmatpush.msra.mxu0 %v2005
    %2029 = vmatpush.msra.mxu0 %v2003
    %2030 = vmatmul.f32.gmra.mxu0 %v2009
    %v2031 = vpop.f32.mrf.mxu0
    %v2032 = vadd.f32 0.0, %v2031
    %2033 = vmatmul.f32.gmra.mxu0 %v2012
    %v2034 = vpop.f32.mrf.mxu0
    %v2035 = vadd.f32 0.0, %v2034
    %2036 = vdwg.mxu0
    %2037 = vrot.lane.b32.xlu0 %v1931, 112
    %v2038 = vpop.permute.xlu0 %2037
    %2039 = vrot.lane.b32.xlu0 %v1932, 112
    %v2040 = vpop.permute.xlu0 %2039
    %2041 = vrot.lane.b32.xlu0 %v1926, 80
    %v2042 = vpop.permute.xlu0 %2041
    %2043 = vrot.lane.b32.xlu0 %v1929, 80
    %v2044 = vpop.permute.xlu0 %2043
    %v2045 = vsel %vm1189, %v2038, 0
    %v2047 = vsel %vm1189, %v2040, 0
    %v2049 = vsel %vm1189, %v2042, 0
    %v2051 = vsel %vm1189, %v2044, 0
    %2053 = vmatpush.xpose.msra.mxu0 0.0
    %2054 = vmatpush.xpose.msra.mxu0 0.0
    %2055 = vmatpush.xpose.msra.mxu0 0.0
    %2056 = vmatpush.xpose.msra.mxu0 0.0
    %2057 = vmatpush.xpose.msra.mxu0 0.0
    %2058 = vmatpush.xpose.msra.mxu0 0.0
    %2059 = vmatpush.xpose.msra.mxu0 0.0
    %2060 = vmatpush.xpose.msra.mxu0 0.0
    %2061 = vmatpush.xpose.msra.mxu0 0.0
    %2062 = vmatpush.xpose.msra.mxu0 0.0
    %2063 = vmatpush.xpose.msra.mxu0 0.0
    %2064 = vmatpush.xpose.msra.mxu0 0.0
    %2065 = vmatpush.xpose.msra.mxu0 0.0
    %2066 = vmatpush.xpose.msra.mxu0 0.0
    %2067 = vmatpush.xpose.msra.mxu0 %v2051
    %2068 = vmatpush.xpose.msra.mxu0 %v2049
    %2069 = vmatmul.f32.gmra.mxu0 %v2045
    %v2070 = vpop.f32.mrf.mxu0
    %v2071 = vadd.f32 0.0, %v2070
    %2072 = vmatmul.f32.gmra.mxu0 %v2047
    %v2073 = vpop.f32.mrf.mxu0
    %v2074 = vadd.f32 0.0, %v2073
    %2075 = vdwg.mxu0
    %v2076 = vmul.f32 %v2071, %v1229
    %v2077 = vmul.f32 %v2074, %v1229
    %v2078 = vtanh.pop %v2076
    %v2079 = vtanh.pop %v2077
    %v2080 = vmul.f32 %v2078, 50.0
    %v2081 = vmul.f32 %v2079, 50.0
    %v2082 = vadd.f32 %v2080, %v174
    %v2083 = vadd.f32 %v2081, %v175
    %v2084 = vsel %vm1189, %v2082, -inf
    %2085 = vmax.xlane.f32.xlu0 %v2084
    %v2086 = vpop.xlane.xlu0 %2085
    %v2087 = vsel %vm1189, %v2083, -inf
    %2088 = vmax.xlane.f32.xlu0 %v2087
    %v2089 = vpop.xlane.xlu0 %2088
    %v2090 = vsub.f32 %v2082, %v2086
    %v2091 = vsub.f32 %v2083, %v2089
    %v2092 = vmul.f32 %v2090, 1.442695
    %v2093 = vpow.pop %v2092
    %v2094 = vmul.f32 %v2091, 1.442695
    %v2095 = vpow.pop %v2094
    %v2096 = vsel %vm1189, %v2093, 0.0
    %2097 = vadd.xlane.f32.xlu0 %v2096
    %v2098 = vpop.xlane.xlu0 %2097
    %v2099 = vsel %vm1189, %v2095, 0.0
    %2100 = vadd.xlane.f32.xlu0 %v2099
    %v2101 = vpop.xlane.xlu0 %2100
    %v2102 = vrcp.pop %v2098
    %v2103 = vrcp.pop %v2101
    %v2104 = vmul.f32 %v2093, %v2102
    %v2105 = vmul.f32 %v2095, %v2103
    %2106 = vrot.lane.b32.xlu0 %v1926, 48
    %v2107 = vpop.permute.xlu0 %2106
    %2108 = vrot.lane.b32.xlu0 %v1929, 48
    %v2109 = vpop.permute.xlu0 %2108
    %v2113 = vsel %vm1189, %v2104, 0
    %v2116 = vsel %vm1189, %v2105, 0
    %2118 = vmatpush.msra.mxu0 0.0
    %2119 = vmatpush.msra.mxu0 0.0
    %2120 = vmatpush.msra.mxu0 0.0
    %2121 = vmatpush.msra.mxu0 0.0
    %2122 = vmatpush.msra.mxu0 0.0
    %2123 = vmatpush.msra.mxu0 0.0
    %2124 = vmatpush.msra.mxu0 0.0
    %2125 = vmatpush.msra.mxu0 0.0
    %2126 = vmatpush.msra.mxu0 0.0
    %2127 = vmatpush.msra.mxu0 0.0
    %2128 = vmatpush.msra.mxu0 0.0
    %2129 = vmatpush.msra.mxu0 0.0
    %2130 = vmatpush.msra.mxu0 0.0
    %2131 = vmatpush.msra.mxu0 0.0
    %2132 = vmatpush.msra.mxu0 %v2109
    %2133 = vmatpush.msra.mxu0 %v2107
    %2134 = vmatmul.f32.gmra.mxu0 %v2113
    %v2135 = vpop.f32.mrf.mxu0
    %v2136 = vadd.f32 0.0, %v2135
    %2137 = vmatmul.f32.gmra.mxu0 %v2116
    %v2138 = vpop.f32.mrf.mxu0
    %v2139 = vadd.f32 0.0, %v2138
    %2140 = vdwg.mxu0
    %2143 = vrot.lane.b32.xlu0 %v2136, 16
    %v2144 = vpop.permute.xlu0 %2143
    %2145 = vrot.lane.b32.xlu0 %v2139, 16
    %v2146 = vpop.permute.xlu0 %2145
    %v2149 = vsel %vm1189, %v2032, %v2144
    %v2150 = vsel %vm1189, %v2035, %v2146
    %s2151 = scalar_lea.vmem %s10, 32
    %v2152 = vld [vmem:[%s2151] sm:$0xff]
    %v2153 = vld [vmem:[%s2151 + $0x8] sm:$0xff]
    %v2154 = vld [vmem:[%s2151 + $0x10] sm:$0xff]
    %v2155 = vld [vmem:[%s2151 + $0x18] sm:$0xff]
    %v2157 = vsel %vm828, %v2149, 0
    %v2160 = vsel %vm828, %v2150, 0
    %2162 = vmatpush.msra.mxu0 0.0
    %2163 = vmatpush.msra.mxu0 0.0
    %2164 = vmatpush.msra.mxu0 0.0
    %2165 = vmatpush.msra.mxu0 0.0
    %2166 = vmatpush.msra.mxu0 0.0
    %2167 = vmatpush.msra.mxu0 0.0
    %2168 = vmatpush.msra.mxu0 0.0
    %2169 = vmatpush.msra.mxu0 0.0
    %2170 = vmatpush.msra.mxu0 0.0
    %2171 = vmatpush.msra.mxu0 0.0
    %2172 = vmatpush.msra.mxu0 0.0
    %2173 = vmatpush.msra.mxu0 0.0
    %2174 = vmatpush.msra.mxu0 %v2155
    %2175 = vmatpush.msra.mxu0 %v2154
    %2176 = vmatpush.msra.mxu0 %v2153
    %2177 = vmatpush.msra.mxu0 %v2152
    %2178 = vmatmul.f32.gmra.mxu0 %v2157
    %v2179 = vpop.f32.mrf.mxu0
    %v2180 = vadd.f32 0.0, %v2179
    %2181 = vmatmul.f32.gmra.mxu0 %v2160
    %v2182 = vpop.f32.mrf.mxu0
    %v2183 = vadd.f32 0.0, %v2182
    %2184 = vdwg.mxu0
    %v2185 = vld [vmem:[%s14 + $0x7] sm:$0x1]
    %v2186 = vxor.u32 %v1026, 2147483648
    %v2187 = vxor.u32 %v1029, 2147483648
    %v2188 = vmul.f32 %v2186, 1.442695
    %v2189 = vpow.pop %v2188
    %v2190 = vmul.f32 %v2187, 1.442695
    %v2191 = vpow.pop %v2190
    %v2192 = vadd.f32 %v2189, 1.0
    %v2193 = vadd.f32 %v2191, 1.0
    %v2194 = vrcp.pop %v2192
    %v2195 = vmul.f32 %v2192, %v2194
    %v2196 = vsub.f32 1.0, %v2195
    %v2197 = vmul.f32 %v2194, %v2196
    %v2198 = vadd.f32 %v2194, %v2197
    %vm2199 = vweird.f32 %v2192
    %vm2200 = vweird.f32 %v2194
    %vm2201 = vmor %vm2199, %vm2200
    %v2202 = vsel %vm2201, %v2194, %v2198
    %v2203 = vand.u32 2147483647, %v2192
    %vm2204 = vcmp.eq.f32.partialorder %v2203, 8.507059e+37
    %v2205 = vand.u32 %v2192, 2147483648
    %v2206 = vor.u32 1.1754944e-38, %v2205
    %v2207 = vsel %vm2204, %v2206, %v2202
    %v2208 = vmul.f32 1.0, %v2207
    %v2209 = vrcp.pop %v2193
    %v2210 = vmul.f32 %v2193, %v2209
    %v2211 = vsub.f32 1.0, %v2210
    %v2212 = vmul.f32 %v2209, %v2211
    %v2213 = vadd.f32 %v2209, %v2212
    %vm2214 = vweird.f32 %v2193
    %vm2215 = vweird.f32 %v2209
    %vm2216 = vmor %vm2214, %vm2215
    %v2217 = vsel %vm2216, %v2209, %v2213
    %v2218 = vand.u32 2147483647, %v2193
    %vm2219 = vcmp.eq.f32.partialorder %v2218, 8.507059e+37
    %v2220 = vand.u32 %v2193, 2147483648
    %v2221 = vor.u32 1.1754944e-38, %v2220
    %v2222 = vsel %vm2219, %v2221, %v2217
    %v2223 = vmul.f32 1.0, %v2222
    %v2224 = vmul.f32 %v2180, %v2208
    %v2225 = vmul.f32 %v2183, %v2223
    %v2226 = vadd.f32 %v2185, 1.0
    %v2227 = vperm.slane %v2226, 0
    %v2228 = vmul.f32 %v2180, %v2227
    %v2229 = vmul.f32 %v2183, %v2227
    %v2230 = vsel %vm1105, %v2224, %v2228
    %v2231 = vsel %vm1106, %v2225, %v2229
    %v2232 = vadd.f32 %v1783, %v2230
    %v2233 = vadd.f32 %v1784, %v2231
    %v2234 = vld [vmem:[%s14 + $0x9] sm:$0x1]
    %v2235 = vsel %vm828, %v2232, 0.0
    %2236 = vadd.xlane.f32.xlu0 %v2235
    %v2237 = vpop.xlane.xlu0 %2236
    %v2238 = vsel %vm828, %v2233, 0.0
    %2239 = vadd.xlane.f32.xlu0 %v2238
    %v2240 = vpop.xlane.xlu0 %2239
    %v2241 = vmul.f32 %v2237, %v1046
    %v2242 = vmul.f32 %v2240, %v1046
    %v2243 = vsub.f32 %v2232, %v2241
    %v2244 = vsub.f32 %v2233, %v2242
    %v2245 = vmul.f32 %v2243, %v2243
    %v2246 = vmul.f32 %v2244, %v2244
    %v2247 = vsel %vm828, %v2245, 0.0
    %2248 = vadd.xlane.f32.xlu0 %v2247
    %v2249 = vpop.xlane.xlu0 %2248
    %v2250 = vsel %vm828, %v2246, 0.0
    %2251 = vadd.xlane.f32.xlu0 %v2250
    %v2252 = vpop.xlane.xlu0 %2251
    %v2253 = vmul.f32 %v2249, %v1046
    %v2254 = vmul.f32 %v2252, %v1046
    %v2255 = vadd.f32 %v2253, 1e-05
    %v2256 = vadd.f32 %v2254, 1e-05
    %v2257 = vrsqrt.pop %v2255
    %v2258 = vmul.f32 %v2257, %v2255
    %v2259 = vmul.f32 %v2258, %v2257
    %v2260 = vmul.f32 0.5, %v2259
    %v2261 = vsub.f32 1.5, %v2260
    %v2262 = vmul.f32 %v2257, %v2261
    %vm2263 = vweird.f32 %v2255
    %vm2264 = vweird.f32 %v2257
    %vm2265 = vmor %vm2263, %vm2264
    %v2266 = vsel %vm2265, %v2257, %v2262
    %v2267 = vrsqrt.pop %v2256
    %v2268 = vmul.f32 %v2267, %v2256
    %v2269 = vmul.f32 %v2268, %v2267
    %v2270 = vmul.f32 0.5, %v2269
    %v2271 = vsub.f32 1.5, %v2270
    %v2272 = vmul.f32 %v2267, %v2271
    %vm2273 = vweird.f32 %v2256
    %vm2274 = vweird.f32 %v2267
    %vm2275 = vmor %vm2273, %vm2274
    %v2276 = vsel %vm2275, %v2267, %v2272
    %v2277 = vmul.f32 %v2243, %v2266
    %v2278 = vmul.f32 %v2244, %v2276
    %v2279 = vadd.f32 %v2234, 1.0
    %v2280 = vperm.slane %v2279, 0
    %v2281 = vmul.f32 %v2277, %v2280
    %v2282 = vmul.f32 %v2278, %v2280
    %v2283 = vadd.f32 %v1026, 1.0
    %v2284 = vadd.f32 %v1029, 1.0
    %2287 = vrot.lane.b32.xlu0 %v2283, 96
    %v2288 = vpop.permute.xlu0 %2287
    %2289 = vrot.lane.b32.xlu0 %v2284, 96
    %v2290 = vpop.permute.xlu0 %2289
    %v2293 = vmul.f32 %v2277, %v2288
    %v2294 = vmul.f32 %v2278, %v2290
    %2297 = vrot.lane.b32.xlu0 %v1026, 64
    %v2298 = vpop.permute.xlu0 %2297
    %2299 = vrot.lane.b32.xlu0 %v1029, 64
    %v2300 = vpop.permute.xlu0 %2299
    %v2303 = vadd.f32 %v2293, %v2298
    %v2304 = vadd.f32 %v2294, %v2300
    %v2305 = vsel %vm1105, %v2303, %v2281
    %v2306 = vsel %vm1106, %v2304, %v2282
    %v2307 = vld [vmem:[%s14 + $0xb] sm:$0x1]
    %v2308 = vmul.f32 %v2305, %v2305
    %v2309 = vmul.f32 %v2306, %v2306
    %v2310 = vsel %vm828, %v2308, 0.0
    %2311 = vadd.xlane.f32.xlu0 %v2310
    %v2312 = vpop.xlane.xlu0 %2311
    %v2313 = vsel %vm828, %v2309, 0.0
    %2314 = vadd.xlane.f32.xlu0 %v2313
    %v2315 = vpop.xlane.xlu0 %2314
    %v2316 = vmax.f32 %v2312, 1e-24
    %v2317 = vmax.f32 %v2315, 1e-24
    %v2318 = vrsqrt.pop %v2316
    %v2319 = vmul.f32 %v2318, %v2316
    %v2320 = vmul.f32 %v2319, %v2318
    %v2321 = vmul.f32 0.5, %v2320
    %v2322 = vsub.f32 1.5, %v2321
    %v2323 = vmul.f32 %v2318, %v2322
    %vm2324 = vweird.f32 %v2316
    %vm2325 = vweird.f32 %v2318
    %vm2326 = vmor %vm2324, %vm2325
    %v2327 = vsel %vm2326, %v2318, %v2323
    %v2328 = vrsqrt.pop %v2317
    %v2329 = vmul.f32 %v2328, %v2317
    %v2330 = vmul.f32 %v2329, %v2328
    %v2331 = vmul.f32 0.5, %v2330
    %v2332 = vsub.f32 1.5, %v2331
    %v2333 = vmul.f32 %v2328, %v2332
    %vm2334 = vweird.f32 %v2317
    %vm2335 = vweird.f32 %v2328
    %vm2336 = vmor %vm2334, %vm2335
    %v2337 = vsel %vm2336, %v2328, %v2333
    %v2338 = vmul.f32 %v2305, %v2327
    %v2339 = vmul.f32 %v2306, %v2337
    %v2340 = vmul.f32 %v2338, 5.656854
    %v2341 = vmul.f32 %v2339, 5.656854
    %v2342 = vadd.f32 %v2307, 1.0
    %v2343 = vperm.slane %v2342, 0
    %v2344 = vmul.f32 %v2340, %v2343
    %v2345 = vmul.f32 %v2341, %v2343
    %s2346 = scalar_lea.vmem %s11, 64
    %v2347 = vld [vmem:[%s2346] sm:$0xff]
    %v2348 = vld [vmem:[%s2346 + $0x8] sm:$0xff]
    %v2349 = vld [vmem:[%s2346 + $0x10] sm:$0xff]
    %v2350 = vld [vmem:[%s2346 + $0x18] sm:$0xff]
    %v2351 = vld [vmem:[%s2346 + $0x20] sm:$0xff]
    %v2352 = vld [vmem:[%s2346 + $0x28] sm:$0xff]
    %v2353 = vld [vmem:[%s2346 + $0x30] sm:$0xff]
    %v2354 = vld [vmem:[%s2346 + $0x38] sm:$0xff]
    %s2355 = scalar_lea.vmem %s12, 2
    %v2356 = vld [vmem:[%s2355] sm:$0x3]
    %v2358 = vperm.slane %v2356, 0
    %v2359 = vperm.slane %v2356, 1
    %v2363 = vsel %vm828, %v2344, 0
    %v2366 = vsel %vm828, %v2345, 0
    %2368 = vmatpush.msra.mxu0 0.0
    %2369 = vmatpush.msra.mxu0 0.0
    %2370 = vmatpush.msra.mxu0 0.0
    %2371 = vmatpush.msra.mxu0 0.0
    %2372 = vmatpush.msra.mxu0 0.0
    %2373 = vmatpush.msra.mxu0 0.0
    %2374 = vmatpush.msra.mxu0 0.0
    %2375 = vmatpush.msra.mxu0 0.0
    %2376 = vmatpush.msra.mxu0 0.0
    %2377 = vmatpush.msra.mxu0 0.0
    %2378 = vmatpush.msra.mxu0 0.0
    %2379 = vmatpush.msra.mxu0 0.0
    %2380 = vmatpush.msra.mxu0 %v2353
    %2381 = vmatpush.msra.mxu0 %v2351
    %2382 = vmatpush.msra.mxu0 %v2349
    %2383 = vmatpush.msra.mxu0 %v2347
    %2384 = vmatmul.f32.gmra.mxu0 %v2363
    %v2385 = vpop.f32.mrf.mxu0
    %v2386 = vadd.f32 %v2358, %v2385
    %2387 = vmatmul.f32.gmra.mxu0 %v2366
    %v2388 = vpop.f32.mrf.mxu0
    %v2389 = vadd.f32 %v2358, %v2388
    %2390 = vdwg.mxu0
    %2391 = vmatpush.msra.mxu0 0.0
    %2392 = vmatpush.msra.mxu0 0.0
    %2393 = vmatpush.msra.mxu0 0.0
    %2394 = vmatpush.msra.mxu0 0.0
    %2395 = vmatpush.msra.mxu0 0.0
    %2396 = vmatpush.msra.mxu0 0.0
    %2397 = vmatpush.msra.mxu0 0.0
    %2398 = vmatpush.msra.mxu0 0.0
    %2399 = vmatpush.msra.mxu0 0.0
    %2400 = vmatpush.msra.mxu0 0.0
    %2401 = vmatpush.msra.mxu0 0.0
    %2402 = vmatpush.msra.mxu0 0.0
    %2403 = vmatpush.msra.mxu0 %v2354
    %2404 = vmatpush.msra.mxu0 %v2352
    %2405 = vmatpush.msra.mxu0 %v2350
    %2406 = vmatpush.msra.mxu0 %v2348
    %2407 = vmatmul.f32.gmra.mxu0 %v2363
    %v2408 = vpop.f32.mrf.mxu0
    %v2409 = vadd.f32 %v2359, %v2408
    %2410 = vmatmul.f32.gmra.mxu0 %v2366
    %v2411 = vpop.f32.mrf.mxu0
    %v2412 = vadd.f32 %v2359, %v2411
    %2413 = vdwg.mxu0
    %v2414 = vmul.f32 %v2409, %v2409
    %v2415 = vmul.f32 %v2412, %v2412
    %v2416 = vmul.f32 %v2409, %v2414
    %v2417 = vmul.f32 %v2412, %v2415
    %v2418 = vmul.f32 %v2416, 0.044715
    %v2419 = vmul.f32 %v2417, 0.044715
    %v2420 = vadd.f32 %v2409, %v2418
    %v2421 = vadd.f32 %v2412, %v2419
    %v2422 = vmul.f32 %v2420, 0.7978846
    %v2423 = vmul.f32 %v2421, 0.7978846
    %v2424 = vtanh.pop %v2422
    %v2425 = vtanh.pop %v2423
    %v2426 = vadd.f32 %v2424, 1.0
    %v2427 = vadd.f32 %v2425, 1.0
    %v2428 = vmul.f32 %v2426, 0.5
    %v2429 = vmul.f32 %v2427, 0.5
    %v2430 = vmul.f32 %v2409, %v2428
    %v2431 = vmul.f32 %v2412, %v2429
    %v2432 = vmul.f32 %v2430, %v2386
    %v2433 = vmul.f32 %v2431, %v2389
    %s2434 = scalar_lea.vmem %s13, 128
    %v2435 = vld [vmem:[%s2434] sm:$0xff]
    %v2436 = vld [vmem:[%s2434 + $0x8] sm:$0xff]
    %v2437 = vld [vmem:[%s2434 + $0x10] sm:$0xff]
    %v2438 = vld [vmem:[%s2434 + $0x18] sm:$0xff]
    %v2439 = vld [vmem:[%s2434 + $0x20] sm:$0xff]
    %v2440 = vld [vmem:[%s2434 + $0x28] sm:$0xff]
    %v2441 = vld [vmem:[%s2434 + $0x30] sm:$0xff]
    %v2442 = vld [vmem:[%s2434 + $0x38] sm:$0xff]
    %v2443 = vld [vmem:[%s2434 + $0x40] sm:$0xff]
    %v2444 = vld [vmem:[%s2434 + $0x48] sm:$0xff]
    %v2445 = vld [vmem:[%s2434 + $0x50] sm:$0xff]
    %v2446 = vld [vmem:[%s2434 + $0x58] sm:$0xff]
    %v2447 = vld [vmem:[%s2434 + $0x60] sm:$0xff]
    %v2448 = vld [vmem:[%s2434 + $0x68] sm:$0xff]
    %v2449 = vld [vmem:[%s2434 + $0x70] sm:$0xff]
    %v2450 = vld [vmem:[%s2434 + $0x78] sm:$0xff]
    %v2451 = vld [vmem:[%s14 + $0xd] sm:$0x1]
    %v2452 = vperm.slane %v2451, 0
    %2453 = vmatpush.msra.mxu0 %v2450
    %2454 = vmatpush.msra.mxu0 %v2449
    %2455 = vmatpush.msra.mxu0 %v2448
    %2456 = vmatpush.msra.mxu0 %v2447
    %2457 = vmatpush.msra.mxu0 %v2446
    %2458 = vmatpush.msra.mxu0 %v2445
    %2459 = vmatpush.msra.mxu0 %v2444
    %2460 = vmatpush.msra.mxu0 %v2443
    %2461 = vmatpush.msra.mxu0 %v2442
    %2462 = vmatpush.msra.mxu0 %v2441
    %2463 = vmatpush.msra.mxu0 %v2440
    %2464 = vmatpush.msra.mxu0 %v2439
    %2465 = vmatpush.msra.mxu0 %v2438
    %2466 = vmatpush.msra.mxu0 %v2437
    %2467 = vmatpush.msra.mxu0 %v2436
    %2468 = vmatpush.msra.mxu0 %v2435
    %2469 = vmatmul.f32.gmra.mxu0 %v2432
    %v2470 = vpop.f32.mrf.mxu0
    %v2471 = vadd.f32 %v2452, %v2470
    %2472 = vmatmul.f32.gmra.mxu0 %v2433
    %v2473 = vpop.f32.mrf.mxu0
    %v2474 = vadd.f32 %v2452, %v2473
    %2475 = vdwg.mxu0
    %v2476 = vld [vmem:[%s14 + $0xa] sm:$0x1]
    %2479 = vrot.lane.b32.xlu0 %v2208, 32
    %v2480 = vpop.permute.xlu0 %2479
    %2481 = vrot.lane.b32.xlu0 %v2223, 32
    %v2482 = vpop.permute.xlu0 %2481
    %v2485 = vmul.f32 %v2471, %v2480
    %v2486 = vmul.f32 %v2474, %v2482
    %v2487 = vadd.f32 %v2476, 1.0
    %v2488 = vperm.slane %v2487, 0
    %v2489 = vmul.f32 %v2471, %v2488
    %v2490 = vmul.f32 %v2474, %v2488
    %v2491 = vsel %vm1105, %v2485, %v2489
    %v2492 = vsel %vm1106, %v2486, %v2490
    %v2493 = vadd.f32 %v2232, %v2491
    %v2494 = vadd.f32 %v2233, %v2492
    %v2495 = vld [vmem:[%s14 + $0xe] sm:$0x1]
    %v2496 = vmul.f32 %v2493, %v2493
    %v2497 = vmul.f32 %v2494, %v2494
    %v2498 = vsel %vm828, %v2496, 0.0
    %2499 = vadd.xlane.f32.xlu0 %v2498
    %v2500 = vpop.xlane.xlu0 %2499
    %v2501 = vsel %vm828, %v2497, 0.0
    %2502 = vadd.xlane.f32.xlu0 %v2501
    %v2503 = vpop.xlane.xlu0 %2502
    %v2504 = vmax.f32 %v2500, 1e-24
    %v2505 = vmax.f32 %v2503, 1e-24
    %v2506 = vrsqrt.pop %v2504
    %v2507 = vmul.f32 %v2506, %v2504
    %v2508 = vmul.f32 %v2507, %v2506
    %v2509 = vmul.f32 0.5, %v2508
    %v2510 = vsub.f32 1.5, %v2509
    %v2511 = vmul.f32 %v2506, %v2510
    %vm2512 = vweird.f32 %v2504
    %vm2513 = vweird.f32 %v2506
    %vm2514 = vmor %vm2512, %vm2513
    %v2515 = vsel %vm2514, %v2506, %v2511
    %v2516 = vrsqrt.pop %v2505
    %v2517 = vmul.f32 %v2516, %v2505
    %v2518 = vmul.f32 %v2517, %v2516
    %v2519 = vmul.f32 0.5, %v2518
    %v2520 = vsub.f32 1.5, %v2519
    %v2521 = vmul.f32 %v2516, %v2520
    %vm2522 = vweird.f32 %v2505
    %vm2523 = vweird.f32 %v2516
    %vm2524 = vmor %vm2522, %vm2523
    %v2525 = vsel %vm2524, %v2516, %v2521
    %v2526 = vmul.f32 %v2493, %v2515
    %v2527 = vmul.f32 %v2494, %v2525
    %v2528 = vmul.f32 %v2526, 5.656854
    %v2529 = vmul.f32 %v2527, 5.656854
    %v2530 = vadd.f32 %v2495, 1.0
    %v2531 = vperm.slane %v2530, 0
    %v2532 = vmul.f32 %v2528, %v2531
    %v2533 = vmul.f32 %v2529, %v2531
    %2534 = vst.msk [vmem:[#allocation7] sm:$0xff] %vm828, %v2532
    %2535 = vst.msk [vmem:[#allocation7 + $0x8] sm:$0xff] %vm828, %v2533
    // Predicated region
    $region70: #{tpu_custom_call.1} parent=1 // pred_check
      _
    $region71: #{tpu_custom_call.1} parent=1 // pred_check_branch
      %2537 = sbr.rel (0) target = $region73
    $region72: #{tpu_custom_call.1} parent=1 // pred_region
      %2539 = vsyncadd [#allocation4], 0
      %s2540 = sshll.u32 [#allocation7], 4
      %s2541 = int_to_ptr.vmem [resolvable:$true] %s2540
      %s2542 = sshll.u32 %s15, 4
      %s2543 = int_to_ptr.hbm [resolvable:$true] %s2542
      %2548 = dma.vmem_to_hbm [thread:$0]  %s2541, 256, %s2543, [#allocation4], 128, 128, 8
    $region73: #{tpu_custom_call.1} parent=1 // pred_fallthru
      _
    // Predicated region
    $region74: #{tpu_custom_call.1} parent=1 // pred_check
      _
    $region75: #{tpu_custom_call.1} parent=1 // pred_check_branch
      %2550 = sbr.rel (0) target = $region77
    $region76: #{tpu_custom_call.1} parent=1 // pred_region
      %2552 = dma.done [#allocation4], 256
    $region77: #{tpu_custom_call.1} parent=1 // pred_fallthru
      _
    %2553 = vsyncpa [#allocation3], 1
    %2554 = vsyncpa [#allocation4], 1
    %2555 = vsyncpa [#allocation5], 1

</llo_original>
